<compile_context>
chip_gen: v7x
topology: tpu7x:2x2x1
jax: 0.10.0
libtpu: 0.0.40
codegen_flags: <defaults>
</compile_context>

<pallas_src>
import jax
import jax.numpy as jnp
from jax.experimental import pallas as pl
from jax.experimental.pallas import tpu as pltpu

LANES = 128   # lane-dense output padding (Cout / linear N -> 128)
TM = 128      # pooled-output rows per grid step


def _round_up(x, m):
    return (x + m - 1) // m * m


# ---------------- Pallas kernels ----------------

def conv_relu_pool_kernel(p_ref, w_ref, b_ref, o_ref):
    # p_ref: (4, TM, Kp) bf16 -- the 4 conv positions feeding each 2x2 pool window
    # w_ref: (Kp, NP)   bf16 -- im2col conv weight (K and N zero-padded)
    # b_ref: (1, NP)    f32
    # o_ref: (TM, NP)   f32  -- pooled + bias + relu output (lane-dense)
    tm = o_ref.shape[0]
    kp = w_ref.shape[0]
    # One MXU push/drain for all 4 pool positions.
    p = p_ref[...].reshape(4 * tm, kp)
    y = jnp.dot(p, w_ref[...], preferred_element_type=jnp.float32)  # (4*TM, NP)
    # Max over the 4 pool positions (elementwise, no cross-lane movement),
    # bias added once after the max, relu last.
    m01 = jnp.maximum(y[0 * tm:1 * tm], y[1 * tm:2 * tm])
    m23 = jnp.maximum(y[2 * tm:3 * tm], y[3 * tm:4 * tm])
    o_ref[...] = jnp.maximum(jnp.maximum(m01, m23) + b_ref[...], 0.0)


def linear_kernel(x_ref, w_ref, b_ref, o_ref):
    # x_ref: (B, F) bf16, w_ref: (F, NP) bf16, b_ref: (1, NP) f32, o_ref: (B, NP) f32
    o_ref[...] = (
        jnp.dot(x_ref[...], w_ref[...], preferred_element_type=jnp.float32)
        + b_ref[...]
    )


# ---------------- pallas_call wrappers ----------------

def conv_relu_pool(p4, w2d, b2d, *, tm=TM):
    # p4: (4, Mp, Kp) bf16, w2d: (Kp, NP) bf16, b2d: (1, NP) f32 -> (Mp, NP) f32
    _, Mp, Kp = p4.shape
    NP = w2d.shape[1]
    grid = (Mp // tm,)
    return pl.pallas_call(
        conv_relu_pool_kernel,
        out_shape=jax.ShapeDtypeStruct((Mp, NP), jnp.float32),
        grid=grid,
        in_specs=[
            pl.BlockSpec((4, tm, Kp), lambda i: (0, i, 0)),
            pl.BlockSpec((Kp, NP), lambda i: (0, 0)),
            pl.BlockSpec((1, NP), lambda i: (0, 0)),
        ],
        out_specs=pl.BlockSpec((tm, NP), lambda i: (i, 0)),
        compiler_params=pltpu.CompilerParams(
            dimension_semantics=("parallel",),
            vmem_limit_bytes=32 * 1024 * 1024,
        ),
        cost_estimate=pl.CostEstimate(
            flops=2 * 4 * Mp * Kp * NP,
            transcendentals=0,
            bytes_accessed=p4.size * 2 + w2d.size * 2 + b2d.size * 4 + Mp * NP * 4,
        ),
    )(p4, w2d, b2d)


def linear_call(x, wT, b2d):
    # x: (B, F) bf16, wT: (F, NP) bf16, b2d: (1, NP) f32 -> (B, NP) f32
    B, F = x.shape
    NP = wT.shape[1]
    vmem = pl.BlockSpec(memory_space=pltpu.MemorySpace.VMEM)
    return pl.pallas_call(
        linear_kernel,
        out_shape=jax.ShapeDtypeStruct((B, NP), jnp.float32),
        in_specs=[vmem, vmem, vmem],
        out_specs=vmem,
        cost_estimate=pl.CostEstimate(
            flops=2 * B * F * NP,
            transcendentals=0,
            bytes_accessed=x.size * 2 + wT.size * 2 + b2d.size * 4 + B * NP * 4,
        ),
    )(x, wT, b2d)


# ---------------- JAX glue (NHWC im2col, pool-group layout) ----------------

def im2col_nhwc(x, KH=5, KW=5, pad=2):
    # x: (B, H, W, C) -> (B, H, W, C*KH*KW); flatten order (C, dy, dx) matches
    # torch Conv2d weight.reshape(Cout, Cin*KH*KW).
    B, H, W, C = x.shape
    xp = jnp.pad(x, ((0, 0), (pad, pad), (pad, pad), (0, 0)))
    cols = [xp[:, dy:dy + H, dx:dx + W, :] for dy in range(KH) for dx in range(KW)]
    pat = jnp.stack(cols, axis=-1)                  # (B, H, W, C, KH*KW)
    return pat.reshape(B, H, W, C * KH * KW)


def pool_groups(patches):
    # (B, H, W, K) -> (4, M, K); axis 0 holds the 4 positions of each 2x2 window.
    B, H, W, K = patches.shape
    p = patches.reshape(B, H // 2, 2, W // 2, 2, K)
    p = p.transpose(2, 4, 0, 1, 3, 5)               # (2, 2, B, H/2, W/2, K)
    return p.reshape(4, B * (H // 2) * (W // 2), K)


def conv_block(x_nhwc, w, b, *, tm=TM):
    # x_nhwc: (B, H, W, Cin) f32; w: (Cout, Cin, 5, 5); b: (Cout,)
    B, H, W, Cin = x_nhwc.shape
    Cout = w.shape[0]
    K = Cin * 25
    Kp = _round_up(K, 32)      # sublane-friendly K (25 -> 32)
    NP = LANES                 # lane-dense output channels

    patches = im2col_nhwc(x_nhwc)                      # (B, H, W, K)
    p4 = pool_groups(patches)                          # (4, M, K)
    M = p4.shape[1]
    Mp = _round_up(M, tm)
    p4 = jnp.pad(p4, ((0, 0), (0, Mp - M), (0, Kp - K))).astype(jnp.bfloat16)

    w2d = w.reshape(Cout, K).T                         # (K, Cout)
    w2d = jnp.pad(w2d, ((0, Kp - K), (0, NP - Cout))).astype(jnp.bfloat16)
    b2d = jnp.pad(b.reshape(1, Cout), ((0, 0), (0, NP - Cout))).astype(jnp.float32)

    y = conv_relu_pool(p4, w2d, b2d, tm=tm)            # (Mp, NP) f32
    return y[:M, :Cout].reshape(B, H // 2, W // 2, Cout)   # NHWC


@jax.jit
def cnn_forward(x, params):
    # x: (B, 1, 28, 28) NCHW at the module boundary (matches torch).
    x_nhwc = jnp.transpose(x, (0, 2, 3, 1))                 # NHWC conv path
    y = conv_block(x_nhwc, params["w1"], params["b1"])      # (B, 14, 14, 16)
    y = conv_block(y, params["w2"], params["b2"])           # (B, 7, 7, 32)
    # Flatten in NCHW order so features match torch's x.view(B, -1).
    feat = jnp.transpose(y, (0, 3, 1, 2)).reshape(y.shape[0], -1)   # (B, 1568)

    wl = params["wl"]                                       # (10, 1568)
    n_out = wl.shape[0]
    wlT = jnp.pad(wl.T, ((0, 0), (0, LANES - n_out))).astype(jnp.bfloat16)
    bl = jnp.pad(params["bl"].reshape(1, -1), ((0, 0), (0, LANES - n_out)))
    out = linear_call(feat.astype(jnp.bfloat16), wlT, bl.astype(jnp.float32))
    return out[:, :n_out], feat


# ---------------- references (pure JAX / XLA) for validation ----------------

def _q(a):  # bf16 round-trip: models "bf16 MXU inputs, f32 accumulation"
    return a.astype(jnp.bfloat16).astype(jnp.float32)


def cnn_reference(x, params, quantize):
    q = _q if quantize else (lambda a: a)
    hi = jax.lax.Precision.HIGHEST

    def conv(xx, w, b):
        y = jax.lax.conv_general_dilated(
            q(xx), q(w), (1, 1), ((2, 2), (2, 2)),
            dimension_numbers=("NCHW", "OIHW", "NCHW"),
            preferred_element_type=jnp.float32, precision=hi)
        return y + b.reshape(1, -1, 1, 1)

    def pool(y):
        return jax.lax.reduce_window(
            y, -jnp.inf, jax.lax.max, (1, 1, 2, 2), (1, 1, 2, 2), "VALID")

    y = pool(jnp.maximum(conv(x, params["w1"], params["b1"]), 0.0))
    y = pool(jnp.maximum(conv(y, params["w2"], params["b2"]), 0.0))
    feat = y.reshape(y.shape[0], -1)
    out = jnp.dot(q(feat), q(params["wl"].T), precision=hi) + params["bl"]
    return out, feat


# ---------------- params ----------------

def init_params(key):
    k1, k2, k3, k4, k5, k6 = jax.random.split(key, 6)
    return {
        "w1": 0.1 * jax.random.normal(k1, (16, 1, 5, 5), jnp.float32),
        "b1": 0.1 * jax.random.normal(k2, (16,), jnp.float32),
        "w2": 0.05 * jax.random.normal(k3, (32, 16, 5, 5), jnp.float32),
        "b2": 0.1 * jax.random.normal(k4, (32,), jnp.float32),
        "wl": 0.02 * jax.random.normal(k5, (10, 32 * 7 * 7), jnp.float32),
        "bl": 0.1 * jax.random.normal(k6, (10,), jnp.float32),
    }


if __name__ == "__main__":
    root = jax.random.PRNGKey(0)
    kx, kp = jax.random.split(root)
    params = init_params(kp)
    x = jax.random.normal(kx, (2, 1, 28, 28), jnp.float32)   # B=2, MNIST-sized

    out, feat = jax.block_until_ready(cnn_forward(x, params))
    assert out.shape == (2, 10) and feat.shape == (2, 32 * 7 * 7)

    # Apples-to-apples check: same bf16-input / f32-accumulate arithmetic.
    out_q, feat_q = cnn_reference(x, params, quantize=True)
    assert jnp.allclose(out, out_q, atol=5e-3, rtol=5e-3)
    assert jnp.allclose(feat, feat_q, atol=5e-3, rtol=5e-3)

    # Sanity vs. the pure-f32 torch semantics (loose tolerance for bf16 inputs).
    out_f, feat_f = cnn_reference(x, params, quantize=False)
    assert jnp.allclose(out, out_f, atol=1e-1, rtol=1e-1)
    assert jnp.allclose(feat, feat_f, atol=1e-1, rtol=1e-1)

    print("KERNEL_OK")
</pallas_src>

<mosaic_0001>
module attributes {stable_mosaic.version = 11 : i64} {
  func.func @conv_relu_pool_kernel(%arg0: i32, %arg1: memref<4x128x32xbf16, #tpu.memory_space<vmem>>, %arg2: memref<32x128xbf16, #tpu.memory_space<vmem>>, %arg3: memref<1x128xf32, #tpu.memory_space<vmem>>, %arg4: memref<128x128xf32, #tpu.memory_space<vmem>>) attributes {dimension_semantics = [#tpu.dimension_semantics<parallel>], iteration_bounds = array<i64: 4>, scalar_prefetch = 0 : i64, scratch_operands = 0 : i64, tpu.core_type = #tpu.core_type<tc>, window_params = [{transform_indices = @transform_0, window_bounds = array<i64: 4, 128, 32>}, {pipeline_mode = #tpu.pipeline_mode<synchronous>, transform_indices = @transform_1, window_bounds = array<i64: 32, 128>}, {pipeline_mode = #tpu.pipeline_mode<synchronous>, transform_indices = @transform_2, window_bounds = array<i64: 1, 128>}, {transform_indices = @transform_3, window_bounds = array<i64: 128, 128>}]} {
    %c0 = arith.constant 0 : index
    %c0_0 = arith.constant 0 : index
    %c0_1 = arith.constant 0 : index
    %0 = vector.load %arg1[%c0, %c0_0, %c0_1] : memref<4x128x32xbf16, #tpu.memory_space<vmem>>, vector<4x128x32xbf16>
    %1 = vector.shape_cast %0 : vector<4x128x32xbf16> to vector<512x32xbf16>
    %c0_2 = arith.constant 0 : index
    %c0_3 = arith.constant 0 : index
    %2 = vector.load %arg2[%c0_2, %c0_3] : memref<32x128xbf16, #tpu.memory_space<vmem>>, vector<32x128xbf16>
    %cst = arith.constant dense<0.000000e+00> : vector<512x128xf32>
    %3 = tpu.matmul %1, %2, %cst {dimension_numbers = #tpu.dot_dimension_numbers<[1], [0], [0], [1], [0, 0, 1, 1], [], []>} : vector<512x32xbf16>, vector<32x128xbf16>, vector<512x128xf32> -> vector<512x128xf32>
    %4 = vector.extract_strided_slice %3 {offsets = [0, 0], sizes = [128, 128], strides = [1, 1]} : vector<512x128xf32> to vector<128x128xf32>
    %5 = vector.extract_strided_slice %3 {offsets = [128, 0], sizes = [128, 128], strides = [1, 1]} : vector<512x128xf32> to vector<128x128xf32>
    %6 = arith.maximumf %4, %5 : vector<128x128xf32>
    %7 = vector.extract_strided_slice %3 {offsets = [256, 0], sizes = [128, 128], strides = [1, 1]} : vector<512x128xf32> to vector<128x128xf32>
    %8 = vector.extract_strided_slice %3 {offsets = [384, 0], sizes = [128, 128], strides = [1, 1]} : vector<512x128xf32> to vector<128x128xf32>
    %9 = arith.maximumf %7, %8 : vector<128x128xf32>
    %10 = arith.maximumf %6, %9 : vector<128x128xf32>
    %c0_4 = arith.constant 0 : index
    %c0_5 = arith.constant 0 : index
    %11 = vector.load %arg3[%c0_4, %c0_5] : memref<1x128xf32, #tpu.memory_space<vmem>>, vector<1x128xf32>
    %12 = vector.broadcast %11 : vector<1x128xf32> to vector<128x128xf32>
    %13 = arith.addf %10, %12 : vector<128x128xf32>
    %cst_6 = arith.constant 0.000000e+00 : f32
    %14 = vector.broadcast %cst_6 : f32 to vector<128x128xf32>
    %15 = arith.maximumf %13, %14 : vector<128x128xf32>
    %c0_7 = arith.constant 0 : index
    %c0_8 = arith.constant 0 : index
    %16 = vector.load %arg4[%c0_7, %c0_8] : memref<128x128xf32, #tpu.memory_space<vmem>>, vector<128x128xf32>
    tpu.vector_store %arg4[%c0_7, %c0_8], %15 {strides = array<i32>} : memref<128x128xf32, #tpu.memory_space<vmem>>, vector<128x128xf32>,
    return
  }
  func.func @transform_0(%arg0: i32) -> (i32, i32, i32) {
    %c0_i32 = arith.constant 0 : i32
    %c0_i32_0 = arith.constant 0 : i32
    %c0_i32_1 = arith.constant 0 : i32
    return %c0_i32, %arg0, %c0_i32_0 : i32, i32, i32
  }
  func.func @transform_1(%arg0: i32) -> (i32, i32) {
    %c0_i32 = arith.constant 0 : i32
    %c0_i32_0 = arith.constant 0 : i32
    %c0_i32_1 = arith.constant 0 : i32
    return %c0_i32, %c0_i32_0 : i32, i32
  }
  func.func @transform_2(%arg0: i32) -> (i32, i32) {
    %c0_i32 = arith.constant 0 : i32
    %c0_i32_0 = arith.constant 0 : i32
    %c0_i32_1 = arith.constant 0 : i32
    return %c0_i32, %c0_i32_0 : i32, i32
  }
  func.func @transform_3(%arg0: i32) -> (i32, i32) {
    %c0_i32 = arith.constant 0 : i32
    %c0_i32_0 = arith.constant 0 : i32
    return %arg0, %c0_i32 : i32, i32
  }
}

module attributes {stable_mosaic.version = 11 : i64} {
  func.func @conv_relu_pool_kernel(%arg0: i32, %arg1: memref<4x128x416xbf16, #tpu.memory_space<vmem>>, %arg2: memref<416x128xbf16, #tpu.memory_space<vmem>>, %arg3: memref<1x128xf32, #tpu.memory_space<vmem>>, %arg4: memref<128x128xf32, #tpu.memory_space<vmem>>) attributes {dimension_semantics = [#tpu.dimension_semantics<parallel>], iteration_bounds = array<i64: 1>, scalar_prefetch = 0 : i64, scratch_operands = 0 : i64, tpu.core_type = #tpu.core_type<tc>, window_params = [{transform_indices = @transform_0, window_bounds = array<i64: 4, 128, 416>}, {pipeline_mode = #tpu.pipeline_mode<synchronous>, transform_indices = @transform_1, window_bounds = array<i64: 416, 128>}, {pipeline_mode = #tpu.pipeline_mode<synchronous>, transform_indices = @transform_2, window_bounds = array<i64: 1, 128>}, {transform_indices = @transform_3, window_bounds = array<i64: 128, 128>}]} {
    %c0 = arith.constant 0 : index
    %c0_0 = arith.constant 0 : index
    %c0_1 = arith.constant 0 : index
    %0 = vector.load %arg1[%c0, %c0_0, %c0_1] : memref<4x128x416xbf16, #tpu.memory_space<vmem>>, vector<4x128x416xbf16>
    %1 = vector.shape_cast %0 : vector<4x128x416xbf16> to vector<512x416xbf16>
    %c0_2 = arith.constant 0 : index
    %c0_3 = arith.constant 0 : index
    %2 = vector.load %arg2[%c0_2, %c0_3] : memref<416x128xbf16, #tpu.memory_space<vmem>>, vector<416x128xbf16>
    %cst = arith.constant dense<0.000000e+00> : vector<512x128xf32>
    %3 = tpu.matmul %1, %2, %cst {dimension_numbers = #tpu.dot_dimension_numbers<[1], [0], [0], [1], [0, 0, 1, 1], [], []>} : vector<512x416xbf16>, vector<416x128xbf16>, vector<512x128xf32> -> vector<512x128xf32>
    %4 = vector.extract_strided_slice %3 {offsets = [0, 0], sizes = [128, 128], strides = [1, 1]} : vector<512x128xf32> to vector<128x128xf32>
    %5 = vector.extract_strided_slice %3 {offsets = [128, 0], sizes = [128, 128], strides = [1, 1]} : vector<512x128xf32> to vector<128x128xf32>
    %6 = arith.maximumf %4, %5 : vector<128x128xf32>
    %7 = vector.extract_strided_slice %3 {offsets = [256, 0], sizes = [128, 128], strides = [1, 1]} : vector<512x128xf32> to vector<128x128xf32>
    %8 = vector.extract_strided_slice %3 {offsets = [384, 0], sizes = [128, 128], strides = [1, 1]} : vector<512x128xf32> to vector<128x128xf32>
    %9 = arith.maximumf %7, %8 : vector<128x128xf32>
    %10 = arith.maximumf %6, %9 : vector<128x128xf32>
    %c0_4 = arith.constant 0 : index
    %c0_5 = arith.constant 0 : index
    %11 = vector.load %arg3[%c0_4, %c0_5] : memref<1x128xf32, #tpu.memory_space<vmem>>, vector<1x128xf32>
    %12 = vector.broadcast %11 : vector<1x128xf32> to vector<128x128xf32>
    %13 = arith.addf %10, %12 : vector<128x128xf32>
    %cst_6 = arith.constant 0.000000e+00 : f32
    %14 = vector.broadcast %cst_6 : f32 to vector<128x128xf32>
    %15 = arith.maximumf %13, %14 : vector<128x128xf32>
    %c0_7 = arith.constant 0 : index
    %c0_8 = arith.constant 0 : index
    %16 = vector.load %arg4[%c0_7, %c0_8] : memref<128x128xf32, #tpu.memory_space<vmem>>, vector<128x128xf32>
    tpu.vector_store %arg4[%c0_7, %c0_8], %15 {strides = array<i32>} : memref<128x128xf32, #tpu.memory_space<vmem>>, vector<128x128xf32>,
    return
  }
  func.func @transform_0(%arg0: i32) -> (i32, i32, i32) {
    %c0_i32 = arith.constant 0 : i32
    %c0_i32_0 = arith.constant 0 : i32
    %c0_i32_1 = arith.constant 0 : i32
    return %c0_i32, %arg0, %c0_i32_0 : i32, i32, i32
  }
  func.func @transform_1(%arg0: i32) -> (i32, i32) {
    %c0_i32 = arith.constant 0 : i32
    %c0_i32_0 = arith.constant 0 : i32
    %c0_i32_1 = arith.constant 0 : i32
    return %c0_i32, %c0_i32_0 : i32, i32
  }
  func.func @transform_2(%arg0: i32) -> (i32, i32) {
    %c0_i32 = arith.constant 0 : i32
    %c0_i32_0 = arith.constant 0 : i32
    %c0_i32_1 = arith.constant 0 : i32
    return %c0_i32, %c0_i32_0 : i32, i32
  }
  func.func @transform_3(%arg0: i32) -> (i32, i32) {
    %c0_i32 = arith.constant 0 : i32
    %c0_i32_0 = arith.constant 0 : i32
    return %arg0, %c0_i32 : i32, i32
  }
}

module attributes {stable_mosaic.version = 11 : i64} {
  func.func @linear_kernel(%arg0: memref<2x1568xbf16, #tpu.memory_space<vmem>>, %arg1: memref<1568x128xbf16, #tpu.memory_space<vmem>>, %arg2: memref<1x128xf32, #tpu.memory_space<vmem>>, %arg3: memref<2x128xf32, #tpu.memory_space<vmem>>) attributes {dimension_semantics = [], scalar_prefetch = 0 : i64, scratch_operands = 0 : i64, tpu.core_type = #tpu.core_type<tc>} {
    %c0 = arith.constant 0 : index
    %c0_0 = arith.constant 0 : index
    %0 = vector.load %arg0[%c0, %c0_0] : memref<2x1568xbf16, #tpu.memory_space<vmem>>, vector<2x1568xbf16>
    %c0_1 = arith.constant 0 : index
    %c0_2 = arith.constant 0 : index
    %1 = vector.load %arg1[%c0_1, %c0_2] : memref<1568x128xbf16, #tpu.memory_space<vmem>>, vector<1568x128xbf16>
    %cst = arith.constant dense<0.000000e+00> : vector<2x128xf32>
    %2 = tpu.matmul %0, %1, %cst {dimension_numbers = #tpu.dot_dimension_numbers<[1], [0], [0], [1], [0, 0, 1, 1], [], []>} : vector<2x1568xbf16>, vector<1568x128xbf16>, vector<2x128xf32> -> vector<2x128xf32>
    %c0_3 = arith.constant 0 : index
    %c0_4 = arith.constant 0 : index
    %3 = vector.load %arg2[%c0_3, %c0_4] : memref<1x128xf32, #tpu.memory_space<vmem>>, vector<1x128xf32>
    %4 = vector.broadcast %3 : vector<1x128xf32> to vector<2x128xf32>
    %5 = arith.addf %2, %4 : vector<2x128xf32>
    %c0_5 = arith.constant 0 : index
    %c0_6 = arith.constant 0 : index
    %6 = vector.load %arg3[%c0_5, %c0_6] : memref<2x128xf32, #tpu.memory_space<vmem>>, vector<2x128xf32>
    tpu.vector_store %arg3[%c0_5, %c0_6], %5 {strides = array<i32>} : memref<2x128xf32, #tpu.memory_space<vmem>>, vector<2x128xf32>,
    return
  }
}

</mosaic_0001>

<llo_original>
// kernel: cnn_forward.3
$region0: #{cnn_forward.3}
  #allocation0 [shape = 'u32[]', space=smem, size = 0x4, offset = 0x4, fixed_abs, tag = 'smem constant byte address 0x4 - core index']
  #allocation1 [shape = 'u32[144,128]{1,0:T(1,128)}', space=vmem, size = 0x12000, scoped, tag = 'internal scratch']
  %s0 = inlined_call_operand.vmem [shape: bf16[4,512,32], index: 0, kind: input, shape index: {}]
  %s1 = inlined_call_operand.vmem [shape: bf16[32,128], index: 1, kind: input, shape index: {}]
  %s2 = inlined_call_operand.vmem [shape: f32[1,128], index: 2, kind: input, shape index: {}]
  %s3 = inlined_call_operand.vmem [shape: f32[512,128], index: 3, kind: output, shape index: {}]
  %s4 = sld [smem:[#allocation0]]
  $region86: #{cnn_forward.3} parent=0
    _
  %s6 = ssub.s32 1, %s4
  %s7 = scalar_select 0, %s6, %s4
  $region1: #{cnn_forward.3} parent=0
    #allocation2 [shape = 'u8[262144]{0}', space=vmem, size = 0x40000, scoped, tag = 'input window, operand 0']
    loop: start=0, step=1, limit=6
    $region2: #{cnn_forward.3} parent=1 // loop_pre_header
      _
    $region3: #{cnn_forward.3} parent=1 // loop_header
      %s9 = sphi 0, %s13
      %p10 = scmp.ge.s32.totalorder %s9, 6
      %s19 = sphi 0, %s21
      %s22 = sphi 0, %s19
      %s23 = sphi 0, %s22
      %s39 = sphi 0, %s23
      %s43 = sphi 0, %s43
      %s45 = sphi 0, %s43
      %s46 = sphi 0, %s45
      %s60 = sphi 0, %s46
      %s64 = sphi 0, %s64
      %s66 = sphi 0, %s64
      %s67 = sphi 0, %s66
      %s81 = sphi 0, %s67
      %s87 = sphi 0, %s89
      %s90 = sphi 0, %s87
      %s91 = sphi 0, %s90
      %s107 = sphi 0, %s91
    $region4: #{cnn_forward.3} parent=1 // loop_header_branch
      %12 = sbr.rel (%p10) target = $region8
    $region5: #{cnn_forward.3} parent=1 // loop_body
      %s14 = ssub.s32 %s9, 1
      %s15 = ssub.s32 %s9, 2
      %s16 = sadd.s32 %s9, 1
      %s17 = ssub.s32 %s9, %s16
      %p18 = scmp.eq.s32.totalorder %s17, 0
      %s20 = sadd.s32 %s19, 1
      %s21 = scalar_select %p18, %s19, %s20
      %p24 = pneg %p18
      %p25 = scmp.eq.s32.totalorder %s9, 3
      %p26 = por %p24, %p25
      %p27 = scmp.ne.s32.totalorder %s19, %s22
      %p28 = scmp.eq.s32.totalorder %s9, 0
      %p29 = por %p27, %p28
      %p30 = scmp.ne.s32.totalorder %s19, %s22
      %p31 = scmp.eq.s32.totalorder %s14, 3
      %p32 = por %p30, %p31
      %p33 = scmp.ne.s32.totalorder %s22, %s23
      %p34 = scmp.eq.s32.totalorder %s14, 0
      %p35 = por %p33, %p34
      %p36 = scmp.ne.s32.totalorder %s22, %s23
      %p37 = scmp.eq.s32.totalorder %s15, 3
      %p38 = por %p36, %p37
      %p40 = scmp.ne.s32.totalorder %s23, %s39
      %p41 = scmp.eq.s32.totalorder %s15, 0
      %p42 = por %p40, %p41
      %s44 = sadd.s32 %s43, 1
      %p47 = scmp.eq.s32.totalorder %s9, 3
      %p48 = scmp.ne.s32.totalorder %s43, %s45
      %p49 = scmp.eq.s32.totalorder %s9, 0
      %p50 = por %p48, %p49
      %p51 = scmp.ne.s32.totalorder %s43, %s45
      %p52 = scmp.eq.s32.totalorder %s14, 3
      %p53 = por %p51, %p52
      %p54 = scmp.ne.s32.totalorder %s45, %s46
      %p55 = scmp.eq.s32.totalorder %s14, 0
      %p56 = por %p54, %p55
      %p57 = scmp.ne.s32.totalorder %s45, %s46
      %p58 = scmp.eq.s32.totalorder %s15, 3
      %p59 = por %p57, %p58
      %p61 = scmp.ne.s32.totalorder %s46, %s60
      %p62 = scmp.eq.s32.totalorder %s15, 0
      %p63 = por %p61, %p62
      %s65 = sadd.s32 %s64, 1
      %p68 = scmp.eq.s32.totalorder %s9, 3
      %p69 = scmp.ne.s32.totalorder %s64, %s66
      %p70 = scmp.eq.s32.totalorder %s9, 0
      %p71 = por %p69, %p70
      %p72 = scmp.ne.s32.totalorder %s64, %s66
      %p73 = scmp.eq.s32.totalorder %s14, 3
      %p74 = por %p72, %p73
      %p75 = scmp.ne.s32.totalorder %s66, %s67
      %p76 = scmp.eq.s32.totalorder %s14, 0
      %p77 = por %p75, %p76
      %p78 = scmp.ne.s32.totalorder %s66, %s67
      %p79 = scmp.eq.s32.totalorder %s15, 3
      %p80 = por %p78, %p79
      %p82 = scmp.ne.s32.totalorder %s67, %s81
      %p83 = scmp.eq.s32.totalorder %s15, 0
      %p84 = por %p82, %p83
      %s85 = ssub.s32 %s9, %s16
      %p86 = scmp.eq.s32.totalorder %s85, 0
      %s88 = sadd.s32 %s87, 1
      %s89 = scalar_select %p86, %s87, %s88
      %p92 = pneg %p86
      %p93 = scmp.eq.s32.totalorder %s9, 3
      %p94 = por %p92, %p93
      %p95 = scmp.ne.s32.totalorder %s87, %s90
      %p96 = scmp.eq.s32.totalorder %s9, 0
      %p97 = por %p95, %p96
      %p98 = scmp.ne.s32.totalorder %s87, %s90
      %p99 = scmp.eq.s32.totalorder %s14, 3
      %p100 = por %p98, %p99
      %p101 = scmp.ne.s32.totalorder %s90, %s91
      %p102 = scmp.eq.s32.totalorder %s14, 0
      %p103 = por %p101, %p102
      %p104 = scmp.ne.s32.totalorder %s90, %s91
      %p105 = scmp.eq.s32.totalorder %s15, 3
      %p106 = por %p104, %p105
      %p108 = scmp.ne.s32.totalorder %s91, %s107
      %p109 = scmp.eq.s32.totalorder %s15, 0
      %p110 = por %p108, %p109
      %p111 = scmp.le.s32.totalorder 1, %s9
      %p112 = scmp.lt.s32.totalorder %s9, 5
      %p113 = pnand %p111, %p112
      %p114 = pneg %p113
      // Predicated region
      $region9: #{cnn_forward.3} parent=5 // pred_check
        _
      $region10: #{cnn_forward.3} parent=5 // pred_check_branch
        %116 = sbr.rel (%p113) target = $region12
      $region11: #{cnn_forward.3} parent=5 // pred_region
        %s117 = ssub.s32 %s9, 1
        // Predicated region
        $region13: #{cnn_forward.3} parent=11 // pred_check
          %p118 = pneg %p56
        $region14: #{cnn_forward.3} parent=11 // pred_check_branch
          %120 = sbr.rel (%p118) target = $region16
        $region15: #{cnn_forward.3} parent=11 // pred_region
          _
        $region16: #{cnn_forward.3} parent=11 // pred_fallthru
          _
        // Predicated region
        $region17: #{cnn_forward.3} parent=11 // pred_check
          %p121 = pneg %p77
        $region18: #{cnn_forward.3} parent=11 // pred_check_branch
          %123 = sbr.rel (%p121) target = $region20
        $region19: #{cnn_forward.3} parent=11 // pred_region
          _
        $region20: #{cnn_forward.3} parent=11 // pred_fallthru
          _
      $region12: #{cnn_forward.3} parent=5 // pred_fallthru
        _
      %p124 = scmp.lt.s32.totalorder %s9, 4
      // Predicated region
      $region21: #{cnn_forward.3} parent=5 // pred_check
        %p125 = pneg %p124
      $region22: #{cnn_forward.3} parent=5 // pred_check_branch
        %127 = sbr.rel (%p125) target = $region24
      $region23: #{cnn_forward.3} parent=5 // pred_region
        // Predicated region
        $region25: #{cnn_forward.3} parent=23 // pred_check
          %p128 = pneg %p29
        $region26: #{cnn_forward.3} parent=23 // pred_check_branch
          %130 = sbr.rel (%p128) target = $region28
        $region27: #{cnn_forward.3} parent=23 // pred_region
          %s131 = sand.u32 %s19, 1
          %s132 = sand.u32 %s19, 1
          %s133 = smul.addr %s132, 256
          %s134 = scalar_lea.vmem [#allocation2], %s133
          %s135 = smul.u32 16, %s9
          %s136 = smul.addr %s135, 4
          %s137 = scalar_lea.vmem %s0, %s136
          // Predicated region
          $region29: #{cnn_forward.3} parent=27 // pred_check
            _
          $region30: #{cnn_forward.3} parent=27 // pred_check_branch
            %139 = sbr.rel (0) target = $region32
          $region31: #{cnn_forward.3} parent=27 // pred_region
            // Predicated region
            $region33: #{cnn_forward.3} parent=31 // pred_check
              _
            $region34: #{cnn_forward.3} parent=31 // pred_check_branch
              %141 = sbr.rel target = $region36
            $region35: #{cnn_forward.3} parent=31 // pred_region
              // Predicated region
              $region48: #{cnn_forward.3} parent=35 // pred_check
                _
              $region49: #{cnn_forward.3} parent=35 // pred_check_branch
                %282 = sbr.rel (0) target = $region51
              $region50: #{cnn_forward.3} parent=35 // pred_region
                loop: start=0, step=1, limit=1
                $region52: #{cnn_forward.3} parent=50 // loop_pre_header
                  _
                $region53: #{cnn_forward.3} parent=50 // loop_header
                  %s284 = sphi 0, %s288
                  %p285 = scmp.ge.s32.totalorder %s284, 1
                  %s289 = sphi %s137, %s137
                  %s290 = sphi %s134, %s134
                $region54: #{cnn_forward.3} parent=50 // loop_header_branch
                  %287 = sbr.rel (%p285) target = $region58
                $region55: #{cnn_forward.3} parent=50 // loop_body
                  _
                $region56: #{cnn_forward.3} parent=50 // loop_footer
                  %s288 = sadd.s32 1, %s284
                $region57: #{cnn_forward.3} parent=50 // loop_footer_branch
                  %283 = sbr.rel target = $region53
                $region58: #{cnn_forward.3} parent=50 // loop_exit
                  _
                loop: start=0, step=1, limit=1
                $region59: #{cnn_forward.3} parent=50 // loop_pre_header
                  _
                $region60: #{cnn_forward.3} parent=50 // loop_header
                  %s293 = sphi 0, %s297
                  %p294 = scmp.ge.s32.totalorder %s293, 1
                  %s298 = sphi %s137, %s137
                  %s299 = sphi %s134, %s134
                $region61: #{cnn_forward.3} parent=50 // loop_header_branch
                  %296 = sbr.rel (%p294) target = $region65
                $region62: #{cnn_forward.3} parent=50 // loop_body
                  %v300 = vld [vmem:[%s298] sm:$0xf]
                  %301 = vst [vmem:[%s299] sm:$0xf] %v300
                  %v302 = vld [vmem:[%s298 + $0x4] sm:$0xf]
                  %303 = vst [vmem:[%s299 + $0x4] sm:$0xf] %v302
                  %v304 = vld [vmem:[%s298 + $0x8] sm:$0xf]
                  %305 = vst [vmem:[%s299 + $0x8] sm:$0xf] %v304
                  %v306 = vld [vmem:[%s298 + $0xc] sm:$0xf]
                  %307 = vst [vmem:[%s299 + $0xc] sm:$0xf] %v306
                  %v308 = vld [vmem:[%s298 + $0x10] sm:$0xf]
                  %309 = vst [vmem:[%s299 + $0x10] sm:$0xf] %v308
                  %v310 = vld [vmem:[%s298 + $0x14] sm:$0xf]
                  %311 = vst [vmem:[%s299 + $0x14] sm:$0xf] %v310
                  %v312 = vld [vmem:[%s298 + $0x18] sm:$0xf]
                  %313 = vst [vmem:[%s299 + $0x18] sm:$0xf] %v312
                  %v314 = vld [vmem:[%s298 + $0x1c] sm:$0xf]
                  %315 = vst [vmem:[%s299 + $0x1c] sm:$0xf] %v314
                  %v316 = vld [vmem:[%s298 + $0x20] sm:$0xf]
                  %317 = vst [vmem:[%s299 + $0x20] sm:$0xf] %v316
                  %v318 = vld [vmem:[%s298 + $0x24] sm:$0xf]
                  %319 = vst [vmem:[%s299 + $0x24] sm:$0xf] %v318
                  %v320 = vld [vmem:[%s298 + $0x28] sm:$0xf]
                  %321 = vst [vmem:[%s299 + $0x28] sm:$0xf] %v320
                  %v322 = vld [vmem:[%s298 + $0x2c] sm:$0xf]
                  %323 = vst [vmem:[%s299 + $0x2c] sm:$0xf] %v322
                  %v324 = vld [vmem:[%s298 + $0x30] sm:$0xf]
                  %325 = vst [vmem:[%s299 + $0x30] sm:$0xf] %v324
                  %v326 = vld [vmem:[%s298 + $0x34] sm:$0xf]
                  %327 = vst [vmem:[%s299 + $0x34] sm:$0xf] %v326
                  %v328 = vld [vmem:[%s298 + $0x38] sm:$0xf]
                  %329 = vst [vmem:[%s299 + $0x38] sm:$0xf] %v328
                  %v330 = vld [vmem:[%s298 + $0x3c] sm:$0xf]
                  %331 = vst [vmem:[%s299 + $0x3c] sm:$0xf] %v330
                  %v332 = vld [vmem:[%s298 + $0x100] sm:$0xf]
                  %333 = vst [vmem:[%s299 + $0x40] sm:$0xf] %v332
                  %v334 = vld [vmem:[%s298 + $0x104] sm:$0xf]
                  %335 = vst [vmem:[%s299 + $0x44] sm:$0xf] %v334
                  %v336 = vld [vmem:[%s298 + $0x108] sm:$0xf]
                  %337 = vst [vmem:[%s299 + $0x48] sm:$0xf] %v336
                  %v338 = vld [vmem:[%s298 + $0x10c] sm:$0xf]
                  %339 = vst [vmem:[%s299 + $0x4c] sm:$0xf] %v338
                  %v340 = vld [vmem:[%s298 + $0x110] sm:$0xf]
                  %341 = vst [vmem:[%s299 + $0x50] sm:$0xf] %v340
                  %v342 = vld [vmem:[%s298 + $0x114] sm:$0xf]
                  %343 = vst [vmem:[%s299 + $0x54] sm:$0xf] %v342
                  %v344 = vld [vmem:[%s298 + $0x118] sm:$0xf]
                  %345 = vst [vmem:[%s299 + $0x58] sm:$0xf] %v344
                  %v346 = vld [vmem:[%s298 + $0x11c] sm:$0xf]
                  %347 = vst [vmem:[%s299 + $0x5c] sm:$0xf] %v346
                  %v348 = vld [vmem:[%s298 + $0x120] sm:$0xf]
                  %349 = vst [vmem:[%s299 + $0x60] sm:$0xf] %v348
                  %v350 = vld [vmem:[%s298 + $0x124] sm:$0xf]
                  %351 = vst [vmem:[%s299 + $0x64] sm:$0xf] %v350
                  %v352 = vld [vmem:[%s298 + $0x128] sm:$0xf]
                  %353 = vst [vmem:[%s299 + $0x68] sm:$0xf] %v352
                  %v354 = vld [vmem:[%s298 + $0x12c] sm:$0xf]
                  %355 = vst [vmem:[%s299 + $0x6c] sm:$0xf] %v354
                  %v356 = vld [vmem:[%s298 + $0x130] sm:$0xf]
                  %357 = vst [vmem:[%s299 + $0x70] sm:$0xf] %v356
                  %v358 = vld [vmem:[%s298 + $0x134] sm:$0xf]
                  %359 = vst [vmem:[%s299 + $0x74] sm:$0xf] %v358
                  %v360 = vld [vmem:[%s298 + $0x138] sm:$0xf]
                  %361 = vst [vmem:[%s299 + $0x78] sm:$0xf] %v360
                  %v362 = vld [vmem:[%s298 + $0x13c] sm:$0xf]
                  %363 = vst [vmem:[%s299 + $0x7c] sm:$0xf] %v362
                  %v364 = vld [vmem:[%s298 + $0x200] sm:$0xf]
                  %365 = vst [vmem:[%s299 + $0x80] sm:$0xf] %v364
                  %v366 = vld [vmem:[%s298 + $0x204] sm:$0xf]
                  %367 = vst [vmem:[%s299 + $0x84] sm:$0xf] %v366
                  %v368 = vld [vmem:[%s298 + $0x208] sm:$0xf]
                  %369 = vst [vmem:[%s299 + $0x88] sm:$0xf] %v368
                  %v370 = vld [vmem:[%s298 + $0x20c] sm:$0xf]
                  %371 = vst [vmem:[%s299 + $0x8c] sm:$0xf] %v370
                  %v372 = vld [vmem:[%s298 + $0x210] sm:$0xf]
                  %373 = vst [vmem:[%s299 + $0x90] sm:$0xf] %v372
                  %v374 = vld [vmem:[%s298 + $0x214] sm:$0xf]
                  %375 = vst [vmem:[%s299 + $0x94] sm:$0xf] %v374
                  %v376 = vld [vmem:[%s298 + $0x218] sm:$0xf]
                  %377 = vst [vmem:[%s299 + $0x98] sm:$0xf] %v376
                  %v378 = vld [vmem:[%s298 + $0x21c] sm:$0xf]
                  %379 = vst [vmem:[%s299 + $0x9c] sm:$0xf] %v378
                  %v380 = vld [vmem:[%s298 + $0x220] sm:$0xf]
                  %381 = vst [vmem:[%s299 + $0xa0] sm:$0xf] %v380
                  %v382 = vld [vmem:[%s298 + $0x224] sm:$0xf]
                  %383 = vst [vmem:[%s299 + $0xa4] sm:$0xf] %v382
                  %v384 = vld [vmem:[%s298 + $0x228] sm:$0xf]
                  %385 = vst [vmem:[%s299 + $0xa8] sm:$0xf] %v384
                  %v386 = vld [vmem:[%s298 + $0x22c] sm:$0xf]
                  %387 = vst [vmem:[%s299 + $0xac] sm:$0xf] %v386
                  %v388 = vld [vmem:[%s298 + $0x230] sm:$0xf]
                  %389 = vst [vmem:[%s299 + $0xb0] sm:$0xf] %v388
                  %v390 = vld [vmem:[%s298 + $0x234] sm:$0xf]
                  %391 = vst [vmem:[%s299 + $0xb4] sm:$0xf] %v390
                  %v392 = vld [vmem:[%s298 + $0x238] sm:$0xf]
                  %393 = vst [vmem:[%s299 + $0xb8] sm:$0xf] %v392
                  %v394 = vld [vmem:[%s298 + $0x23c] sm:$0xf]
                  %395 = vst [vmem:[%s299 + $0xbc] sm:$0xf] %v394
                  %v396 = vld [vmem:[%s298 + $0x300] sm:$0xf]
                  %397 = vst [vmem:[%s299 + $0xc0] sm:$0xf] %v396
                  %v398 = vld [vmem:[%s298 + $0x304] sm:$0xf]
                  %399 = vst [vmem:[%s299 + $0xc4] sm:$0xf] %v398
                  %v400 = vld [vmem:[%s298 + $0x308] sm:$0xf]
                  %401 = vst [vmem:[%s299 + $0xc8] sm:$0xf] %v400
                  %v402 = vld [vmem:[%s298 + $0x30c] sm:$0xf]
                  %403 = vst [vmem:[%s299 + $0xcc] sm:$0xf] %v402
                  %v404 = vld [vmem:[%s298 + $0x310] sm:$0xf]
                  %405 = vst [vmem:[%s299 + $0xd0] sm:$0xf] %v404
                  %v406 = vld [vmem:[%s298 + $0x314] sm:$0xf]
                  %407 = vst [vmem:[%s299 + $0xd4] sm:$0xf] %v406
                  %v408 = vld [vmem:[%s298 + $0x318] sm:$0xf]
                  %409 = vst [vmem:[%s299 + $0xd8] sm:$0xf] %v408
                  %v410 = vld [vmem:[%s298 + $0x31c] sm:$0xf]
                  %411 = vst [vmem:[%s299 + $0xdc] sm:$0xf] %v410
                  %v412 = vld [vmem:[%s298 + $0x320] sm:$0xf]
                  %413 = vst [vmem:[%s299 + $0xe0] sm:$0xf] %v412
                  %v414 = vld [vmem:[%s298 + $0x324] sm:$0xf]
                  %415 = vst [vmem:[%s299 + $0xe4] sm:$0xf] %v414
                  %v416 = vld [vmem:[%s298 + $0x328] sm:$0xf]
                  %417 = vst [vmem:[%s299 + $0xe8] sm:$0xf] %v416
                  %v418 = vld [vmem:[%s298 + $0x32c] sm:$0xf]
                  %419 = vst [vmem:[%s299 + $0xec] sm:$0xf] %v418
                  %v420 = vld [vmem:[%s298 + $0x330] sm:$0xf]
                  %421 = vst [vmem:[%s299 + $0xf0] sm:$0xf] %v420
                  %v422 = vld [vmem:[%s298 + $0x334] sm:$0xf]
                  %423 = vst [vmem:[%s299 + $0xf4] sm:$0xf] %v422
                  %v424 = vld [vmem:[%s298 + $0x338] sm:$0xf]
                  %425 = vst [vmem:[%s299 + $0xf8] sm:$0xf] %v424
                  %v426 = vld [vmem:[%s298 + $0x33c] sm:$0xf]
                  %427 = vst [vmem:[%s299 + $0xfc] sm:$0xf] %v426
                $region63: #{cnn_forward.3} parent=50 // loop_footer
                  %s297 = sadd.s32 1, %s293
                $region64: #{cnn_forward.3} parent=50 // loop_footer_branch
                  %292 = sbr.rel target = $region60
                $region65: #{cnn_forward.3} parent=50 // loop_exit
                  _
              $region51: #{cnn_forward.3} parent=35 // pred_fallthru
                _
            $region36: #{cnn_forward.3} parent=31 // pred_fallthru
              _
            // Predicated region
            $region37: #{cnn_forward.3} parent=31 // pred_check
              _
            $region38: #{cnn_forward.3} parent=31 // pred_check_branch
              %143 = sbr.rel (0) target = $region40
            $region39: #{cnn_forward.3} parent=31 // pred_region
              loop: start=0, step=1, limit=1
              $region41: #{cnn_forward.3} parent=39 // loop_pre_header
                _
              $region42: #{cnn_forward.3} parent=39 // loop_header
                %s146 = sphi 0, %s150
                %p147 = scmp.ge.s32.totalorder %s146, 1
                %s151 = sphi %s137, %s137
                %s152 = sphi %s134, %s134
              $region43: #{cnn_forward.3} parent=39 // loop_header_branch
                %149 = sbr.rel (%p147) target = $region47
              $region44: #{cnn_forward.3} parent=39 // loop_body
                %v153 = vld [vmem:[%s151] sm:$0xf]
                %154 = vst [vmem:[%s152] sm:$0xf] %v153
                %v155 = vld [vmem:[%s151 + $0x4] sm:$0xf]
                %156 = vst [vmem:[%s152 + $0x4] sm:$0xf] %v155
                %v157 = vld [vmem:[%s151 + $0x8] sm:$0xf]
                %158 = vst [vmem:[%s152 + $0x8] sm:$0xf] %v157
                %v159 = vld [vmem:[%s151 + $0xc] sm:$0xf]
                %160 = vst [vmem:[%s152 + $0xc] sm:$0xf] %v159
                %v161 = vld [vmem:[%s151 + $0x10] sm:$0xf]
                %162 = vst [vmem:[%s152 + $0x10] sm:$0xf] %v161
                %v163 = vld [vmem:[%s151 + $0x14] sm:$0xf]
                %164 = vst [vmem:[%s152 + $0x14] sm:$0xf] %v163
                %v165 = vld [vmem:[%s151 + $0x18] sm:$0xf]
                %166 = vst [vmem:[%s152 + $0x18] sm:$0xf] %v165
                %v167 = vld [vmem:[%s151 + $0x1c] sm:$0xf]
                %168 = vst [vmem:[%s152 + $0x1c] sm:$0xf] %v167
                %v169 = vld [vmem:[%s151 + $0x20] sm:$0xf]
                %170 = vst [vmem:[%s152 + $0x20] sm:$0xf] %v169
                %v171 = vld [vmem:[%s151 + $0x24] sm:$0xf]
                %172 = vst [vmem:[%s152 + $0x24] sm:$0xf] %v171
                %v173 = vld [vmem:[%s151 + $0x28] sm:$0xf]
                %174 = vst [vmem:[%s152 + $0x28] sm:$0xf] %v173
                %v175 = vld [vmem:[%s151 + $0x2c] sm:$0xf]
                %176 = vst [vmem:[%s152 + $0x2c] sm:$0xf] %v175
                %v177 = vld [vmem:[%s151 + $0x30] sm:$0xf]
                %178 = vst [vmem:[%s152 + $0x30] sm:$0xf] %v177
                %v179 = vld [vmem:[%s151 + $0x34] sm:$0xf]
                %180 = vst [vmem:[%s152 + $0x34] sm:$0xf] %v179
                %v181 = vld [vmem:[%s151 + $0x38] sm:$0xf]
                %182 = vst [vmem:[%s152 + $0x38] sm:$0xf] %v181
                %v183 = vld [vmem:[%s151 + $0x3c] sm:$0xf]
                %184 = vst [vmem:[%s152 + $0x3c] sm:$0xf] %v183
                %v185 = vld [vmem:[%s151 + $0x100] sm:$0xf]
                %186 = vst [vmem:[%s152 + $0x40] sm:$0xf] %v185
                %v187 = vld [vmem:[%s151 + $0x104] sm:$0xf]
                %188 = vst [vmem:[%s152 + $0x44] sm:$0xf] %v187
                %v189 = vld [vmem:[%s151 + $0x108] sm:$0xf]
                %190 = vst [vmem:[%s152 + $0x48] sm:$0xf] %v189
                %v191 = vld [vmem:[%s151 + $0x10c] sm:$0xf]
                %192 = vst [vmem:[%s152 + $0x4c] sm:$0xf] %v191
                %v193 = vld [vmem:[%s151 + $0x110] sm:$0xf]
                %194 = vst [vmem:[%s152 + $0x50] sm:$0xf] %v193
                %v195 = vld [vmem:[%s151 + $0x114] sm:$0xf]
                %196 = vst [vmem:[%s152 + $0x54] sm:$0xf] %v195
                %v197 = vld [vmem:[%s151 + $0x118] sm:$0xf]
                %198 = vst [vmem:[%s152 + $0x58] sm:$0xf] %v197
                %v199 = vld [vmem:[%s151 + $0x11c] sm:$0xf]
                %200 = vst [vmem:[%s152 + $0x5c] sm:$0xf] %v199
                %v201 = vld [vmem:[%s151 + $0x120] sm:$0xf]
                %202 = vst [vmem:[%s152 + $0x60] sm:$0xf] %v201
                %v203 = vld [vmem:[%s151 + $0x124] sm:$0xf]
                %204 = vst [vmem:[%s152 + $0x64] sm:$0xf] %v203
                %v205 = vld [vmem:[%s151 + $0x128] sm:$0xf]
                %206 = vst [vmem:[%s152 + $0x68] sm:$0xf] %v205
                %v207 = vld [vmem:[%s151 + $0x12c] sm:$0xf]
                %208 = vst [vmem:[%s152 + $0x6c] sm:$0xf] %v207
                %v209 = vld [vmem:[%s151 + $0x130] sm:$0xf]
                %210 = vst [vmem:[%s152 + $0x70] sm:$0xf] %v209
                %v211 = vld [vmem:[%s151 + $0x134] sm:$0xf]
                %212 = vst [vmem:[%s152 + $0x74] sm:$0xf] %v211
                %v213 = vld [vmem:[%s151 + $0x138] sm:$0xf]
                %214 = vst [vmem:[%s152 + $0x78] sm:$0xf] %v213
                %v215 = vld [vmem:[%s151 + $0x13c] sm:$0xf]
                %216 = vst [vmem:[%s152 + $0x7c] sm:$0xf] %v215
                %v217 = vld [vmem:[%s151 + $0x200] sm:$0xf]
                %218 = vst [vmem:[%s152 + $0x80] sm:$0xf] %v217
                %v219 = vld [vmem:[%s151 + $0x204] sm:$0xf]
                %220 = vst [vmem:[%s152 + $0x84] sm:$0xf] %v219
                %v221 = vld [vmem:[%s151 + $0x208] sm:$0xf]
                %222 = vst [vmem:[%s152 + $0x88] sm:$0xf] %v221
                %v223 = vld [vmem:[%s151 + $0x20c] sm:$0xf]
                %224 = vst [vmem:[%s152 + $0x8c] sm:$0xf] %v223
                %v225 = vld [vmem:[%s151 + $0x210] sm:$0xf]
                %226 = vst [vmem:[%s152 + $0x90] sm:$0xf] %v225
                %v227 = vld [vmem:[%s151 + $0x214] sm:$0xf]
                %228 = vst [vmem:[%s152 + $0x94] sm:$0xf] %v227
                %v229 = vld [vmem:[%s151 + $0x218] sm:$0xf]
                %230 = vst [vmem:[%s152 + $0x98] sm:$0xf] %v229
                %v231 = vld [vmem:[%s151 + $0x21c] sm:$0xf]
                %232 = vst [vmem:[%s152 + $0x9c] sm:$0xf] %v231
                %v233 = vld [vmem:[%s151 + $0x220] sm:$0xf]
                %234 = vst [vmem:[%s152 + $0xa0] sm:$0xf] %v233
                %v235 = vld [vmem:[%s151 + $0x224] sm:$0xf]
                %236 = vst [vmem:[%s152 + $0xa4] sm:$0xf] %v235
                %v237 = vld [vmem:[%s151 + $0x228] sm:$0xf]
                %238 = vst [vmem:[%s152 + $0xa8] sm:$0xf] %v237
                %v239 = vld [vmem:[%s151 + $0x22c] sm:$0xf]
                %240 = vst [vmem:[%s152 + $0xac] sm:$0xf] %v239
                %v241 = vld [vmem:[%s151 + $0x230] sm:$0xf]
                %242 = vst [vmem:[%s152 + $0xb0] sm:$0xf] %v241
                %v243 = vld [vmem:[%s151 + $0x234] sm:$0xf]
                %244 = vst [vmem:[%s152 + $0xb4] sm:$0xf] %v243
                %v245 = vld [vmem:[%s151 + $0x238] sm:$0xf]
                %246 = vst [vmem:[%s152 + $0xb8] sm:$0xf] %v245
                %v247 = vld [vmem:[%s151 + $0x23c] sm:$0xf]
                %248 = vst [vmem:[%s152 + $0xbc] sm:$0xf] %v247
                %v249 = vld [vmem:[%s151 + $0x300] sm:$0xf]
                %250 = vst [vmem:[%s152 + $0xc0] sm:$0xf] %v249
                %v251 = vld [vmem:[%s151 + $0x304] sm:$0xf]
                %252 = vst [vmem:[%s152 + $0xc4] sm:$0xf] %v251
                %v253 = vld [vmem:[%s151 + $0x308] sm:$0xf]
                %254 = vst [vmem:[%s152 + $0xc8] sm:$0xf] %v253
                %v255 = vld [vmem:[%s151 + $0x30c] sm:$0xf]
                %256 = vst [vmem:[%s152 + $0xcc] sm:$0xf] %v255
                %v257 = vld [vmem:[%s151 + $0x310] sm:$0xf]
                %258 = vst [vmem:[%s152 + $0xd0] sm:$0xf] %v257
                %v259 = vld [vmem:[%s151 + $0x314] sm:$0xf]
                %260 = vst [vmem:[%s152 + $0xd4] sm:$0xf] %v259
                %v261 = vld [vmem:[%s151 + $0x318] sm:$0xf]
                %262 = vst [vmem:[%s152 + $0xd8] sm:$0xf] %v261
                %v263 = vld [vmem:[%s151 + $0x31c] sm:$0xf]
                %264 = vst [vmem:[%s152 + $0xdc] sm:$0xf] %v263
                %v265 = vld [vmem:[%s151 + $0x320] sm:$0xf]
                %266 = vst [vmem:[%s152 + $0xe0] sm:$0xf] %v265
                %v267 = vld [vmem:[%s151 + $0x324] sm:$0xf]
                %268 = vst [vmem:[%s152 + $0xe4] sm:$0xf] %v267
                %v269 = vld [vmem:[%s151 + $0x328] sm:$0xf]
                %270 = vst [vmem:[%s152 + $0xe8] sm:$0xf] %v269
                %v271 = vld [vmem:[%s151 + $0x32c] sm:$0xf]
                %272 = vst [vmem:[%s152 + $0xec] sm:$0xf] %v271
                %v273 = vld [vmem:[%s151 + $0x330] sm:$0xf]
                %274 = vst [vmem:[%s152 + $0xf0] sm:$0xf] %v273
                %v275 = vld [vmem:[%s151 + $0x334] sm:$0xf]
                %276 = vst [vmem:[%s152 + $0xf4] sm:$0xf] %v275
                %v277 = vld [vmem:[%s151 + $0x338] sm:$0xf]
                %278 = vst [vmem:[%s152 + $0xf8] sm:$0xf] %v277
                %v279 = vld [vmem:[%s151 + $0x33c] sm:$0xf]
                %280 = vst [vmem:[%s152 + $0xfc] sm:$0xf] %v279
              $region45: #{cnn_forward.3} parent=39 // loop_footer
                %s150 = sadd.s32 1, %s146
              $region46: #{cnn_forward.3} parent=39 // loop_footer_branch
                %145 = sbr.rel target = $region42
              $region47: #{cnn_forward.3} parent=39 // loop_exit
                _
            $region40: #{cnn_forward.3} parent=31 // pred_fallthru
              _
          $region32: #{cnn_forward.3} parent=27 // pred_fallthru
            _
          %428 = vnop
        $region28: #{cnn_forward.3} parent=23 // pred_fallthru
          _
      $region24: #{cnn_forward.3} parent=5 // pred_fallthru
        _
      %p429 = scmp.le.s32.totalorder 1, %s9
      %p430 = scmp.lt.s32.totalorder %s9, 5
      %p431 = pnand %p429, %p430
      %p432 = pneg %p431
      // Predicated region
      $region66: #{cnn_forward.3} parent=5 // pred_check
        _
      $region67: #{cnn_forward.3} parent=5 // pred_check_branch
        %434 = sbr.rel (%p431) target = $region69
      $region68: #{cnn_forward.3} parent=5 // pred_region
        %s435 = ssub.s32 %s9, 1
        %s436 = sand.u32 %s22, 1
        %s437 = sand.u32 %s22, 1
        %s438 = smul.addr %s437, 256
        %s439 = scalar_lea.vmem [#allocation2], %s438
        // Predicated region
        $region70: #{cnn_forward.3} parent=68 // pred_check
          %p440 = pneg %p35
        $region71: #{cnn_forward.3} parent=68 // pred_check_branch
          %442 = sbr.rel (%p440) target = $region73
        $region72: #{cnn_forward.3} parent=68 // pred_region
          _
        $region73: #{cnn_forward.3} parent=68 // pred_fallthru
          _
        %s443 = sand.u32 %s22, 1
        %s444 = sand.u32 %s22, 1
        %s445 = smul.addr %s444, 256
        %s446 = scalar_lea.vmem [#allocation2], %s445
        %p447 = pneg %p35
        %p448 = pneg %p32
        %p449 = pneg %p56
        %p450 = pneg %p53
        %p451 = pneg %p77
        %p452 = pneg %p74
        %p453 = pneg %p103
        %p454 = pneg %p100
        %s455 = smul.u32 16, %s14
        %p456 = scmp.lt.s32.totalorder %s455, 63
        %s457 = scalar_select %p456, %s455, 63
        %s458 = smul.addr %s457, 8
        %s459 = scalar_lea.vmem %s3, %s458
        %s460 = smul.u32 16, %s14
        %s461 = smul.u32 16, %s14
        %p462 = scmp.lt.s32.totalorder %s461, 63
        %s463 = scalar_select %p462, %s461, 63
        %s464 = smul.addr %s463, 8
        %s465 = scalar_lea.vmem %s3, %s464
        %s466 = smul.u32 16, %s14
        %v468 = vld [vmem:[%s439] sm:$0xf]
        %v469 = vld [vmem:[%s439 + $0x4] sm:$0xf]
        %v470 = vld [vmem:[%s439 + $0x8] sm:$0xf]
        %v471 = vld [vmem:[%s439 + $0xc] sm:$0xf]
        %v472 = vld [vmem:[%s439 + $0x10] sm:$0xf]
        %v473 = vld [vmem:[%s439 + $0x14] sm:$0xf]
        %v474 = vld [vmem:[%s439 + $0x18] sm:$0xf]
        %v475 = vld [vmem:[%s439 + $0x1c] sm:$0xf]
        %v476 = vld [vmem:[%s439 + $0x20] sm:$0xf]
        %v477 = vld [vmem:[%s439 + $0x24] sm:$0xf]
        %v478 = vld [vmem:[%s439 + $0x28] sm:$0xf]
        %v479 = vld [vmem:[%s439 + $0x2c] sm:$0xf]
        %v480 = vld [vmem:[%s439 + $0x30] sm:$0xf]
        %v481 = vld [vmem:[%s439 + $0x34] sm:$0xf]
        %v482 = vld [vmem:[%s439 + $0x38] sm:$0xf]
        %v483 = vld [vmem:[%s439 + $0x3c] sm:$0xf]
        %v484 = vld [vmem:[%s439 + $0x40] sm:$0xf]
        %v485 = vld [vmem:[%s439 + $0x44] sm:$0xf]
        %v486 = vld [vmem:[%s439 + $0x48] sm:$0xf]
        %v487 = vld [vmem:[%s439 + $0x4c] sm:$0xf]
        %v488 = vld [vmem:[%s439 + $0x50] sm:$0xf]
        %v489 = vld [vmem:[%s439 + $0x54] sm:$0xf]
        %v490 = vld [vmem:[%s439 + $0x58] sm:$0xf]
        %v491 = vld [vmem:[%s439 + $0x5c] sm:$0xf]
        %v492 = vld [vmem:[%s439 + $0x60] sm:$0xf]
        %v493 = vld [vmem:[%s439 + $0x64] sm:$0xf]
        %v494 = vld [vmem:[%s439 + $0x68] sm:$0xf]
        %v495 = vld [vmem:[%s439 + $0x6c] sm:$0xf]
        %v496 = vld [vmem:[%s439 + $0x70] sm:$0xf]
        %v497 = vld [vmem:[%s439 + $0x74] sm:$0xf]
        %v498 = vld [vmem:[%s439 + $0x78] sm:$0xf]
        %v499 = vld [vmem:[%s439 + $0x7c] sm:$0xf]
        %v500 = vld [vmem:[%s439 + $0x80] sm:$0xf]
        %v501 = vld [vmem:[%s439 + $0x84] sm:$0xf]
        %v502 = vld [vmem:[%s439 + $0x88] sm:$0xf]
        %v503 = vld [vmem:[%s439 + $0x8c] sm:$0xf]
        %v504 = vld [vmem:[%s439 + $0x90] sm:$0xf]
        %v505 = vld [vmem:[%s439 + $0x94] sm:$0xf]
        %v506 = vld [vmem:[%s439 + $0x98] sm:$0xf]
        %v507 = vld [vmem:[%s439 + $0x9c] sm:$0xf]
        %v508 = vld [vmem:[%s439 + $0xa0] sm:$0xf]
        %v509 = vld [vmem:[%s439 + $0xa4] sm:$0xf]
        %v510 = vld [vmem:[%s439 + $0xa8] sm:$0xf]
        %v511 = vld [vmem:[%s439 + $0xac] sm:$0xf]
        %v512 = vld [vmem:[%s439 + $0xb0] sm:$0xf]
        %v513 = vld [vmem:[%s439 + $0xb4] sm:$0xf]
        %v514 = vld [vmem:[%s439 + $0xb8] sm:$0xf]
        %v515 = vld [vmem:[%s439 + $0xbc] sm:$0xf]
        %v516 = vld [vmem:[%s439 + $0xc0] sm:$0xf]
        %v517 = vld [vmem:[%s439 + $0xc4] sm:$0xf]
        %v518 = vld [vmem:[%s439 + $0xc8] sm:$0xf]
        %v519 = vld [vmem:[%s439 + $0xcc] sm:$0xf]
        %v520 = vld [vmem:[%s439 + $0xd0] sm:$0xf]
        %v521 = vld [vmem:[%s439 + $0xd4] sm:$0xf]
        %v522 = vld [vmem:[%s439 + $0xd8] sm:$0xf]
        %v523 = vld [vmem:[%s439 + $0xdc] sm:$0xf]
        %v524 = vld [vmem:[%s439 + $0xe0] sm:$0xf]
        %v525 = vld [vmem:[%s439 + $0xe4] sm:$0xf]
        %v526 = vld [vmem:[%s439 + $0xe8] sm:$0xf]
        %v527 = vld [vmem:[%s439 + $0xec] sm:$0xf]
        %v528 = vld [vmem:[%s439 + $0xf0] sm:$0xf]
        %v529 = vld [vmem:[%s439 + $0xf4] sm:$0xf]
        %v530 = vld [vmem:[%s439 + $0xf8] sm:$0xf]
        %v531 = vld [vmem:[%s439 + $0xfc] sm:$0xf]
        %v532 = vld [vmem:[%s1] sm:$0xf]
        %v533 = vld [vmem:[%s1 + $0x4] sm:$0xf]
        %v534 = vld [vmem:[%s1 + $0x8] sm:$0xf]
        %v535 = vld [vmem:[%s1 + $0xc] sm:$0xf]
        %v600 = vunpack.c.l.b16 %v468
        %v601 = vunpack.c.l.b16 %v469
        %v602 = vunpack.c.l.b16 %v470
        %v603 = vunpack.c.l.b16 %v471
        %v604 = vunpack.c.l.b16 %v472
        %v605 = vunpack.c.l.b16 %v473
        %v606 = vunpack.c.l.b16 %v474
        %v607 = vunpack.c.l.b16 %v475
        %v608 = vunpack.c.l.b16 %v476
        %v609 = vunpack.c.l.b16 %v477
        %v610 = vunpack.c.l.b16 %v478
        %v611 = vunpack.c.l.b16 %v479
        %v612 = vunpack.c.l.b16 %v480
        %v613 = vunpack.c.l.b16 %v481
        %v614 = vunpack.c.l.b16 %v482
        %v615 = vunpack.c.l.b16 %v483
        %v616 = vunpack.c.l.b16 %v484
        %v617 = vunpack.c.l.b16 %v485
        %v618 = vunpack.c.l.b16 %v486
        %v619 = vunpack.c.l.b16 %v487
        %v620 = vunpack.c.l.b16 %v488
        %v621 = vunpack.c.l.b16 %v489
        %v622 = vunpack.c.l.b16 %v490
        %v623 = vunpack.c.l.b16 %v491
        %v624 = vunpack.c.l.b16 %v492
        %v625 = vunpack.c.l.b16 %v493
        %v626 = vunpack.c.l.b16 %v494
        %v627 = vunpack.c.l.b16 %v495
        %v628 = vunpack.c.l.b16 %v496
        %v629 = vunpack.c.l.b16 %v497
        %v630 = vunpack.c.l.b16 %v498
        %v631 = vunpack.c.l.b16 %v499
        %v632 = vunpack.c.l.b16 %v500
        %v633 = vunpack.c.l.b16 %v501
        %v634 = vunpack.c.l.b16 %v502
        %v635 = vunpack.c.l.b16 %v503
        %v636 = vunpack.c.l.b16 %v504
        %v637 = vunpack.c.l.b16 %v505
        %v638 = vunpack.c.l.b16 %v506
        %v639 = vunpack.c.l.b16 %v507
        %v640 = vunpack.c.l.b16 %v508
        %v641 = vunpack.c.l.b16 %v509
        %v642 = vunpack.c.l.b16 %v510
        %v643 = vunpack.c.l.b16 %v511
        %v644 = vunpack.c.l.b16 %v512
        %v645 = vunpack.c.l.b16 %v513
        %v646 = vunpack.c.l.b16 %v514
        %v647 = vunpack.c.l.b16 %v515
        %v648 = vunpack.c.l.b16 %v516
        %v649 = vunpack.c.l.b16 %v517
        %v650 = vunpack.c.l.b16 %v518
        %v651 = vunpack.c.l.b16 %v519
        %v652 = vunpack.c.l.b16 %v520
        %v653 = vunpack.c.l.b16 %v521
        %v654 = vunpack.c.l.b16 %v522
        %v655 = vunpack.c.l.b16 %v523
        %v656 = vunpack.c.l.b16 %v524
        %v657 = vunpack.c.l.b16 %v525
        %v658 = vunpack.c.l.b16 %v526
        %v659 = vunpack.c.l.b16 %v527
        %v660 = vunpack.c.l.b16 %v528
        %v661 = vunpack.c.l.b16 %v529
        %v662 = vunpack.c.l.b16 %v530
        %v663 = vunpack.c.l.b16 %v531
        %v664 = vpack.c.b16 %v601, %v600
        %v665 = vpack.c.b16 %v603, %v602
        %v666 = vpack.c.b16 %v605, %v604
        %v667 = vpack.c.b16 %v607, %v606
        %v668 = vpack.c.b16 %v609, %v608
        %v669 = vpack.c.b16 %v611, %v610
        %v670 = vpack.c.b16 %v613, %v612
        %v671 = vpack.c.b16 %v615, %v614
        %v672 = vpack.c.b16 %v617, %v616
        %v673 = vpack.c.b16 %v619, %v618
        %v674 = vpack.c.b16 %v621, %v620
        %v675 = vpack.c.b16 %v623, %v622
        %v676 = vpack.c.b16 %v625, %v624
        %v677 = vpack.c.b16 %v627, %v626
        %v678 = vpack.c.b16 %v629, %v628
        %v679 = vpack.c.b16 %v631, %v630
        %v680 = vpack.c.b16 %v633, %v632
        %v681 = vpack.c.b16 %v635, %v634
        %v682 = vpack.c.b16 %v637, %v636
        %v683 = vpack.c.b16 %v639, %v638
        %v684 = vpack.c.b16 %v641, %v640
        %v685 = vpack.c.b16 %v643, %v642
        %v686 = vpack.c.b16 %v645, %v644
        %v687 = vpack.c.b16 %v647, %v646
        %v688 = vpack.c.b16 %v649, %v648
        %v689 = vpack.c.b16 %v651, %v650
        %v690 = vpack.c.b16 %v653, %v652
        %v691 = vpack.c.b16 %v655, %v654
        %v692 = vpack.c.b16 %v657, %v656
        %v693 = vpack.c.b16 %v659, %v658
        %v694 = vpack.c.b16 %v661, %v660
        %v695 = vpack.c.b16 %v663, %v662
        %v700 = vunpack.c.l.b16 %v532
        %v701 = vunpack.c.l.b16 %v533
        %v702 = vunpack.c.l.b16 %v534
        %v703 = vunpack.c.l.b16 %v535
        %v704 = vpack.c.b16 %v701, %v700
        %v705 = vpack.c.b16 %v703, %v702
        %vm708 = vcmask 261120
        %v710 = vsel %vm708, %v664, 0
        %v713 = vsel %vm708, %v665, 0
        %v716 = vsel %vm708, %v666, 0
        %v719 = vsel %vm708, %v667, 0
        %v722 = vsel %vm708, %v668, 0
        %v725 = vsel %vm708, %v669, 0
        %v728 = vsel %vm708, %v670, 0
        %v731 = vsel %vm708, %v671, 0
        %v734 = vsel %vm708, %v672, 0
        %v737 = vsel %vm708, %v673, 0
        %v740 = vsel %vm708, %v674, 0
        %v743 = vsel %vm708, %v675, 0
        %v746 = vsel %vm708, %v676, 0
        %v749 = vsel %vm708, %v677, 0
        %v752 = vsel %vm708, %v678, 0
        %v755 = vsel %vm708, %v679, 0
        %v758 = vsel %vm708, %v680, 0
        %v761 = vsel %vm708, %v681, 0
        %v764 = vsel %vm708, %v682, 0
        %v767 = vsel %vm708, %v683, 0
        %v770 = vsel %vm708, %v684, 0
        %v773 = vsel %vm708, %v685, 0
        %v776 = vsel %vm708, %v686, 0
        %v779 = vsel %vm708, %v687, 0
        %v782 = vsel %vm708, %v688, 0
        %v785 = vsel %vm708, %v689, 0
        %v788 = vsel %vm708, %v690, 0
        %v791 = vsel %vm708, %v691, 0
        %v794 = vsel %vm708, %v692, 0
        %v797 = vsel %vm708, %v693, 0
        %v800 = vsel %vm708, %v694, 0
        %v803 = vsel %vm708, %v695, 0
        %805 = vmatprep.subr.bf16.mxu0 0
        %806 = vmatpush1.bf16.msra.mxu0 %v704
        %807 = vmatprep.subr.bf16.mxu0 0
        %808 = vmatpush1.bf16.msra.mxu0 %v705
        %809 = vmatprep.subr.bf16.mxu0 0
        %810 = vmatpush1.bf16.msra.mxu0 0
        %811 = vmatprep.subr.bf16.mxu0 0
        %812 = vmatpush1.bf16.msra.mxu0 0
        %813 = vmatprep.subr.bf16.mxu0 0
        %814 = vmatpush1.bf16.msra.mxu0 0
        %815 = vmatprep.subr.bf16.mxu0 0
        %816 = vmatpush1.bf16.msra.mxu0 0
        %817 = vmatprep.subr.bf16.mxu0 0
        %818 = vmatpush1.bf16.msra.mxu0 0
        %819 = vmatprep.subr.bf16.mxu0 0
        %820 = vmatpush1.bf16.msra.mxu0 0
        %821 = vmatprep.subr.bf16.mxu0 0
        %822 = vmatpush1.bf16.msra.mxu0 0
        %823 = vmatprep.subr.bf16.mxu0 0
        %824 = vmatpush1.bf16.msra.mxu0 0
        %825 = vmatprep.subr.bf16.mxu0 0
        %826 = vmatpush1.bf16.msra.mxu0 0
        %827 = vmatprep.subr.bf16.mxu0 0
        %828 = vmatpush1.bf16.msra.mxu0 0
        %829 = vmatprep.subr.bf16.mxu0 0
        %830 = vmatpush1.bf16.msra.mxu0 0
        %831 = vmatprep.subr.bf16.mxu0 0
        %832 = vmatpush1.bf16.msra.mxu0 0
        %833 = vmatprep.subr.bf16.mxu0 0
        %834 = vmatpush1.bf16.msra.mxu0 0
        %835 = vmatprep.subr.bf16.mxu0 0
        %836 = vmatpush1.bf16.msra.mxu0 0
        %837 = vmatprep.mubr.bf16.mxu0 0
        %838 = vmatmul.mubr.bf16.gmra.mrb[0].mxu0 %v710
        %v839 = vpop.f32.mrb[0].mxu0
        %v840 = vadd.f32 0.0, %v839
        %v841 = vpop.f32.mrb[0].mxu0
        %v842 = vpop.f32.mrb[0].mxu0
        %v843 = vadd.f32 0.0, %v842
        %v844 = vpop.f32.mrb[0].mxu0
        %845 = vmatprep.mubr.bf16.mxu0 0
        %846 = vmatmul.mubr.bf16.gmra.mrb[0].mxu0 %v713
        %v847 = vpop.f32.mrb[0].mxu0
        %v848 = vadd.f32 0.0, %v847
        %v849 = vpop.f32.mrb[0].mxu0
        %v850 = vpop.f32.mrb[0].mxu0
        %v851 = vadd.f32 0.0, %v850
        %v852 = vpop.f32.mrb[0].mxu0
        %853 = vmatprep.mubr.bf16.mxu0 0
        %854 = vmatmul.mubr.bf16.gmra.mrb[0].mxu0 %v716
        %v855 = vpop.f32.mrb[0].mxu0
        %v856 = vadd.f32 0.0, %v855
        %v857 = vpop.f32.mrb[0].mxu0
        %v858 = vpop.f32.mrb[0].mxu0
        %v859 = vadd.f32 0.0, %v858
        %v860 = vpop.f32.mrb[0].mxu0
        %861 = vmatprep.mubr.bf16.mxu0 0
        %862 = vmatmul.mubr.bf16.gmra.mrb[0].mxu0 %v719
        %v863 = vpop.f32.mrb[0].mxu0
        %v864 = vadd.f32 0.0, %v863
        %v865 = vpop.f32.mrb[0].mxu0
        %v866 = vpop.f32.mrb[0].mxu0
        %v867 = vadd.f32 0.0, %v866
        %v868 = vpop.f32.mrb[0].mxu0
        %869 = vmatprep.mubr.bf16.mxu0 0
        %870 = vmatmul.mubr.bf16.gmra.mrb[0].mxu0 %v722
        %v871 = vpop.f32.mrb[0].mxu0
        %v872 = vadd.f32 0.0, %v871
        %v873 = vpop.f32.mrb[0].mxu0
        %v874 = vpop.f32.mrb[0].mxu0
        %v875 = vadd.f32 0.0, %v874
        %v876 = vpop.f32.mrb[0].mxu0
        %877 = vmatprep.mubr.bf16.mxu0 0
        %878 = vmatmul.mubr.bf16.gmra.mrb[0].mxu0 %v725
        %v879 = vpop.f32.mrb[0].mxu0
        %v880 = vadd.f32 0.0, %v879
        %v881 = vpop.f32.mrb[0].mxu0
        %v882 = vpop.f32.mrb[0].mxu0
        %v883 = vadd.f32 0.0, %v882
        %v884 = vpop.f32.mrb[0].mxu0
        %885 = vmatprep.mubr.bf16.mxu0 0
        %886 = vmatmul.mubr.bf16.gmra.mrb[0].mxu0 %v728
        %v887 = vpop.f32.mrb[0].mxu0
        %v888 = vadd.f32 0.0, %v887
        %v889 = vpop.f32.mrb[0].mxu0
        %v890 = vpop.f32.mrb[0].mxu0
        %v891 = vadd.f32 0.0, %v890
        %v892 = vpop.f32.mrb[0].mxu0
        %893 = vmatprep.mubr.bf16.mxu0 0
        %894 = vmatmul.mubr.bf16.gmra.mrb[0].mxu0 %v731
        %v895 = vpop.f32.mrb[0].mxu0
        %v896 = vadd.f32 0.0, %v895
        %v897 = vpop.f32.mrb[0].mxu0
        %v898 = vpop.f32.mrb[0].mxu0
        %v899 = vadd.f32 0.0, %v898
        %v900 = vpop.f32.mrb[0].mxu0
        %901 = vmatprep.mubr.bf16.mxu0 0
        %902 = vmatmul.mubr.bf16.gmra.mrb[0].mxu0 %v734
        %v903 = vpop.f32.mrb[0].mxu0
        %v904 = vadd.f32 0.0, %v903
        %v905 = vpop.f32.mrb[0].mxu0
        %v906 = vpop.f32.mrb[0].mxu0
        %v907 = vadd.f32 0.0, %v906
        %v908 = vpop.f32.mrb[0].mxu0
        %909 = vmatprep.mubr.bf16.mxu0 0
        %910 = vmatmul.mubr.bf16.gmra.mrb[0].mxu0 %v737
        %v911 = vpop.f32.mrb[0].mxu0
        %v912 = vadd.f32 0.0, %v911
        %v913 = vpop.f32.mrb[0].mxu0
        %v914 = vpop.f32.mrb[0].mxu0
        %v915 = vadd.f32 0.0, %v914
        %v916 = vpop.f32.mrb[0].mxu0
        %917 = vmatprep.mubr.bf16.mxu0 0
        %918 = vmatmul.mubr.bf16.gmra.mrb[0].mxu0 %v740
        %v919 = vpop.f32.mrb[0].mxu0
        %v920 = vadd.f32 0.0, %v919
        %v921 = vpop.f32.mrb[0].mxu0
        %v922 = vpop.f32.mrb[0].mxu0
        %v923 = vadd.f32 0.0, %v922
        %v924 = vpop.f32.mrb[0].mxu0
        %925 = vmatprep.mubr.bf16.mxu0 0
        %926 = vmatmul.mubr.bf16.gmra.mrb[0].mxu0 %v743
        %v927 = vpop.f32.mrb[0].mxu0
        %v928 = vadd.f32 0.0, %v927
        %v929 = vpop.f32.mrb[0].mxu0
        %v930 = vpop.f32.mrb[0].mxu0
        %v931 = vadd.f32 0.0, %v930
        %v932 = vpop.f32.mrb[0].mxu0
        %933 = vmatprep.mubr.bf16.mxu0 0
        %934 = vmatmul.mubr.bf16.gmra.mrb[0].mxu0 %v746
        %v935 = vpop.f32.mrb[0].mxu0
        %v936 = vadd.f32 0.0, %v935
        %v937 = vpop.f32.mrb[0].mxu0
        %v938 = vpop.f32.mrb[0].mxu0
        %v939 = vadd.f32 0.0, %v938
        %v940 = vpop.f32.mrb[0].mxu0
        %941 = vmatprep.mubr.bf16.mxu0 0
        %942 = vmatmul.mubr.bf16.gmra.mrb[0].mxu0 %v749
        %v943 = vpop.f32.mrb[0].mxu0
        %v944 = vadd.f32 0.0, %v943
        %v945 = vpop.f32.mrb[0].mxu0
        %v946 = vpop.f32.mrb[0].mxu0
        %v947 = vadd.f32 0.0, %v946
        %v948 = vpop.f32.mrb[0].mxu0
        %949 = vmatprep.mubr.bf16.mxu0 0
        %950 = vmatmul.mubr.bf16.gmra.mrb[0].mxu0 %v752
        %v951 = vpop.f32.mrb[0].mxu0
        %v952 = vadd.f32 0.0, %v951
        %v953 = vpop.f32.mrb[0].mxu0
        %v954 = vpop.f32.mrb[0].mxu0
        %v955 = vadd.f32 0.0, %v954
        %v956 = vpop.f32.mrb[0].mxu0
        %957 = vmatprep.mubr.bf16.mxu0 0
        %958 = vmatmul.mubr.bf16.gmra.mrb[0].mxu0 %v755
        %v959 = vpop.f32.mrb[0].mxu0
        %v960 = vadd.f32 0.0, %v959
        %v961 = vpop.f32.mrb[0].mxu0
        %v962 = vpop.f32.mrb[0].mxu0
        %v963 = vadd.f32 0.0, %v962
        %v964 = vpop.f32.mrb[0].mxu0
        %965 = vmatprep.mubr.bf16.mxu0 0
        %966 = vmatmul.mubr.bf16.gmra.mrb[0].mxu0 %v758
        %v967 = vpop.f32.mrb[0].mxu0
        %v968 = vadd.f32 0.0, %v967
        %v969 = vpop.f32.mrb[0].mxu0
        %v970 = vpop.f32.mrb[0].mxu0
        %v971 = vadd.f32 0.0, %v970
        %v972 = vpop.f32.mrb[0].mxu0
        %973 = vmatprep.mubr.bf16.mxu0 0
        %974 = vmatmul.mubr.bf16.gmra.mrb[0].mxu0 %v761
        %v975 = vpop.f32.mrb[0].mxu0
        %v976 = vadd.f32 0.0, %v975
        %v977 = vpop.f32.mrb[0].mxu0
        %v978 = vpop.f32.mrb[0].mxu0
        %v979 = vadd.f32 0.0, %v978
        %v980 = vpop.f32.mrb[0].mxu0
        %981 = vmatprep.mubr.bf16.mxu0 0
        %982 = vmatmul.mubr.bf16.gmra.mrb[0].mxu0 %v764
        %v983 = vpop.f32.mrb[0].mxu0
        %v984 = vadd.f32 0.0, %v983
        %v985 = vpop.f32.mrb[0].mxu0
        %v986 = vpop.f32.mrb[0].mxu0
        %v987 = vadd.f32 0.0, %v986
        %v988 = vpop.f32.mrb[0].mxu0
        %989 = vmatprep.mubr.bf16.mxu0 0
        %990 = vmatmul.mubr.bf16.gmra.mrb[0].mxu0 %v767
        %v991 = vpop.f32.mrb[0].mxu0
        %v992 = vadd.f32 0.0, %v991
        %v993 = vpop.f32.mrb[0].mxu0
        %v994 = vpop.f32.mrb[0].mxu0
        %v995 = vadd.f32 0.0, %v994
        %v996 = vpop.f32.mrb[0].mxu0
        %997 = vmatprep.mubr.bf16.mxu0 0
        %998 = vmatmul.mubr.bf16.gmra.mrb[0].mxu0 %v770
        %v999 = vpop.f32.mrb[0].mxu0
        %v1000 = vadd.f32 0.0, %v999
        %v1001 = vpop.f32.mrb[0].mxu0
        %v1002 = vpop.f32.mrb[0].mxu0
        %v1003 = vadd.f32 0.0, %v1002
        %v1004 = vpop.f32.mrb[0].mxu0
        %1005 = vmatprep.mubr.bf16.mxu0 0
        %1006 = vmatmul.mubr.bf16.gmra.mrb[0].mxu0 %v773
        %v1007 = vpop.f32.mrb[0].mxu0
        %v1008 = vadd.f32 0.0, %v1007
        %v1009 = vpop.f32.mrb[0].mxu0
        %v1010 = vpop.f32.mrb[0].mxu0
        %v1011 = vadd.f32 0.0, %v1010
        %v1012 = vpop.f32.mrb[0].mxu0
        %1013 = vmatprep.mubr.bf16.mxu0 0
        %1014 = vmatmul.mubr.bf16.gmra.mrb[0].mxu0 %v776
        %v1015 = vpop.f32.mrb[0].mxu0
        %v1016 = vadd.f32 0.0, %v1015
        %v1017 = vpop.f32.mrb[0].mxu0
        %v1018 = vpop.f32.mrb[0].mxu0
        %v1019 = vadd.f32 0.0, %v1018
        %v1020 = vpop.f32.mrb[0].mxu0
        %1021 = vmatprep.mubr.bf16.mxu0 0
        %1022 = vmatmul.mubr.bf16.gmra.mrb[0].mxu0 %v779
        %v1023 = vpop.f32.mrb[0].mxu0
        %v1024 = vadd.f32 0.0, %v1023
        %v1025 = vpop.f32.mrb[0].mxu0
        %v1026 = vpop.f32.mrb[0].mxu0
        %v1027 = vadd.f32 0.0, %v1026
        %v1028 = vpop.f32.mrb[0].mxu0
        %1029 = vmatprep.mubr.bf16.mxu0 0
        %1030 = vmatmul.mubr.bf16.gmra.mrb[0].mxu0 %v782
        %v1031 = vpop.f32.mrb[0].mxu0
        %v1032 = vadd.f32 0.0, %v1031
        %v1033 = vpop.f32.mrb[0].mxu0
        %v1034 = vpop.f32.mrb[0].mxu0
        %v1035 = vadd.f32 0.0, %v1034
        %v1036 = vpop.f32.mrb[0].mxu0
        %1037 = vmatprep.mubr.bf16.mxu0 0
        %1038 = vmatmul.mubr.bf16.gmra.mrb[0].mxu0 %v785
        %v1039 = vpop.f32.mrb[0].mxu0
        %v1040 = vadd.f32 0.0, %v1039
        %v1041 = vpop.f32.mrb[0].mxu0
        %v1042 = vpop.f32.mrb[0].mxu0
        %v1043 = vadd.f32 0.0, %v1042
        %v1044 = vpop.f32.mrb[0].mxu0
        %1045 = vmatprep.mubr.bf16.mxu0 0
        %1046 = vmatmul.mubr.bf16.gmra.mrb[0].mxu0 %v788
        %v1047 = vpop.f32.mrb[0].mxu0
        %v1048 = vadd.f32 0.0, %v1047
        %v1049 = vpop.f32.mrb[0].mxu0
        %v1050 = vpop.f32.mrb[0].mxu0
        %v1051 = vadd.f32 0.0, %v1050
        %v1052 = vpop.f32.mrb[0].mxu0
        %1053 = vmatprep.mubr.bf16.mxu0 0
        %1054 = vmatmul.mubr.bf16.gmra.mrb[0].mxu0 %v791
        %v1055 = vpop.f32.mrb[0].mxu0
        %v1056 = vadd.f32 0.0, %v1055
        %v1057 = vpop.f32.mrb[0].mxu0
        %v1058 = vpop.f32.mrb[0].mxu0
        %v1059 = vadd.f32 0.0, %v1058
        %v1060 = vpop.f32.mrb[0].mxu0
        %1061 = vmatprep.mubr.bf16.mxu0 0
        %1062 = vmatmul.mubr.bf16.gmra.mrb[0].mxu0 %v794
        %v1063 = vpop.f32.mrb[0].mxu0
        %v1064 = vadd.f32 0.0, %v1063
        %v1065 = vpop.f32.mrb[0].mxu0
        %v1066 = vpop.f32.mrb[0].mxu0
        %v1067 = vadd.f32 0.0, %v1066
        %v1068 = vpop.f32.mrb[0].mxu0
        %1069 = vmatprep.mubr.bf16.mxu0 0
        %1070 = vmatmul.mubr.bf16.gmra.mrb[0].mxu0 %v797
        %v1071 = vpop.f32.mrb[0].mxu0
        %v1072 = vadd.f32 0.0, %v1071
        %v1073 = vpop.f32.mrb[0].mxu0
        %v1074 = vpop.f32.mrb[0].mxu0
        %v1075 = vadd.f32 0.0, %v1074
        %v1076 = vpop.f32.mrb[0].mxu0
        %1077 = vmatprep.mubr.bf16.mxu0 0
        %1078 = vmatmul.mubr.bf16.gmra.mrb[0].mxu0 %v800
        %v1079 = vpop.f32.mrb[0].mxu0
        %v1080 = vadd.f32 0.0, %v1079
        %v1081 = vpop.f32.mrb[0].mxu0
        %v1082 = vpop.f32.mrb[0].mxu0
        %v1083 = vadd.f32 0.0, %v1082
        %v1084 = vpop.f32.mrb[0].mxu0
        %1085 = vmatprep.mubr.bf16.mxu0 0
        %1086 = vmatmul.mubr.bf16.gmra.mrb[0].mxu0 %v803
        %v1087 = vpop.f32.mrb[0].mxu0
        %v1088 = vadd.f32 0.0, %v1087
        %v1089 = vpop.f32.mrb[0].mxu0
        %v1090 = vpop.f32.mrb[0].mxu0
        %v1091 = vadd.f32 0.0, %v1090
        %v1092 = vpop.f32.mrb[0].mxu0
        %1093 = vdwg.mxu0
        %v1094 = vmax.f32 %v840, %v904
        %v1095 = vmax.f32 %v843, %v907
        %v1096 = vmax.f32 %v848, %v912
        %v1097 = vmax.f32 %v851, %v915
        %v1098 = vmax.f32 %v856, %v920
        %v1099 = vmax.f32 %v859, %v923
        %v1100 = vmax.f32 %v864, %v928
        %v1101 = vmax.f32 %v867, %v931
        %v1102 = vmax.f32 %v872, %v936
        %v1103 = vmax.f32 %v875, %v939
        %v1104 = vmax.f32 %v880, %v944
        %v1105 = vmax.f32 %v883, %v947
        %v1106 = vmax.f32 %v888, %v952
        %v1107 = vmax.f32 %v891, %v955
        %v1108 = vmax.f32 %v896, %v960
        %v1109 = vmax.f32 %v899, %v963
        %v1110 = vmax.f32 %v968, %v1032
        %v1111 = vmax.f32 %v971, %v1035
        %v1112 = vmax.f32 %v976, %v1040
        %v1113 = vmax.f32 %v979, %v1043
        %v1114 = vmax.f32 %v984, %v1048
        %v1115 = vmax.f32 %v987, %v1051
        %v1116 = vmax.f32 %v992, %v1056
        %v1117 = vmax.f32 %v995, %v1059
        %v1118 = vmax.f32 %v1000, %v1064
        %v1119 = vmax.f32 %v1003, %v1067
        %v1120 = vmax.f32 %v1008, %v1072
        %v1121 = vmax.f32 %v1011, %v1075
        %v1122 = vmax.f32 %v1016, %v1080
        %v1123 = vmax.f32 %v1019, %v1083
        %v1124 = vmax.f32 %v1024, %v1088
        %v1125 = vmax.f32 %v1027, %v1091
        %v1126 = vmax.f32 %v1094, %v1110
        %v1127 = vmax.f32 %v1095, %v1111
        %v1128 = vmax.f32 %v1096, %v1112
        %v1129 = vmax.f32 %v1097, %v1113
        %v1130 = vmax.f32 %v1098, %v1114
        %v1131 = vmax.f32 %v1099, %v1115
        %v1132 = vmax.f32 %v1100, %v1116
        %v1133 = vmax.f32 %v1101, %v1117
        %v1134 = vmax.f32 %v1102, %v1118
        %v1135 = vmax.f32 %v1103, %v1119
        %v1136 = vmax.f32 %v1104, %v1120
        %v1137 = vmax.f32 %v1105, %v1121
        %v1138 = vmax.f32 %v1106, %v1122
        %v1139 = vmax.f32 %v1107, %v1123
        %v1140 = vmax.f32 %v1108, %v1124
        %v1141 = vmax.f32 %v1109, %v1125
        %v1142 = vld [vmem:[%s2] sm:$0x1]
        %v1144 = vlaneseq
        %v1145 = vshrl.u32 %v1144, 7
        %v1146 = vsub.s32 0, %v1145
        %v1147 = vrot.slane %v1142, %v1146
        %v1149 = vadd.f32 %v1126, %v1147
        %v1150 = vadd.f32 %v1127, %v1147
        %v1151 = vadd.f32 %v1128, %v1147
        %v1152 = vadd.f32 %v1129, %v1147
        %v1153 = vadd.f32 %v1130, %v1147
        %v1154 = vadd.f32 %v1131, %v1147
        %v1155 = vadd.f32 %v1132, %v1147
        %v1156 = vadd.f32 %v1133, %v1147
        %v1157 = vadd.f32 %v1134, %v1147
        %v1158 = vadd.f32 %v1135, %v1147
        %v1159 = vadd.f32 %v1136, %v1147
        %v1160 = vadd.f32 %v1137, %v1147
        %v1161 = vadd.f32 %v1138, %v1147
        %v1162 = vadd.f32 %v1139, %v1147
        %v1163 = vadd.f32 %v1140, %v1147
        %v1164 = vadd.f32 %v1141, %v1147
        %v1165 = vmax.f32 %v1149, 0.0
        %v1166 = vmax.f32 %v1150, 0.0
        %v1167 = vmax.f32 %v1151, 0.0
        %v1168 = vmax.f32 %v1152, 0.0
        %v1169 = vmax.f32 %v1153, 0.0
        %v1170 = vmax.f32 %v1154, 0.0
        %v1171 = vmax.f32 %v1155, 0.0
        %v1172 = vmax.f32 %v1156, 0.0
        %v1173 = vmax.f32 %v1157, 0.0
        %v1174 = vmax.f32 %v1158, 0.0
        %v1175 = vmax.f32 %v1159, 0.0
        %v1176 = vmax.f32 %v1160, 0.0
        %v1177 = vmax.f32 %v1161, 0.0
        %v1178 = vmax.f32 %v1162, 0.0
        %v1179 = vmax.f32 %v1163, 0.0
        %v1180 = vmax.f32 %v1164, 0.0
        %1181 = vst [vmem:[%s465] sm:$0xff] %v1165
        %1182 = vst [vmem:[%s465 + $0x8] sm:$0xff] %v1166
        %1183 = vst [vmem:[%s465 + $0x10] sm:$0xff] %v1167
        %1184 = vst [vmem:[%s465 + $0x18] sm:$0xff] %v1168
        %1185 = vst [vmem:[%s465 + $0x20] sm:$0xff] %v1169
        %1186 = vst [vmem:[%s465 + $0x28] sm:$0xff] %v1170
        %1187 = vst [vmem:[%s465 + $0x30] sm:$0xff] %v1171
        %1188 = vst [vmem:[%s465 + $0x38] sm:$0xff] %v1172
        %1189 = vst [vmem:[%s465 + $0x40] sm:$0xff] %v1173
        %1190 = vst [vmem:[%s465 + $0x48] sm:$0xff] %v1174
        %1191 = vst [vmem:[%s465 + $0x50] sm:$0xff] %v1175
        %1192 = vst [vmem:[%s465 + $0x58] sm:$0xff] %v1176
        %1193 = vst [vmem:[%s465 + $0x60] sm:$0xff] %v1177
        %1194 = vst [vmem:[%s465 + $0x68] sm:$0xff] %v1178
        %1195 = vst [vmem:[%s465 + $0x70] sm:$0xff] %v1179
        %1196 = vst [vmem:[%s465 + $0x78] sm:$0xff] %v1180
        %s1197 = smul.u32 16, %s14
        %p1198 = scmp.lt.s32.totalorder %s1197, 63
        %s1199 = scalar_select %p1198, %s1197, 63
        %s1200 = smul.addr %s1199, 8
        %s1201 = scalar_lea.vmem %s3, %s1200
        // Predicated region
        $region74: #{cnn_forward.3} parent=68 // pred_check
          %p1202 = pneg %p100
        $region75: #{cnn_forward.3} parent=68 // pred_check_branch
          %1204 = sbr.rel (%p1202) target = $region77
        $region76: #{cnn_forward.3} parent=68 // pred_region
          %s1205 = smul.u32 16, %s14
        $region77: #{cnn_forward.3} parent=68 // pred_fallthru
          _
      $region69: #{cnn_forward.3} parent=5 // pred_fallthru
        _
      %p1206 = scmp.le.s32.totalorder 2, %s9
      // Predicated region
      $region78: #{cnn_forward.3} parent=5 // pred_check
        %p1207 = pneg %p1206
      $region79: #{cnn_forward.3} parent=5 // pred_check_branch
        %1209 = sbr.rel (%p1207) target = $region81
      $region80: #{cnn_forward.3} parent=5 // pred_region
        %s1210 = ssub.s32 %s9, 2
        // Predicated region
        $region82: #{cnn_forward.3} parent=80 // pred_check
          %p1211 = pneg %p106
        $region83: #{cnn_forward.3} parent=80 // pred_check_branch
          %1213 = sbr.rel (%p1211) target = $region85
        $region84: #{cnn_forward.3} parent=80 // pred_region
          %s1214 = smul.u32 16, %s15
          %p1215 = scmp.lt.s32.totalorder %s1214, 63
          %s1216 = scalar_select %p1215, %s1214, 63
          %s1217 = smul.addr %s1216, 8
          %s1218 = scalar_lea.vmem %s3, %s1217
        $region85: #{cnn_forward.3} parent=80 // pred_fallthru
          _
      $region81: #{cnn_forward.3} parent=5 // pred_fallthru
        _
    $region6: #{cnn_forward.3} parent=1 // loop_footer
      %s13 = sadd.s32 1, %s9
    $region7: #{cnn_forward.3} parent=1 // loop_footer_branch
      %8 = sbr.rel target = $region3
    $region8: #{cnn_forward.3} parent=1 // loop_exit
      _

// kernel: cnn_forward.4
$region0: #{cnn_forward.4}
  #allocation0 [shape = 'u32[]', space=smem, size = 0x4, offset = 0x4, fixed_abs, tag = 'smem constant byte address 0x4 - core index']
  #allocation1 [shape = 'u32[144,128]{1,0:T(1,128)}', space=vmem, size = 0x12000, scoped, tag = 'internal scratch']
  %s0 = inlined_call_operand.vmem [shape: bf16[4,128,416], index: 0, kind: input, shape index: {}]
  %s1 = inlined_call_operand.vmem [shape: bf16[416,128], index: 1, kind: input, shape index: {}]
  %s2 = inlined_call_operand.vmem [shape: f32[1,128], index: 2, kind: input, shape index: {}]
  %s3 = inlined_call_operand.vmem [shape: f32[128,128], index: 3, kind: output, shape index: {}]
  %s4 = sld [smem:[#allocation0]]
  $region22: #{cnn_forward.4} parent=0
    _
  %s6 = ssub.s32 1, %s4
  %s7 = scalar_select 0, %s6, %s4
  // Predicated region
  $region2: #{cnn_forward.4} parent=0 // pred_check
    _
  $region3: #{cnn_forward.4} parent=0 // pred_check_branch
    %9 = sbr.rel (0) target = $region5
  $region4: #{cnn_forward.4} parent=0 // pred_region
    _
  $region5: #{cnn_forward.4} parent=0 // pred_fallthru
    _
  // Predicated region
  $region6: #{cnn_forward.4} parent=0 // pred_check
    _
  $region7: #{cnn_forward.4} parent=0 // pred_check_branch
    %11 = sbr.rel (0) target = $region9
  $region8: #{cnn_forward.4} parent=0 // pred_region
    _
  $region9: #{cnn_forward.4} parent=0 // pred_fallthru
    _
  // Predicated region
  $region10: #{cnn_forward.4} parent=0 // pred_check
    _
  $region11: #{cnn_forward.4} parent=0 // pred_check_branch
    %13 = sbr.rel (0) target = $region13
  $region12: #{cnn_forward.4} parent=0 // pred_region
    _
  $region13: #{cnn_forward.4} parent=0 // pred_fallthru
    _
  %v15 = vld [vmem:[%s0] sm:$0xff]
  %v16 = vld [vmem:[%s0 + $0x8] sm:$0xff]
  %v17 = vld [vmem:[%s0 + $0x10] sm:$0xff]
  %v18 = vld [vmem:[%s0 + $0x18] sm:$0xff]
  %v19 = vld [vmem:[%s0 + $0x20] sm:$0xff]
  %v20 = vld [vmem:[%s0 + $0x28] sm:$0xff]
  %v21 = vld [vmem:[%s0 + $0x30] sm:$0xff]
  %v22 = vld [vmem:[%s0 + $0x38] sm:$0xff]
  %v23 = vld [vmem:[%s0 + $0x40] sm:$0xff]
  %v24 = vld [vmem:[%s0 + $0x48] sm:$0xff]
  %v25 = vld [vmem:[%s0 + $0x50] sm:$0xff]
  %v26 = vld [vmem:[%s0 + $0x58] sm:$0xff]
  %v27 = vld [vmem:[%s0 + $0x60] sm:$0xff]
  %v28 = vld [vmem:[%s0 + $0x68] sm:$0xff]
  %v29 = vld [vmem:[%s0 + $0x70] sm:$0xff]
  %v30 = vld [vmem:[%s0 + $0x78] sm:$0xff]
  %v31 = vld [vmem:[%s0 + $0x80] sm:$0xff]
  %v32 = vld [vmem:[%s0 + $0x88] sm:$0xff]
  %v33 = vld [vmem:[%s0 + $0x90] sm:$0xff]
  %v34 = vld [vmem:[%s0 + $0x98] sm:$0xff]
  %v35 = vld [vmem:[%s0 + $0xa0] sm:$0xff]
  %v36 = vld [vmem:[%s0 + $0xa8] sm:$0xff]
  %v37 = vld [vmem:[%s0 + $0xb0] sm:$0xff]
  %v38 = vld [vmem:[%s0 + $0xb8] sm:$0xff]
  %v39 = vld [vmem:[%s0 + $0xc0] sm:$0xff]
  %v40 = vld [vmem:[%s0 + $0xc8] sm:$0xff]
  %v41 = vld [vmem:[%s0 + $0xd0] sm:$0xff]
  %v42 = vld [vmem:[%s0 + $0xd8] sm:$0xff]
  %v43 = vld [vmem:[%s0 + $0xe0] sm:$0xff]
  %v44 = vld [vmem:[%s0 + $0xe8] sm:$0xff]
  %v45 = vld [vmem:[%s0 + $0xf0] sm:$0xff]
  %v46 = vld [vmem:[%s0 + $0xf8] sm:$0xff]
  %v47 = vld [vmem:[%s0 + $0x100] sm:$0xff]
  %v48 = vld [vmem:[%s0 + $0x108] sm:$0xff]
  %v49 = vld [vmem:[%s0 + $0x110] sm:$0xff]
  %v50 = vld [vmem:[%s0 + $0x118] sm:$0xff]
  %v51 = vld [vmem:[%s0 + $0x120] sm:$0xff]
  %v52 = vld [vmem:[%s0 + $0x128] sm:$0xff]
  %v53 = vld [vmem:[%s0 + $0x130] sm:$0xff]
  %v54 = vld [vmem:[%s0 + $0x138] sm:$0xff]
  %v55 = vld [vmem:[%s0 + $0x140] sm:$0xff]
  %v56 = vld [vmem:[%s0 + $0x148] sm:$0xff]
  %v57 = vld [vmem:[%s0 + $0x150] sm:$0xff]
  %v58 = vld [vmem:[%s0 + $0x158] sm:$0xff]
  %v59 = vld [vmem:[%s0 + $0x160] sm:$0xff]
  %v60 = vld [vmem:[%s0 + $0x168] sm:$0xff]
  %v61 = vld [vmem:[%s0 + $0x170] sm:$0xff]
  %v62 = vld [vmem:[%s0 + $0x178] sm:$0xff]
  %v63 = vld [vmem:[%s0 + $0x180] sm:$0xff]
  %v64 = vld [vmem:[%s0 + $0x188] sm:$0xff]
  %v65 = vld [vmem:[%s0 + $0x190] sm:$0xff]
  %v66 = vld [vmem:[%s0 + $0x198] sm:$0xff]
  %v67 = vld [vmem:[%s0 + $0x1a0] sm:$0xff]
  %v68 = vld [vmem:[%s0 + $0x1a8] sm:$0xff]
  %v69 = vld [vmem:[%s0 + $0x1b0] sm:$0xff]
  %v70 = vld [vmem:[%s0 + $0x1b8] sm:$0xff]
  %v71 = vld [vmem:[%s0 + $0x1c0] sm:$0xff]
  %v72 = vld [vmem:[%s0 + $0x1c8] sm:$0xff]
  %v73 = vld [vmem:[%s0 + $0x1d0] sm:$0xff]
  %v74 = vld [vmem:[%s0 + $0x1d8] sm:$0xff]
  %v75 = vld [vmem:[%s0 + $0x1e0] sm:$0xff]
  %v76 = vld [vmem:[%s0 + $0x1e8] sm:$0xff]
  %v77 = vld [vmem:[%s0 + $0x1f0] sm:$0xff]
  %v78 = vld [vmem:[%s0 + $0x1f8] sm:$0xff]
  %v79 = vld [vmem:[%s0 + $0x200] sm:$0xff]
  %v80 = vld [vmem:[%s0 + $0x208] sm:$0xff]
  %v81 = vld [vmem:[%s0 + $0x210] sm:$0xff]
  %v82 = vld [vmem:[%s0 + $0x218] sm:$0xff]
  %v83 = vld [vmem:[%s0 + $0x220] sm:$0xff]
  %v84 = vld [vmem:[%s0 + $0x228] sm:$0xff]
  %v85 = vld [vmem:[%s0 + $0x230] sm:$0xff]
  %v86 = vld [vmem:[%s0 + $0x238] sm:$0xff]
  %v87 = vld [vmem:[%s0 + $0x240] sm:$0xff]
  %v88 = vld [vmem:[%s0 + $0x248] sm:$0xff]
  %v89 = vld [vmem:[%s0 + $0x250] sm:$0xff]
  %v90 = vld [vmem:[%s0 + $0x258] sm:$0xff]
  %v91 = vld [vmem:[%s0 + $0x260] sm:$0xff]
  %v92 = vld [vmem:[%s0 + $0x268] sm:$0xff]
  %v93 = vld [vmem:[%s0 + $0x270] sm:$0xff]
  %v94 = vld [vmem:[%s0 + $0x278] sm:$0xff]
  %v95 = vld [vmem:[%s0 + $0x280] sm:$0xff]
  %v96 = vld [vmem:[%s0 + $0x288] sm:$0xff]
  %v97 = vld [vmem:[%s0 + $0x290] sm:$0xff]
  %v98 = vld [vmem:[%s0 + $0x298] sm:$0xff]
  %v99 = vld [vmem:[%s0 + $0x2a0] sm:$0xff]
  %v100 = vld [vmem:[%s0 + $0x2a8] sm:$0xff]
  %v101 = vld [vmem:[%s0 + $0x2b0] sm:$0xff]
  %v102 = vld [vmem:[%s0 + $0x2b8] sm:$0xff]
  %v103 = vld [vmem:[%s0 + $0x2c0] sm:$0xff]
  %v104 = vld [vmem:[%s0 + $0x2c8] sm:$0xff]
  %v105 = vld [vmem:[%s0 + $0x2d0] sm:$0xff]
  %v106 = vld [vmem:[%s0 + $0x2d8] sm:$0xff]
  %v107 = vld [vmem:[%s0 + $0x2e0] sm:$0xff]
  %v108 = vld [vmem:[%s0 + $0x2e8] sm:$0xff]
  %v109 = vld [vmem:[%s0 + $0x2f0] sm:$0xff]
  %v110 = vld [vmem:[%s0 + $0x2f8] sm:$0xff]
  %v111 = vld [vmem:[%s0 + $0x300] sm:$0xff]
  %v112 = vld [vmem:[%s0 + $0x308] sm:$0xff]
  %v113 = vld [vmem:[%s0 + $0x310] sm:$0xff]
  %v114 = vld [vmem:[%s0 + $0x318] sm:$0xff]
  %v115 = vld [vmem:[%s0 + $0x320] sm:$0xff]
  %v116 = vld [vmem:[%s0 + $0x328] sm:$0xff]
  %v117 = vld [vmem:[%s0 + $0x330] sm:$0xff]
  %v118 = vld [vmem:[%s0 + $0x338] sm:$0xff]
  %v119 = vld [vmem:[%s0 + $0x340] sm:$0xff]
  %v120 = vld [vmem:[%s0 + $0x348] sm:$0xff]
  %v121 = vld [vmem:[%s0 + $0x350] sm:$0xff]
  %v122 = vld [vmem:[%s0 + $0x358] sm:$0xff]
  %v123 = vld [vmem:[%s0 + $0x360] sm:$0xff]
  %v124 = vld [vmem:[%s0 + $0x368] sm:$0xff]
  %v125 = vld [vmem:[%s0 + $0x370] sm:$0xff]
  %v126 = vld [vmem:[%s0 + $0x378] sm:$0xff]
  %v127 = vld [vmem:[%s0 + $0x380] sm:$0xff]
  %v128 = vld [vmem:[%s0 + $0x388] sm:$0xff]
  %v129 = vld [vmem:[%s0 + $0x390] sm:$0xff]
  %v130 = vld [vmem:[%s0 + $0x398] sm:$0xff]
  %v131 = vld [vmem:[%s0 + $0x3a0] sm:$0xff]
  %v132 = vld [vmem:[%s0 + $0x3a8] sm:$0xff]
  %v133 = vld [vmem:[%s0 + $0x3b0] sm:$0xff]
  %v134 = vld [vmem:[%s0 + $0x3b8] sm:$0xff]
  %v135 = vld [vmem:[%s0 + $0x3c0] sm:$0xff]
  %v136 = vld [vmem:[%s0 + $0x3c8] sm:$0xff]
  %v137 = vld [vmem:[%s0 + $0x3d0] sm:$0xff]
  %v138 = vld [vmem:[%s0 + $0x3d8] sm:$0xff]
  %v139 = vld [vmem:[%s0 + $0x3e0] sm:$0xff]
  %v140 = vld [vmem:[%s0 + $0x3e8] sm:$0xff]
  %v141 = vld [vmem:[%s0 + $0x3f0] sm:$0xff]
  %v142 = vld [vmem:[%s0 + $0x3f8] sm:$0xff]
  %v143 = vld [vmem:[%s1] sm:$0xf]
  %v144 = vld [vmem:[%s1 + $0x4] sm:$0xf]
  %v145 = vld [vmem:[%s1 + $0x8] sm:$0xf]
  %v146 = vld [vmem:[%s1 + $0xc] sm:$0xf]
  %v147 = vld [vmem:[%s1 + $0x10] sm:$0xf]
  %v148 = vld [vmem:[%s1 + $0x14] sm:$0xf]
  %v149 = vld [vmem:[%s1 + $0x18] sm:$0xf]
  %v150 = vld [vmem:[%s1 + $0x1c] sm:$0xf]
  %v151 = vld [vmem:[%s1 + $0x20] sm:$0xf]
  %v152 = vld [vmem:[%s1 + $0x24] sm:$0xf]
  %v153 = vld [vmem:[%s1 + $0x28] sm:$0xf]
  %v154 = vld [vmem:[%s1 + $0x2c] sm:$0xf]
  %v155 = vld [vmem:[%s1 + $0x30] sm:$0xf]
  %v156 = vld [vmem:[%s1 + $0x34] sm:$0xf]
  %v157 = vld [vmem:[%s1 + $0x38] sm:$0xf]
  %v158 = vld [vmem:[%s1 + $0x3c] sm:$0xf]
  %v159 = vld [vmem:[%s1 + $0x40] sm:$0xf]
  %v160 = vld [vmem:[%s1 + $0x44] sm:$0xf]
  %v161 = vld [vmem:[%s1 + $0x48] sm:$0xf]
  %v162 = vld [vmem:[%s1 + $0x4c] sm:$0xf]
  %v163 = vld [vmem:[%s1 + $0x50] sm:$0xf]
  %v164 = vld [vmem:[%s1 + $0x54] sm:$0xf]
  %v165 = vld [vmem:[%s1 + $0x58] sm:$0xf]
  %v166 = vld [vmem:[%s1 + $0x5c] sm:$0xf]
  %v167 = vld [vmem:[%s1 + $0x60] sm:$0xf]
  %v168 = vld [vmem:[%s1 + $0x64] sm:$0xf]
  %v169 = vld [vmem:[%s1 + $0x68] sm:$0xf]
  %v170 = vld [vmem:[%s1 + $0x6c] sm:$0xf]
  %v171 = vld [vmem:[%s1 + $0x70] sm:$0xf]
  %v172 = vld [vmem:[%s1 + $0x74] sm:$0xf]
  %v173 = vld [vmem:[%s1 + $0x78] sm:$0xf]
  %v174 = vld [vmem:[%s1 + $0x7c] sm:$0xf]
  %v175 = vld [vmem:[%s1 + $0x80] sm:$0xf]
  %v176 = vld [vmem:[%s1 + $0x84] sm:$0xf]
  %v177 = vld [vmem:[%s1 + $0x88] sm:$0xf]
  %v178 = vld [vmem:[%s1 + $0x8c] sm:$0xf]
  %v179 = vld [vmem:[%s1 + $0x90] sm:$0xf]
  %v180 = vld [vmem:[%s1 + $0x94] sm:$0xf]
  %v181 = vld [vmem:[%s1 + $0x98] sm:$0xf]
  %v182 = vld [vmem:[%s1 + $0x9c] sm:$0xf]
  %v183 = vld [vmem:[%s1 + $0xa0] sm:$0xf]
  %v184 = vld [vmem:[%s1 + $0xa4] sm:$0xf]
  %v185 = vld [vmem:[%s1 + $0xa8] sm:$0xf]
  %v186 = vld [vmem:[%s1 + $0xac] sm:$0xf]
  %v187 = vld [vmem:[%s1 + $0xb0] sm:$0xf]
  %v188 = vld [vmem:[%s1 + $0xb4] sm:$0xf]
  %v189 = vld [vmem:[%s1 + $0xb8] sm:$0xf]
  %v190 = vld [vmem:[%s1 + $0xbc] sm:$0xf]
  %v191 = vld [vmem:[%s1 + $0xc0] sm:$0xf]
  %v192 = vld [vmem:[%s1 + $0xc4] sm:$0xf]
  %v193 = vld [vmem:[%s1 + $0xc8] sm:$0xf]
  %v194 = vld [vmem:[%s1 + $0xcc] sm:$0xf]
  %v323 = vunpack.c.l.b16 %v15
  %v324 = vunpack.c.h.b16 %v15
  %v325 = vunpack.c.l.b16 %v16
  %v326 = vunpack.c.h.b16 %v16
  %v327 = vunpack.c.l.b16 %v17
  %v328 = vunpack.c.h.b16 %v17
  %v329 = vunpack.c.l.b16 %v18
  %v330 = vunpack.c.h.b16 %v18
  %v331 = vunpack.c.l.b16 %v19
  %v332 = vunpack.c.h.b16 %v19
  %v333 = vunpack.c.l.b16 %v20
  %v334 = vunpack.c.h.b16 %v20
  %v335 = vunpack.c.l.b16 %v21
  %v336 = vunpack.c.h.b16 %v21
  %v337 = vunpack.c.l.b16 %v22
  %v338 = vunpack.c.h.b16 %v22
  %v339 = vunpack.c.l.b16 %v23
  %v340 = vunpack.c.h.b16 %v23
  %v341 = vunpack.c.l.b16 %v24
  %v342 = vunpack.c.h.b16 %v24
  %v343 = vunpack.c.l.b16 %v25
  %v344 = vunpack.c.h.b16 %v25
  %v345 = vunpack.c.l.b16 %v26
  %v346 = vunpack.c.h.b16 %v26
  %v347 = vunpack.c.l.b16 %v27
  %v348 = vunpack.c.h.b16 %v27
  %v349 = vunpack.c.l.b16 %v28
  %v350 = vunpack.c.h.b16 %v28
  %v351 = vunpack.c.l.b16 %v29
  %v352 = vunpack.c.h.b16 %v29
  %v353 = vunpack.c.l.b16 %v30
  %v354 = vunpack.c.h.b16 %v30
  %v355 = vunpack.c.l.b16 %v31
  %v356 = vunpack.c.h.b16 %v31
  %v357 = vunpack.c.l.b16 %v32
  %v358 = vunpack.c.h.b16 %v32
  %v359 = vunpack.c.l.b16 %v33
  %v360 = vunpack.c.h.b16 %v33
  %v361 = vunpack.c.l.b16 %v34
  %v362 = vunpack.c.h.b16 %v34
  %v363 = vunpack.c.l.b16 %v35
  %v364 = vunpack.c.h.b16 %v35
  %v365 = vunpack.c.l.b16 %v36
  %v366 = vunpack.c.h.b16 %v36
  %v367 = vunpack.c.l.b16 %v37
  %v368 = vunpack.c.h.b16 %v37
  %v369 = vunpack.c.l.b16 %v38
  %v370 = vunpack.c.h.b16 %v38
  %v371 = vunpack.c.l.b16 %v39
  %v372 = vunpack.c.h.b16 %v39
  %v373 = vunpack.c.l.b16 %v40
  %v374 = vunpack.c.h.b16 %v40
  %v375 = vunpack.c.l.b16 %v41
  %v376 = vunpack.c.h.b16 %v41
  %v377 = vunpack.c.l.b16 %v42
  %v378 = vunpack.c.h.b16 %v42
  %v379 = vunpack.c.l.b16 %v43
  %v380 = vunpack.c.h.b16 %v43
  %v381 = vunpack.c.l.b16 %v44
  %v382 = vunpack.c.h.b16 %v44
  %v383 = vunpack.c.l.b16 %v45
  %v384 = vunpack.c.h.b16 %v45
  %v385 = vunpack.c.l.b16 %v46
  %v386 = vunpack.c.h.b16 %v46
  %v387 = vunpack.c.l.b16 %v47
  %v388 = vunpack.c.h.b16 %v47
  %v389 = vunpack.c.l.b16 %v48
  %v390 = vunpack.c.h.b16 %v48
  %v391 = vunpack.c.l.b16 %v49
  %v392 = vunpack.c.h.b16 %v49
  %v393 = vunpack.c.l.b16 %v50
  %v394 = vunpack.c.h.b16 %v50
  %v395 = vunpack.c.l.b16 %v51
  %v396 = vunpack.c.h.b16 %v51
  %v397 = vunpack.c.l.b16 %v52
  %v398 = vunpack.c.h.b16 %v52
  %v399 = vunpack.c.l.b16 %v53
  %v400 = vunpack.c.h.b16 %v53
  %v401 = vunpack.c.l.b16 %v54
  %v402 = vunpack.c.h.b16 %v54
  %v403 = vunpack.c.l.b16 %v55
  %v404 = vunpack.c.h.b16 %v55
  %v405 = vunpack.c.l.b16 %v56
  %v406 = vunpack.c.h.b16 %v56
  %v407 = vunpack.c.l.b16 %v57
  %v408 = vunpack.c.h.b16 %v57
  %v409 = vunpack.c.l.b16 %v58
  %v410 = vunpack.c.h.b16 %v58
  %v411 = vunpack.c.l.b16 %v59
  %v412 = vunpack.c.h.b16 %v59
  %v413 = vunpack.c.l.b16 %v60
  %v414 = vunpack.c.h.b16 %v60
  %v415 = vunpack.c.l.b16 %v61
  %v416 = vunpack.c.h.b16 %v61
  %v417 = vunpack.c.l.b16 %v62
  %v418 = vunpack.c.h.b16 %v62
  %v419 = vunpack.c.l.b16 %v63
  %v420 = vunpack.c.h.b16 %v63
  %v421 = vunpack.c.l.b16 %v64
  %v422 = vunpack.c.h.b16 %v64
  %v423 = vunpack.c.l.b16 %v65
  %v424 = vunpack.c.h.b16 %v65
  %v425 = vunpack.c.l.b16 %v66
  %v426 = vunpack.c.h.b16 %v66
  %v427 = vunpack.c.l.b16 %v67
  %v428 = vunpack.c.h.b16 %v67
  %v429 = vunpack.c.l.b16 %v68
  %v430 = vunpack.c.h.b16 %v68
  %v431 = vunpack.c.l.b16 %v69
  %v432 = vunpack.c.h.b16 %v69
  %v433 = vunpack.c.l.b16 %v70
  %v434 = vunpack.c.h.b16 %v70
  %v435 = vunpack.c.l.b16 %v71
  %v436 = vunpack.c.h.b16 %v71
  %v437 = vunpack.c.l.b16 %v72
  %v438 = vunpack.c.h.b16 %v72
  %v439 = vunpack.c.l.b16 %v73
  %v440 = vunpack.c.h.b16 %v73
  %v441 = vunpack.c.l.b16 %v74
  %v442 = vunpack.c.h.b16 %v74
  %v443 = vunpack.c.l.b16 %v75
  %v444 = vunpack.c.h.b16 %v75
  %v445 = vunpack.c.l.b16 %v76
  %v446 = vunpack.c.h.b16 %v76
  %v447 = vunpack.c.l.b16 %v77
  %v448 = vunpack.c.h.b16 %v77
  %v449 = vunpack.c.l.b16 %v78
  %v450 = vunpack.c.h.b16 %v78
  %v451 = vunpack.c.l.b16 %v79
  %v452 = vunpack.c.h.b16 %v79
  %v453 = vunpack.c.l.b16 %v80
  %v454 = vunpack.c.h.b16 %v80
  %v455 = vunpack.c.l.b16 %v81
  %v456 = vunpack.c.h.b16 %v81
  %v457 = vunpack.c.l.b16 %v82
  %v458 = vunpack.c.h.b16 %v82
  %v459 = vunpack.c.l.b16 %v83
  %v460 = vunpack.c.h.b16 %v83
  %v461 = vunpack.c.l.b16 %v84
  %v462 = vunpack.c.h.b16 %v84
  %v463 = vunpack.c.l.b16 %v85
  %v464 = vunpack.c.h.b16 %v85
  %v465 = vunpack.c.l.b16 %v86
  %v466 = vunpack.c.h.b16 %v86
  %v467 = vunpack.c.l.b16 %v87
  %v468 = vunpack.c.h.b16 %v87
  %v469 = vunpack.c.l.b16 %v88
  %v470 = vunpack.c.h.b16 %v88
  %v471 = vunpack.c.l.b16 %v89
  %v472 = vunpack.c.h.b16 %v89
  %v473 = vunpack.c.l.b16 %v90
  %v474 = vunpack.c.h.b16 %v90
  %v475 = vunpack.c.l.b16 %v91
  %v476 = vunpack.c.h.b16 %v91
  %v477 = vunpack.c.l.b16 %v92
  %v478 = vunpack.c.h.b16 %v92
  %v479 = vunpack.c.l.b16 %v93
  %v480 = vunpack.c.h.b16 %v93
  %v481 = vunpack.c.l.b16 %v94
  %v482 = vunpack.c.h.b16 %v94
  %v483 = vunpack.c.l.b16 %v95
  %v484 = vunpack.c.h.b16 %v95
  %v485 = vunpack.c.l.b16 %v96
  %v486 = vunpack.c.h.b16 %v96
  %v487 = vunpack.c.l.b16 %v97
  %v488 = vunpack.c.h.b16 %v97
  %v489 = vunpack.c.l.b16 %v98
  %v490 = vunpack.c.h.b16 %v98
  %v491 = vunpack.c.l.b16 %v99
  %v492 = vunpack.c.h.b16 %v99
  %v493 = vunpack.c.l.b16 %v100
  %v494 = vunpack.c.h.b16 %v100
  %v495 = vunpack.c.l.b16 %v101
  %v496 = vunpack.c.h.b16 %v101
  %v497 = vunpack.c.l.b16 %v102
  %v498 = vunpack.c.h.b16 %v102
  %v499 = vunpack.c.l.b16 %v103
  %v500 = vunpack.c.h.b16 %v103
  %v501 = vunpack.c.l.b16 %v104
  %v502 = vunpack.c.h.b16 %v104
  %v503 = vunpack.c.l.b16 %v105
  %v504 = vunpack.c.h.b16 %v105
  %v505 = vunpack.c.l.b16 %v106
  %v506 = vunpack.c.h.b16 %v106
  %v507 = vunpack.c.l.b16 %v107
  %v508 = vunpack.c.h.b16 %v107
  %v509 = vunpack.c.l.b16 %v108
  %v510 = vunpack.c.h.b16 %v108
  %v511 = vunpack.c.l.b16 %v109
  %v512 = vunpack.c.h.b16 %v109
  %v513 = vunpack.c.l.b16 %v110
  %v514 = vunpack.c.h.b16 %v110
  %v515 = vunpack.c.l.b16 %v111
  %v516 = vunpack.c.h.b16 %v111
  %v517 = vunpack.c.l.b16 %v112
  %v518 = vunpack.c.h.b16 %v112
  %v519 = vunpack.c.l.b16 %v113
  %v520 = vunpack.c.h.b16 %v113
  %v521 = vunpack.c.l.b16 %v114
  %v522 = vunpack.c.h.b16 %v114
  %v523 = vunpack.c.l.b16 %v115
  %v524 = vunpack.c.h.b16 %v115
  %v525 = vunpack.c.l.b16 %v116
  %v526 = vunpack.c.h.b16 %v116
  %v527 = vunpack.c.l.b16 %v117
  %v528 = vunpack.c.h.b16 %v117
  %v529 = vunpack.c.l.b16 %v118
  %v530 = vunpack.c.h.b16 %v118
  %v531 = vunpack.c.l.b16 %v119
  %v532 = vunpack.c.h.b16 %v119
  %v533 = vunpack.c.l.b16 %v120
  %v534 = vunpack.c.h.b16 %v120
  %v535 = vunpack.c.l.b16 %v121
  %v536 = vunpack.c.h.b16 %v121
  %v537 = vunpack.c.l.b16 %v122
  %v538 = vunpack.c.h.b16 %v122
  %v539 = vunpack.c.l.b16 %v123
  %v540 = vunpack.c.h.b16 %v123
  %v541 = vunpack.c.l.b16 %v124
  %v542 = vunpack.c.h.b16 %v124
  %v543 = vunpack.c.l.b16 %v125
  %v544 = vunpack.c.h.b16 %v125
  %v545 = vunpack.c.l.b16 %v126
  %v546 = vunpack.c.h.b16 %v126
  %v547 = vunpack.c.l.b16 %v127
  %v548 = vunpack.c.h.b16 %v127
  %v549 = vunpack.c.l.b16 %v128
  %v550 = vunpack.c.h.b16 %v128
  %v551 = vunpack.c.l.b16 %v129
  %v552 = vunpack.c.h.b16 %v129
  %v553 = vunpack.c.l.b16 %v130
  %v554 = vunpack.c.h.b16 %v130
  %v555 = vunpack.c.l.b16 %v131
  %v556 = vunpack.c.h.b16 %v131
  %v557 = vunpack.c.l.b16 %v132
  %v558 = vunpack.c.h.b16 %v132
  %v559 = vunpack.c.l.b16 %v133
  %v560 = vunpack.c.h.b16 %v133
  %v561 = vunpack.c.l.b16 %v134
  %v562 = vunpack.c.h.b16 %v134
  %v563 = vunpack.c.l.b16 %v135
  %v564 = vunpack.c.h.b16 %v135
  %v565 = vunpack.c.l.b16 %v136
  %v566 = vunpack.c.h.b16 %v136
  %v567 = vunpack.c.l.b16 %v137
  %v568 = vunpack.c.h.b16 %v137
  %v569 = vunpack.c.l.b16 %v138
  %v570 = vunpack.c.h.b16 %v138
  %v571 = vunpack.c.l.b16 %v139
  %v572 = vunpack.c.h.b16 %v139
  %v573 = vunpack.c.l.b16 %v140
  %v574 = vunpack.c.h.b16 %v140
  %v575 = vunpack.c.l.b16 %v141
  %v576 = vunpack.c.h.b16 %v141
  %v577 = vunpack.c.l.b16 %v142
  %v578 = vunpack.c.h.b16 %v142
  %v579 = vpack.c.b16 %v327, %v323
  %v580 = vpack.c.b16 %v328, %v324
  %v581 = vpack.c.b16 %v329, %v325
  %v582 = vpack.c.b16 %v330, %v326
  %v583 = vpack.c.b16 %v335, %v331
  %v584 = vpack.c.b16 %v336, %v332
  %v585 = vpack.c.b16 %v337, %v333
  %v586 = vpack.c.b16 %v338, %v334
  %v587 = vpack.c.b16 %v343, %v339
  %v588 = vpack.c.b16 %v344, %v340
  %v589 = vpack.c.b16 %v345, %v341
  %v590 = vpack.c.b16 %v346, %v342
  %v591 = vpack.c.b16 %v351, %v347
  %v592 = vpack.c.b16 %v352, %v348
  %v593 = vpack.c.b16 %v353, %v349
  %v594 = vpack.c.b16 %v354, %v350
  %v595 = vpack.c.b16 %v359, %v355
  %v596 = vpack.c.b16 %v360, %v356
  %v597 = vpack.c.b16 %v361, %v357
  %v598 = vpack.c.b16 %v362, %v358
  %v599 = vpack.c.b16 %v367, %v363
  %v600 = vpack.c.b16 %v368, %v364
  %v601 = vpack.c.b16 %v369, %v365
  %v602 = vpack.c.b16 %v370, %v366
  %v603 = vpack.c.b16 %v375, %v371
  %v604 = vpack.c.b16 %v376, %v372
  %v605 = vpack.c.b16 %v377, %v373
  %v606 = vpack.c.b16 %v378, %v374
  %v607 = vpack.c.b16 %v383, %v379
  %v608 = vpack.c.b16 %v384, %v380
  %v609 = vpack.c.b16 %v385, %v381
  %v610 = vpack.c.b16 %v386, %v382
  %v611 = vpack.c.b16 %v391, %v387
  %v612 = vpack.c.b16 %v392, %v388
  %v613 = vpack.c.b16 %v393, %v389
  %v614 = vpack.c.b16 %v394, %v390
  %v615 = vpack.c.b16 %v399, %v395
  %v616 = vpack.c.b16 %v400, %v396
  %v617 = vpack.c.b16 %v401, %v397
  %v618 = vpack.c.b16 %v402, %v398
  %v619 = vpack.c.b16 %v407, %v403
  %v620 = vpack.c.b16 %v408, %v404
  %v621 = vpack.c.b16 %v409, %v405
  %v622 = vpack.c.b16 %v410, %v406
  %v623 = vpack.c.b16 %v415, %v411
  %v624 = vpack.c.b16 %v416, %v412
  %v625 = vpack.c.b16 %v417, %v413
  %v626 = vpack.c.b16 %v418, %v414
  %v627 = vpack.c.b16 %v423, %v419
  %v628 = vpack.c.b16 %v424, %v420
  %v629 = vpack.c.b16 %v425, %v421
  %v630 = vpack.c.b16 %v426, %v422
  %v631 = vpack.c.b16 %v431, %v427
  %v632 = vpack.c.b16 %v432, %v428
  %v633 = vpack.c.b16 %v433, %v429
  %v634 = vpack.c.b16 %v434, %v430
  %v635 = vpack.c.b16 %v439, %v435
  %v636 = vpack.c.b16 %v440, %v436
  %v637 = vpack.c.b16 %v441, %v437
  %v638 = vpack.c.b16 %v442, %v438
  %v639 = vpack.c.b16 %v447, %v443
  %v640 = vpack.c.b16 %v448, %v444
  %v641 = vpack.c.b16 %v449, %v445
  %v642 = vpack.c.b16 %v450, %v446
  %v643 = vpack.c.b16 %v455, %v451
  %v644 = vpack.c.b16 %v456, %v452
  %v645 = vpack.c.b16 %v457, %v453
  %v646 = vpack.c.b16 %v458, %v454
  %v647 = vpack.c.b16 %v463, %v459
  %v648 = vpack.c.b16 %v464, %v460
  %v649 = vpack.c.b16 %v465, %v461
  %v650 = vpack.c.b16 %v466, %v462
  %v651 = vpack.c.b16 %v471, %v467
  %v652 = vpack.c.b16 %v472, %v468
  %v653 = vpack.c.b16 %v473, %v469
  %v654 = vpack.c.b16 %v474, %v470
  %v655 = vpack.c.b16 %v479, %v475
  %v656 = vpack.c.b16 %v480, %v476
  %v657 = vpack.c.b16 %v481, %v477
  %v658 = vpack.c.b16 %v482, %v478
  %v659 = vpack.c.b16 %v487, %v483
  %v660 = vpack.c.b16 %v488, %v484
  %v661 = vpack.c.b16 %v489, %v485
  %v662 = vpack.c.b16 %v490, %v486
  %v663 = vpack.c.b16 %v495, %v491
  %v664 = vpack.c.b16 %v496, %v492
  %v665 = vpack.c.b16 %v497, %v493
  %v666 = vpack.c.b16 %v498, %v494
  %v667 = vpack.c.b16 %v503, %v499
  %v668 = vpack.c.b16 %v504, %v500
  %v669 = vpack.c.b16 %v505, %v501
  %v670 = vpack.c.b16 %v506, %v502
  %v671 = vpack.c.b16 %v511, %v507
  %v672 = vpack.c.b16 %v512, %v508
  %v673 = vpack.c.b16 %v513, %v509
  %v674 = vpack.c.b16 %v514, %v510
  %v675 = vpack.c.b16 %v519, %v515
  %v676 = vpack.c.b16 %v520, %v516
  %v677 = vpack.c.b16 %v521, %v517
  %v678 = vpack.c.b16 %v522, %v518
  %v679 = vpack.c.b16 %v527, %v523
  %v680 = vpack.c.b16 %v528, %v524
  %v681 = vpack.c.b16 %v529, %v525
  %v682 = vpack.c.b16 %v530, %v526
  %v683 = vpack.c.b16 %v535, %v531
  %v684 = vpack.c.b16 %v536, %v532
  %v685 = vpack.c.b16 %v537, %v533
  %v686 = vpack.c.b16 %v538, %v534
  %v687 = vpack.c.b16 %v543, %v539
  %v688 = vpack.c.b16 %v544, %v540
  %v689 = vpack.c.b16 %v545, %v541
  %v690 = vpack.c.b16 %v546, %v542
  %v691 = vpack.c.b16 %v551, %v547
  %v692 = vpack.c.b16 %v552, %v548
  %v693 = vpack.c.b16 %v553, %v549
  %v694 = vpack.c.b16 %v554, %v550
  %v695 = vpack.c.b16 %v559, %v555
  %v696 = vpack.c.b16 %v560, %v556
  %v697 = vpack.c.b16 %v561, %v557
  %v698 = vpack.c.b16 %v562, %v558
  %v699 = vpack.c.b16 %v567, %v563
  %v700 = vpack.c.b16 %v568, %v564
  %v701 = vpack.c.b16 %v569, %v565
  %v702 = vpack.c.b16 %v570, %v566
  %v703 = vpack.c.b16 %v575, %v571
  %v704 = vpack.c.b16 %v576, %v572
  %v705 = vpack.c.b16 %v577, %v573
  %v706 = vpack.c.b16 %v578, %v574
  %v855 = vunpack.c.l.b16 %v143
  %v856 = vunpack.c.l.b16 %v144
  %v857 = vunpack.c.l.b16 %v145
  %v858 = vunpack.c.l.b16 %v146
  %v859 = vunpack.c.l.b16 %v147
  %v860 = vunpack.c.l.b16 %v148
  %v861 = vunpack.c.l.b16 %v149
  %v862 = vunpack.c.l.b16 %v150
  %v863 = vunpack.c.l.b16 %v151
  %v864 = vunpack.c.l.b16 %v152
  %v865 = vunpack.c.l.b16 %v153
  %v866 = vunpack.c.l.b16 %v154
  %v867 = vunpack.c.l.b16 %v155
  %v868 = vunpack.c.l.b16 %v156
  %v869 = vunpack.c.l.b16 %v157
  %v870 = vunpack.c.l.b16 %v158
  %v871 = vunpack.c.l.b16 %v159
  %v872 = vunpack.c.l.b16 %v160
  %v873 = vunpack.c.l.b16 %v161
  %v874 = vunpack.c.l.b16 %v162
  %v875 = vunpack.c.l.b16 %v163
  %v876 = vunpack.c.l.b16 %v164
  %v877 = vunpack.c.l.b16 %v165
  %v878 = vunpack.c.l.b16 %v166
  %v879 = vunpack.c.l.b16 %v167
  %v880 = vunpack.c.l.b16 %v168
  %v881 = vunpack.c.l.b16 %v169
  %v882 = vunpack.c.l.b16 %v170
  %v883 = vunpack.c.l.b16 %v171
  %v884 = vunpack.c.l.b16 %v172
  %v885 = vunpack.c.l.b16 %v173
  %v886 = vunpack.c.l.b16 %v174
  %v887 = vunpack.c.l.b16 %v175
  %v888 = vunpack.c.l.b16 %v176
  %v889 = vunpack.c.l.b16 %v177
  %v890 = vunpack.c.l.b16 %v178
  %v891 = vunpack.c.l.b16 %v179
  %v892 = vunpack.c.l.b16 %v180
  %v893 = vunpack.c.l.b16 %v181
  %v894 = vunpack.c.l.b16 %v182
  %v895 = vunpack.c.l.b16 %v183
  %v896 = vunpack.c.l.b16 %v184
  %v897 = vunpack.c.l.b16 %v185
  %v898 = vunpack.c.l.b16 %v186
  %v899 = vunpack.c.l.b16 %v187
  %v900 = vunpack.c.l.b16 %v188
  %v901 = vunpack.c.l.b16 %v189
  %v902 = vunpack.c.l.b16 %v190
  %v903 = vunpack.c.l.b16 %v191
  %v904 = vunpack.c.l.b16 %v192
  %v905 = vunpack.c.l.b16 %v193
  %v906 = vunpack.c.l.b16 %v194
  %v907 = vpack.c.b16 %v856, %v855
  %v908 = vpack.c.b16 %v858, %v857
  %v909 = vpack.c.b16 %v860, %v859
  %v910 = vpack.c.b16 %v862, %v861
  %v911 = vpack.c.b16 %v864, %v863
  %v912 = vpack.c.b16 %v866, %v865
  %v913 = vpack.c.b16 %v868, %v867
  %v914 = vpack.c.b16 %v870, %v869
  %v915 = vpack.c.b16 %v872, %v871
  %v916 = vpack.c.b16 %v874, %v873
  %v917 = vpack.c.b16 %v876, %v875
  %v918 = vpack.c.b16 %v878, %v877
  %v919 = vpack.c.b16 %v880, %v879
  %v920 = vpack.c.b16 %v882, %v881
  %v921 = vpack.c.b16 %v884, %v883
  %v922 = vpack.c.b16 %v886, %v885
  %v923 = vpack.c.b16 %v888, %v887
  %v924 = vpack.c.b16 %v890, %v889
  %v925 = vpack.c.b16 %v892, %v891
  %v926 = vpack.c.b16 %v894, %v893
  %v927 = vpack.c.b16 %v896, %v895
  %v928 = vpack.c.b16 %v898, %v897
  %v929 = vpack.c.b16 %v900, %v899
  %v930 = vpack.c.b16 %v902, %v901
  %v931 = vpack.c.b16 %v904, %v903
  %v932 = vpack.c.b16 %v906, %v905
  %vm959 = vcmask 261120
  %v961 = vsel %vm959, %v582, 0
  %v964 = vsel %vm959, %v586, 0
  %v967 = vsel %vm959, %v590, 0
  %v970 = vsel %vm959, %v594, 0
  %v973 = vsel %vm959, %v598, 0
  %v976 = vsel %vm959, %v602, 0
  %v979 = vsel %vm959, %v606, 0
  %v982 = vsel %vm959, %v610, 0
  %v985 = vsel %vm959, %v614, 0
  %v988 = vsel %vm959, %v618, 0
  %v991 = vsel %vm959, %v622, 0
  %v994 = vsel %vm959, %v626, 0
  %v997 = vsel %vm959, %v630, 0
  %v1000 = vsel %vm959, %v634, 0
  %v1003 = vsel %vm959, %v638, 0
  %v1006 = vsel %vm959, %v642, 0
  %v1009 = vsel %vm959, %v646, 0
  %v1012 = vsel %vm959, %v650, 0
  %v1015 = vsel %vm959, %v654, 0
  %v1018 = vsel %vm959, %v658, 0
  %v1021 = vsel %vm959, %v662, 0
  %v1024 = vsel %vm959, %v666, 0
  %v1027 = vsel %vm959, %v670, 0
  %v1030 = vsel %vm959, %v674, 0
  %v1033 = vsel %vm959, %v678, 0
  %v1036 = vsel %vm959, %v682, 0
  %v1039 = vsel %vm959, %v686, 0
  %v1042 = vsel %vm959, %v690, 0
  %v1045 = vsel %vm959, %v694, 0
  %v1048 = vsel %vm959, %v698, 0
  %v1051 = vsel %vm959, %v702, 0
  %v1054 = vsel %vm959, %v706, 0
  %1056 = vmatprep.subr.bf16.mxu0 0
  %1057 = vmatpush1.bf16.msra.mxu0 %v907
  %1058 = vmatprep.subr.bf16.mxu0 0
  %1059 = vmatpush1.bf16.msra.mxu0 %v908
  %1060 = vmatprep.subr.bf16.mxu0 0
  %1061 = vmatpush1.bf16.msra.mxu0 %v909
  %1062 = vmatprep.subr.bf16.mxu0 0
  %1063 = vmatpush1.bf16.msra.mxu0 %v910
  %1064 = vmatprep.subr.bf16.mxu0 0
  %1065 = vmatpush1.bf16.msra.mxu0 %v911
  %1066 = vmatprep.subr.bf16.mxu0 0
  %1067 = vmatpush1.bf16.msra.mxu0 %v912
  %1068 = vmatprep.subr.bf16.mxu0 0
  %1069 = vmatpush1.bf16.msra.mxu0 %v913
  %1070 = vmatprep.subr.bf16.mxu0 0
  %1071 = vmatpush1.bf16.msra.mxu0 %v914
  %1072 = vmatprep.subr.bf16.mxu0 0
  %1073 = vmatpush1.bf16.msra.mxu0 %v915
  %1074 = vmatprep.subr.bf16.mxu0 0
  %1075 = vmatpush1.bf16.msra.mxu0 %v916
  %1076 = vmatprep.subr.bf16.mxu0 0
  %1077 = vmatpush1.bf16.msra.mxu0 %v917
  %1078 = vmatprep.subr.bf16.mxu0 0
  %1079 = vmatpush1.bf16.msra.mxu0 %v918
  %1080 = vmatprep.subr.bf16.mxu0 0
  %1081 = vmatpush1.bf16.msra.mxu0 %v919
  %1082 = vmatprep.subr.bf16.mxu0 0
  %1083 = vmatpush1.bf16.msra.mxu0 %v920
  %1084 = vmatprep.subr.bf16.mxu0 0
  %1085 = vmatpush1.bf16.msra.mxu0 %v921
  %1086 = vmatprep.subr.bf16.mxu0 0
  %1087 = vmatpush1.bf16.msra.mxu0 %v922
  %1088 = vmatprep.mubr.bf16.mxu0 %v580
  %1089 = vmatmul.mubr.bf16.gmra.mrb[0].mxu0 %v579
  %v1090 = vpop.f32.mrb[0].mxu0
  %v1091 = vadd.f32 0.0, %v1090
  %v1092 = vpop.f32.mrb[0].mxu0
  %v1093 = vpop.f32.mrb[0].mxu0
  %v1094 = vadd.f32 0.0, %v1093
  %v1095 = vpop.f32.mrb[0].mxu0
  %1096 = vmatprep.mubr.bf16.mxu0 %v584
  %1097 = vmatmul.mubr.bf16.gmra.mrb[0].mxu0 %v583
  %v1098 = vpop.f32.mrb[0].mxu0
  %v1099 = vadd.f32 0.0, %v1098
  %v1100 = vpop.f32.mrb[0].mxu0
  %v1101 = vpop.f32.mrb[0].mxu0
  %v1102 = vadd.f32 0.0, %v1101
  %v1103 = vpop.f32.mrb[0].mxu0
  %1104 = vmatprep.mubr.bf16.mxu0 %v588
  %1105 = vmatmul.mubr.bf16.gmra.mrb[0].mxu0 %v587
  %v1106 = vpop.f32.mrb[0].mxu0
  %v1107 = vadd.f32 0.0, %v1106
  %v1108 = vpop.f32.mrb[0].mxu0
  %v1109 = vpop.f32.mrb[0].mxu0
  %v1110 = vadd.f32 0.0, %v1109
  %v1111 = vpop.f32.mrb[0].mxu0
  %1112 = vmatprep.mubr.bf16.mxu0 %v592
  %1113 = vmatmul.mubr.bf16.gmra.mrb[0].mxu0 %v591
  %v1114 = vpop.f32.mrb[0].mxu0
  %v1115 = vadd.f32 0.0, %v1114
  %v1116 = vpop.f32.mrb[0].mxu0
  %v1117 = vpop.f32.mrb[0].mxu0
  %v1118 = vadd.f32 0.0, %v1117
  %v1119 = vpop.f32.mrb[0].mxu0
  %1120 = vmatprep.mubr.bf16.mxu0 %v596
  %1121 = vmatmul.mubr.bf16.gmra.mrb[0].mxu0 %v595
  %v1122 = vpop.f32.mrb[0].mxu0
  %v1123 = vadd.f32 0.0, %v1122
  %v1124 = vpop.f32.mrb[0].mxu0
  %v1125 = vpop.f32.mrb[0].mxu0
  %v1126 = vadd.f32 0.0, %v1125
  %v1127 = vpop.f32.mrb[0].mxu0
  %1128 = vmatprep.mubr.bf16.mxu0 %v600
  %1129 = vmatmul.mubr.bf16.gmra.mrb[0].mxu0 %v599
  %v1130 = vpop.f32.mrb[0].mxu0
  %v1131 = vadd.f32 0.0, %v1130
  %v1132 = vpop.f32.mrb[0].mxu0
  %v1133 = vpop.f32.mrb[0].mxu0
  %v1134 = vadd.f32 0.0, %v1133
  %v1135 = vpop.f32.mrb[0].mxu0
  %1136 = vmatprep.mubr.bf16.mxu0 %v604
  %1137 = vmatmul.mubr.bf16.gmra.mrb[0].mxu0 %v603
  %v1138 = vpop.f32.mrb[0].mxu0
  %v1139 = vadd.f32 0.0, %v1138
  %v1140 = vpop.f32.mrb[0].mxu0
  %v1141 = vpop.f32.mrb[0].mxu0
  %v1142 = vadd.f32 0.0, %v1141
  %v1143 = vpop.f32.mrb[0].mxu0
  %1144 = vmatprep.mubr.bf16.mxu0 %v608
  %1145 = vmatmul.mubr.bf16.gmra.mrb[0].mxu0 %v607
  %v1146 = vpop.f32.mrb[0].mxu0
  %v1147 = vadd.f32 0.0, %v1146
  %v1148 = vpop.f32.mrb[0].mxu0
  %v1149 = vpop.f32.mrb[0].mxu0
  %v1150 = vadd.f32 0.0, %v1149
  %v1151 = vpop.f32.mrb[0].mxu0
  %1152 = vmatprep.mubr.bf16.mxu0 %v612
  %1153 = vmatmul.mubr.bf16.gmra.mrb[0].mxu0 %v611
  %v1154 = vpop.f32.mrb[0].mxu0
  %v1155 = vadd.f32 0.0, %v1154
  %v1156 = vpop.f32.mrb[0].mxu0
  %v1157 = vpop.f32.mrb[0].mxu0
  %v1158 = vadd.f32 0.0, %v1157
  %v1159 = vpop.f32.mrb[0].mxu0
  %1160 = vmatprep.mubr.bf16.mxu0 %v616
  %1161 = vmatmul.mubr.bf16.gmra.mrb[0].mxu0 %v615
  %v1162 = vpop.f32.mrb[0].mxu0
  %v1163 = vadd.f32 0.0, %v1162
  %v1164 = vpop.f32.mrb[0].mxu0
  %v1165 = vpop.f32.mrb[0].mxu0
  %v1166 = vadd.f32 0.0, %v1165
  %v1167 = vpop.f32.mrb[0].mxu0
  %1168 = vmatprep.mubr.bf16.mxu0 %v620
  %1169 = vmatmul.mubr.bf16.gmra.mrb[0].mxu0 %v619
  %v1170 = vpop.f32.mrb[0].mxu0
  %v1171 = vadd.f32 0.0, %v1170
  %v1172 = vpop.f32.mrb[0].mxu0
  %v1173 = vpop.f32.mrb[0].mxu0
  %v1174 = vadd.f32 0.0, %v1173
  %v1175 = vpop.f32.mrb[0].mxu0
  %1176 = vmatprep.mubr.bf16.mxu0 %v624
  %1177 = vmatmul.mubr.bf16.gmra.mrb[0].mxu0 %v623
  %v1178 = vpop.f32.mrb[0].mxu0
  %v1179 = vadd.f32 0.0, %v1178
  %v1180 = vpop.f32.mrb[0].mxu0
  %v1181 = vpop.f32.mrb[0].mxu0
  %v1182 = vadd.f32 0.0, %v1181
  %v1183 = vpop.f32.mrb[0].mxu0
  %1184 = vmatprep.mubr.bf16.mxu0 %v628
  %1185 = vmatmul.mubr.bf16.gmra.mrb[0].mxu0 %v627
  %v1186 = vpop.f32.mrb[0].mxu0
  %v1187 = vadd.f32 0.0, %v1186
  %v1188 = vpop.f32.mrb[0].mxu0
  %v1189 = vpop.f32.mrb[0].mxu0
  %v1190 = vadd.f32 0.0, %v1189
  %v1191 = vpop.f32.mrb[0].mxu0
  %1192 = vmatprep.mubr.bf16.mxu0 %v632
  %1193 = vmatmul.mubr.bf16.gmra.mrb[0].mxu0 %v631
  %v1194 = vpop.f32.mrb[0].mxu0
  %v1195 = vadd.f32 0.0, %v1194
  %v1196 = vpop.f32.mrb[0].mxu0
  %v1197 = vpop.f32.mrb[0].mxu0
  %v1198 = vadd.f32 0.0, %v1197
  %v1199 = vpop.f32.mrb[0].mxu0
  %1200 = vmatprep.mubr.bf16.mxu0 %v636
  %1201 = vmatmul.mubr.bf16.gmra.mrb[0].mxu0 %v635
  %v1202 = vpop.f32.mrb[0].mxu0
  %v1203 = vadd.f32 0.0, %v1202
  %v1204 = vpop.f32.mrb[0].mxu0
  %v1205 = vpop.f32.mrb[0].mxu0
  %v1206 = vadd.f32 0.0, %v1205
  %v1207 = vpop.f32.mrb[0].mxu0
  %1208 = vmatprep.mubr.bf16.mxu0 %v640
  %1209 = vmatmul.mubr.bf16.gmra.mrb[0].mxu0 %v639
  %v1210 = vpop.f32.mrb[0].mxu0
  %v1211 = vadd.f32 0.0, %v1210
  %v1212 = vpop.f32.mrb[0].mxu0
  %v1213 = vpop.f32.mrb[0].mxu0
  %v1214 = vadd.f32 0.0, %v1213
  %v1215 = vpop.f32.mrb[0].mxu0
  %1216 = vmatprep.mubr.bf16.mxu0 %v644
  %1217 = vmatmul.mubr.bf16.gmra.mrb[0].mxu0 %v643
  %v1218 = vpop.f32.mrb[0].mxu0
  %v1219 = vadd.f32 0.0, %v1218
  %v1220 = vpop.f32.mrb[0].mxu0
  %v1221 = vpop.f32.mrb[0].mxu0
  %v1222 = vadd.f32 0.0, %v1221
  %v1223 = vpop.f32.mrb[0].mxu0
  %1224 = vmatprep.mubr.bf16.mxu0 %v648
  %1225 = vmatmul.mubr.bf16.gmra.mrb[0].mxu0 %v647
  %v1226 = vpop.f32.mrb[0].mxu0
  %v1227 = vadd.f32 0.0, %v1226
  %v1228 = vpop.f32.mrb[0].mxu0
  %v1229 = vpop.f32.mrb[0].mxu0
  %v1230 = vadd.f32 0.0, %v1229
  %v1231 = vpop.f32.mrb[0].mxu0
  %1232 = vmatprep.mubr.bf16.mxu0 %v652
  %1233 = vmatmul.mubr.bf16.gmra.mrb[0].mxu0 %v651
  %v1234 = vpop.f32.mrb[0].mxu0
  %v1235 = vadd.f32 0.0, %v1234
  %v1236 = vpop.f32.mrb[0].mxu0
  %v1237 = vpop.f32.mrb[0].mxu0
  %v1238 = vadd.f32 0.0, %v1237
  %v1239 = vpop.f32.mrb[0].mxu0
  %1240 = vmatprep.mubr.bf16.mxu0 %v656
  %1241 = vmatmul.mubr.bf16.gmra.mrb[0].mxu0 %v655
  %v1242 = vpop.f32.mrb[0].mxu0
  %v1243 = vadd.f32 0.0, %v1242
  %v1244 = vpop.f32.mrb[0].mxu0
  %v1245 = vpop.f32.mrb[0].mxu0
  %v1246 = vadd.f32 0.0, %v1245
  %v1247 = vpop.f32.mrb[0].mxu0
  %1248 = vmatprep.mubr.bf16.mxu0 %v660
  %1249 = vmatmul.mubr.bf16.gmra.mrb[0].mxu0 %v659
  %v1250 = vpop.f32.mrb[0].mxu0
  %v1251 = vadd.f32 0.0, %v1250
  %v1252 = vpop.f32.mrb[0].mxu0
  %v1253 = vpop.f32.mrb[0].mxu0
  %v1254 = vadd.f32 0.0, %v1253
  %v1255 = vpop.f32.mrb[0].mxu0
  %1256 = vmatprep.mubr.bf16.mxu0 %v664
  %1257 = vmatmul.mubr.bf16.gmra.mrb[0].mxu0 %v663
  %v1258 = vpop.f32.mrb[0].mxu0
  %v1259 = vadd.f32 0.0, %v1258
  %v1260 = vpop.f32.mrb[0].mxu0
  %v1261 = vpop.f32.mrb[0].mxu0
  %v1262 = vadd.f32 0.0, %v1261
  %v1263 = vpop.f32.mrb[0].mxu0
  %1264 = vmatprep.mubr.bf16.mxu0 %v668
  %1265 = vmatmul.mubr.bf16.gmra.mrb[0].mxu0 %v667
  %v1266 = vpop.f32.mrb[0].mxu0
  %v1267 = vadd.f32 0.0, %v1266
  %v1268 = vpop.f32.mrb[0].mxu0
  %v1269 = vpop.f32.mrb[0].mxu0
  %v1270 = vadd.f32 0.0, %v1269
  %v1271 = vpop.f32.mrb[0].mxu0
  %1272 = vmatprep.mubr.bf16.mxu0 %v672
  %1273 = vmatmul.mubr.bf16.gmra.mrb[0].mxu0 %v671
  %v1274 = vpop.f32.mrb[0].mxu0
  %v1275 = vadd.f32 0.0, %v1274
  %v1276 = vpop.f32.mrb[0].mxu0
  %v1277 = vpop.f32.mrb[0].mxu0
  %v1278 = vadd.f32 0.0, %v1277
  %v1279 = vpop.f32.mrb[0].mxu0
  %1280 = vmatprep.mubr.bf16.mxu0 %v676
  %1281 = vmatmul.mubr.bf16.gmra.mrb[0].mxu0 %v675
  %v1282 = vpop.f32.mrb[0].mxu0
  %v1283 = vadd.f32 0.0, %v1282
  %v1284 = vpop.f32.mrb[0].mxu0
  %v1285 = vpop.f32.mrb[0].mxu0
  %v1286 = vadd.f32 0.0, %v1285
  %v1287 = vpop.f32.mrb[0].mxu0
  %1288 = vmatprep.mubr.bf16.mxu0 %v680
  %1289 = vmatmul.mubr.bf16.gmra.mrb[0].mxu0 %v679
  %v1290 = vpop.f32.mrb[0].mxu0
  %v1291 = vadd.f32 0.0, %v1290
  %v1292 = vpop.f32.mrb[0].mxu0
  %v1293 = vpop.f32.mrb[0].mxu0
  %v1294 = vadd.f32 0.0, %v1293
  %v1295 = vpop.f32.mrb[0].mxu0
  %1296 = vmatprep.mubr.bf16.mxu0 %v684
  %1297 = vmatmul.mubr.bf16.gmra.mrb[0].mxu0 %v683
  %v1298 = vpop.f32.mrb[0].mxu0
  %v1299 = vadd.f32 0.0, %v1298
  %v1300 = vpop.f32.mrb[0].mxu0
  %v1301 = vpop.f32.mrb[0].mxu0
  %v1302 = vadd.f32 0.0, %v1301
  %v1303 = vpop.f32.mrb[0].mxu0
  %1304 = vmatprep.mubr.bf16.mxu0 %v688
  %1305 = vmatmul.mubr.bf16.gmra.mrb[0].mxu0 %v687
  %v1306 = vpop.f32.mrb[0].mxu0
  %v1307 = vadd.f32 0.0, %v1306
  %v1308 = vpop.f32.mrb[0].mxu0
  %v1309 = vpop.f32.mrb[0].mxu0
  %v1310 = vadd.f32 0.0, %v1309
  %v1311 = vpop.f32.mrb[0].mxu0
  %1312 = vmatprep.mubr.bf16.mxu0 %v692
  %1313 = vmatmul.mubr.bf16.gmra.mrb[0].mxu0 %v691
  %v1314 = vpop.f32.mrb[0].mxu0
  %v1315 = vadd.f32 0.0, %v1314
  %v1316 = vpop.f32.mrb[0].mxu0
  %v1317 = vpop.f32.mrb[0].mxu0
  %v1318 = vadd.f32 0.0, %v1317
  %v1319 = vpop.f32.mrb[0].mxu0
  %1320 = vmatprep.mubr.bf16.mxu0 %v696
  %1321 = vmatmul.mubr.bf16.gmra.mrb[0].mxu0 %v695
  %v1322 = vpop.f32.mrb[0].mxu0
  %v1323 = vadd.f32 0.0, %v1322
  %v1324 = vpop.f32.mrb[0].mxu0
  %v1325 = vpop.f32.mrb[0].mxu0
  %v1326 = vadd.f32 0.0, %v1325
  %v1327 = vpop.f32.mrb[0].mxu0
  %1328 = vmatprep.mubr.bf16.mxu0 %v700
  %1329 = vmatmul.mubr.bf16.gmra.mrb[0].mxu0 %v699
  %v1330 = vpop.f32.mrb[0].mxu0
  %v1331 = vadd.f32 0.0, %v1330
  %v1332 = vpop.f32.mrb[0].mxu0
  %v1333 = vpop.f32.mrb[0].mxu0
  %v1334 = vadd.f32 0.0, %v1333
  %v1335 = vpop.f32.mrb[0].mxu0
  %1336 = vmatprep.mubr.bf16.mxu0 %v704
  %1337 = vmatmul.mubr.bf16.gmra.mrb[0].mxu0 %v703
  %v1338 = vpop.f32.mrb[0].mxu0
  %v1339 = vadd.f32 0.0, %v1338
  %v1340 = vpop.f32.mrb[0].mxu0
  %v1341 = vpop.f32.mrb[0].mxu0
  %v1342 = vadd.f32 0.0, %v1341
  %v1343 = vpop.f32.mrb[0].mxu0
  %1344 = vdwg.mxu0
  %1345 = vmatprep.subr.bf16.mxu0 0
  %1346 = vmatpush1.bf16.msra.mxu0 %v923
  %1347 = vmatprep.subr.bf16.mxu0 0
  %1348 = vmatpush1.bf16.msra.mxu0 %v924
  %1349 = vmatprep.subr.bf16.mxu0 0
  %1350 = vmatpush1.bf16.msra.mxu0 %v925
  %1351 = vmatprep.subr.bf16.mxu0 0
  %1352 = vmatpush1.bf16.msra.mxu0 %v926
  %1353 = vmatprep.subr.bf16.mxu0 0
  %1354 = vmatpush1.bf16.msra.mxu0 %v927
  %1355 = vmatprep.subr.bf16.mxu0 0
  %1356 = vmatpush1.bf16.msra.mxu0 %v928
  %1357 = vmatprep.subr.bf16.mxu0 0
  %1358 = vmatpush1.bf16.msra.mxu0 %v929
  %1359 = vmatprep.subr.bf16.mxu0 0
  %1360 = vmatpush1.bf16.msra.mxu0 %v930
  %1361 = vmatprep.subr.bf16.mxu0 0
  %1362 = vmatpush1.bf16.msra.mxu0 %v931
  %1363 = vmatprep.subr.bf16.mxu0 0
  %1364 = vmatpush1.bf16.msra.mxu0 %v932
  %1365 = vmatprep.subr.bf16.mxu0 0
  %1366 = vmatpush1.bf16.msra.mxu0 0
  %1367 = vmatprep.subr.bf16.mxu0 0
  %1368 = vmatpush1.bf16.msra.mxu0 0
  %1369 = vmatprep.subr.bf16.mxu0 0
  %1370 = vmatpush1.bf16.msra.mxu0 0
  %1371 = vmatprep.subr.bf16.mxu0 0
  %1372 = vmatpush1.bf16.msra.mxu0 0
  %1373 = vmatprep.subr.bf16.mxu0 0
  %1374 = vmatpush1.bf16.msra.mxu0 0
  %1375 = vmatprep.subr.bf16.mxu0 0
  %1376 = vmatpush1.bf16.msra.mxu0 0
  %1377 = vmatprep.mubr.bf16.mxu0 %v961
  %1378 = vmatmul.mubr.bf16.gmra.mrb[0].mxu0 %v581
  %v1379 = vpop.f32.mrb[0].mxu0
  %v1380 = vadd.f32 %v1091, %v1379
  %v1381 = vpop.f32.mrb[0].mxu0
  %v1382 = vpop.f32.mrb[0].mxu0
  %v1383 = vadd.f32 %v1094, %v1382
  %v1384 = vpop.f32.mrb[0].mxu0
  %1385 = vmatprep.mubr.bf16.mxu0 %v964
  %1386 = vmatmul.mubr.bf16.gmra.mrb[0].mxu0 %v585
  %v1387 = vpop.f32.mrb[0].mxu0
  %v1388 = vadd.f32 %v1099, %v1387
  %v1389 = vpop.f32.mrb[0].mxu0
  %v1390 = vpop.f32.mrb[0].mxu0
  %v1391 = vadd.f32 %v1102, %v1390
  %v1392 = vpop.f32.mrb[0].mxu0
  %1393 = vmatprep.mubr.bf16.mxu0 %v967
  %1394 = vmatmul.mubr.bf16.gmra.mrb[0].mxu0 %v589
  %v1395 = vpop.f32.mrb[0].mxu0
  %v1396 = vadd.f32 %v1107, %v1395
  %v1397 = vpop.f32.mrb[0].mxu0
  %v1398 = vpop.f32.mrb[0].mxu0
  %v1399 = vadd.f32 %v1110, %v1398
  %v1400 = vpop.f32.mrb[0].mxu0
  %1401 = vmatprep.mubr.bf16.mxu0 %v970
  %1402 = vmatmul.mubr.bf16.gmra.mrb[0].mxu0 %v593
  %v1403 = vpop.f32.mrb[0].mxu0
  %v1404 = vadd.f32 %v1115, %v1403
  %v1405 = vpop.f32.mrb[0].mxu0
  %v1406 = vpop.f32.mrb[0].mxu0
  %v1407 = vadd.f32 %v1118, %v1406
  %v1408 = vpop.f32.mrb[0].mxu0
  %1409 = vmatprep.mubr.bf16.mxu0 %v973
  %1410 = vmatmul.mubr.bf16.gmra.mrb[0].mxu0 %v597
  %v1411 = vpop.f32.mrb[0].mxu0
  %v1412 = vadd.f32 %v1123, %v1411
  %v1413 = vpop.f32.mrb[0].mxu0
  %v1414 = vpop.f32.mrb[0].mxu0
  %v1415 = vadd.f32 %v1126, %v1414
  %v1416 = vpop.f32.mrb[0].mxu0
  %1417 = vmatprep.mubr.bf16.mxu0 %v976
  %1418 = vmatmul.mubr.bf16.gmra.mrb[0].mxu0 %v601
  %v1419 = vpop.f32.mrb[0].mxu0
  %v1420 = vadd.f32 %v1131, %v1419
  %v1421 = vpop.f32.mrb[0].mxu0
  %v1422 = vpop.f32.mrb[0].mxu0
  %v1423 = vadd.f32 %v1134, %v1422
  %v1424 = vpop.f32.mrb[0].mxu0
  %1425 = vmatprep.mubr.bf16.mxu0 %v979
  %1426 = vmatmul.mubr.bf16.gmra.mrb[0].mxu0 %v605
  %v1427 = vpop.f32.mrb[0].mxu0
  %v1428 = vadd.f32 %v1139, %v1427
  %v1429 = vpop.f32.mrb[0].mxu0
  %v1430 = vpop.f32.mrb[0].mxu0
  %v1431 = vadd.f32 %v1142, %v1430
  %v1432 = vpop.f32.mrb[0].mxu0
  %1433 = vmatprep.mubr.bf16.mxu0 %v982
  %1434 = vmatmul.mubr.bf16.gmra.mrb[0].mxu0 %v609
  %v1435 = vpop.f32.mrb[0].mxu0
  %v1436 = vadd.f32 %v1147, %v1435
  %v1437 = vpop.f32.mrb[0].mxu0
  %v1438 = vpop.f32.mrb[0].mxu0
  %v1439 = vadd.f32 %v1150, %v1438
  %v1440 = vpop.f32.mrb[0].mxu0
  %1441 = vmatprep.mubr.bf16.mxu0 %v985
  %1442 = vmatmul.mubr.bf16.gmra.mrb[0].mxu0 %v613
  %v1443 = vpop.f32.mrb[0].mxu0
  %v1444 = vadd.f32 %v1155, %v1443
  %v1445 = vpop.f32.mrb[0].mxu0
  %v1446 = vpop.f32.mrb[0].mxu0
  %v1447 = vadd.f32 %v1158, %v1446
  %v1448 = vpop.f32.mrb[0].mxu0
  %1449 = vmatprep.mubr.bf16.mxu0 %v988
  %1450 = vmatmul.mubr.bf16.gmra.mrb[0].mxu0 %v617
  %v1451 = vpop.f32.mrb[0].mxu0
  %v1452 = vadd.f32 %v1163, %v1451
  %v1453 = vpop.f32.mrb[0].mxu0
  %v1454 = vpop.f32.mrb[0].mxu0
  %v1455 = vadd.f32 %v1166, %v1454
  %v1456 = vpop.f32.mrb[0].mxu0
  %1457 = vmatprep.mubr.bf16.mxu0 %v991
  %1458 = vmatmul.mubr.bf16.gmra.mrb[0].mxu0 %v621
  %v1459 = vpop.f32.mrb[0].mxu0
  %v1460 = vadd.f32 %v1171, %v1459
  %v1461 = vpop.f32.mrb[0].mxu0
  %v1462 = vpop.f32.mrb[0].mxu0
  %v1463 = vadd.f32 %v1174, %v1462
  %v1464 = vpop.f32.mrb[0].mxu0
  %1465 = vmatprep.mubr.bf16.mxu0 %v994
  %1466 = vmatmul.mubr.bf16.gmra.mrb[0].mxu0 %v625
  %v1467 = vpop.f32.mrb[0].mxu0
  %v1468 = vadd.f32 %v1179, %v1467
  %v1469 = vpop.f32.mrb[0].mxu0
  %v1470 = vpop.f32.mrb[0].mxu0
  %v1471 = vadd.f32 %v1182, %v1470
  %v1472 = vpop.f32.mrb[0].mxu0
  %1473 = vmatprep.mubr.bf16.mxu0 %v997
  %1474 = vmatmul.mubr.bf16.gmra.mrb[0].mxu0 %v629
  %v1475 = vpop.f32.mrb[0].mxu0
  %v1476 = vadd.f32 %v1187, %v1475
  %v1477 = vpop.f32.mrb[0].mxu0
  %v1478 = vpop.f32.mrb[0].mxu0
  %v1479 = vadd.f32 %v1190, %v1478
  %v1480 = vpop.f32.mrb[0].mxu0
  %1481 = vmatprep.mubr.bf16.mxu0 %v1000
  %1482 = vmatmul.mubr.bf16.gmra.mrb[0].mxu0 %v633
  %v1483 = vpop.f32.mrb[0].mxu0
  %v1484 = vadd.f32 %v1195, %v1483
  %v1485 = vpop.f32.mrb[0].mxu0
  %v1486 = vpop.f32.mrb[0].mxu0
  %v1487 = vadd.f32 %v1198, %v1486
  %v1488 = vpop.f32.mrb[0].mxu0
  %1489 = vmatprep.mubr.bf16.mxu0 %v1003
  %1490 = vmatmul.mubr.bf16.gmra.mrb[0].mxu0 %v637
  %v1491 = vpop.f32.mrb[0].mxu0
  %v1492 = vadd.f32 %v1203, %v1491
  %v1493 = vpop.f32.mrb[0].mxu0
  %v1494 = vpop.f32.mrb[0].mxu0
  %v1495 = vadd.f32 %v1206, %v1494
  %v1496 = vpop.f32.mrb[0].mxu0
  %1497 = vmatprep.mubr.bf16.mxu0 %v1006
  %1498 = vmatmul.mubr.bf16.gmra.mrb[0].mxu0 %v641
  %v1499 = vpop.f32.mrb[0].mxu0
  %v1500 = vadd.f32 %v1211, %v1499
  %v1501 = vpop.f32.mrb[0].mxu0
  %v1502 = vpop.f32.mrb[0].mxu0
  %v1503 = vadd.f32 %v1214, %v1502
  %v1504 = vpop.f32.mrb[0].mxu0
  %1505 = vmatprep.mubr.bf16.mxu0 %v1009
  %1506 = vmatmul.mubr.bf16.gmra.mrb[0].mxu0 %v645
  %v1507 = vpop.f32.mrb[0].mxu0
  %v1508 = vadd.f32 %v1219, %v1507
  %v1509 = vpop.f32.mrb[0].mxu0
  %v1510 = vpop.f32.mrb[0].mxu0
  %v1511 = vadd.f32 %v1222, %v1510
  %v1512 = vpop.f32.mrb[0].mxu0
  %1513 = vmatprep.mubr.bf16.mxu0 %v1012
  %1514 = vmatmul.mubr.bf16.gmra.mrb[0].mxu0 %v649
  %v1515 = vpop.f32.mrb[0].mxu0
  %v1516 = vadd.f32 %v1227, %v1515
  %v1517 = vpop.f32.mrb[0].mxu0
  %v1518 = vpop.f32.mrb[0].mxu0
  %v1519 = vadd.f32 %v1230, %v1518
  %v1520 = vpop.f32.mrb[0].mxu0
  %1521 = vmatprep.mubr.bf16.mxu0 %v1015
  %1522 = vmatmul.mubr.bf16.gmra.mrb[0].mxu0 %v653
  %v1523 = vpop.f32.mrb[0].mxu0
  %v1524 = vadd.f32 %v1235, %v1523
  %v1525 = vpop.f32.mrb[0].mxu0
  %v1526 = vpop.f32.mrb[0].mxu0
  %v1527 = vadd.f32 %v1238, %v1526
  %v1528 = vpop.f32.mrb[0].mxu0
  %1529 = vmatprep.mubr.bf16.mxu0 %v1018
  %1530 = vmatmul.mubr.bf16.gmra.mrb[0].mxu0 %v657
  %v1531 = vpop.f32.mrb[0].mxu0
  %v1532 = vadd.f32 %v1243, %v1531
  %v1533 = vpop.f32.mrb[0].mxu0
  %v1534 = vpop.f32.mrb[0].mxu0
  %v1535 = vadd.f32 %v1246, %v1534
  %v1536 = vpop.f32.mrb[0].mxu0
  %1537 = vmatprep.mubr.bf16.mxu0 %v1021
  %1538 = vmatmul.mubr.bf16.gmra.mrb[0].mxu0 %v661
  %v1539 = vpop.f32.mrb[0].mxu0
  %v1540 = vadd.f32 %v1251, %v1539
  %v1541 = vpop.f32.mrb[0].mxu0
  %v1542 = vpop.f32.mrb[0].mxu0
  %v1543 = vadd.f32 %v1254, %v1542
  %v1544 = vpop.f32.mrb[0].mxu0
  %1545 = vmatprep.mubr.bf16.mxu0 %v1024
  %1546 = vmatmul.mubr.bf16.gmra.mrb[0].mxu0 %v665
  %v1547 = vpop.f32.mrb[0].mxu0
  %v1548 = vadd.f32 %v1259, %v1547
  %v1549 = vpop.f32.mrb[0].mxu0
  %v1550 = vpop.f32.mrb[0].mxu0
  %v1551 = vadd.f32 %v1262, %v1550
  %v1552 = vpop.f32.mrb[0].mxu0
  %1553 = vmatprep.mubr.bf16.mxu0 %v1027
  %1554 = vmatmul.mubr.bf16.gmra.mrb[0].mxu0 %v669
  %v1555 = vpop.f32.mrb[0].mxu0
  %v1556 = vadd.f32 %v1267, %v1555
  %v1557 = vpop.f32.mrb[0].mxu0
  %v1558 = vpop.f32.mrb[0].mxu0
  %v1559 = vadd.f32 %v1270, %v1558
  %v1560 = vpop.f32.mrb[0].mxu0
  %1561 = vmatprep.mubr.bf16.mxu0 %v1030
  %1562 = vmatmul.mubr.bf16.gmra.mrb[0].mxu0 %v673
  %v1563 = vpop.f32.mrb[0].mxu0
  %v1564 = vadd.f32 %v1275, %v1563
  %v1565 = vpop.f32.mrb[0].mxu0
  %v1566 = vpop.f32.mrb[0].mxu0
  %v1567 = vadd.f32 %v1278, %v1566
  %v1568 = vpop.f32.mrb[0].mxu0
  %1569 = vmatprep.mubr.bf16.mxu0 %v1033
  %1570 = vmatmul.mubr.bf16.gmra.mrb[0].mxu0 %v677
  %v1571 = vpop.f32.mrb[0].mxu0
  %v1572 = vadd.f32 %v1283, %v1571
  %v1573 = vpop.f32.mrb[0].mxu0
  %v1574 = vpop.f32.mrb[0].mxu0
  %v1575 = vadd.f32 %v1286, %v1574
  %v1576 = vpop.f32.mrb[0].mxu0
  %1577 = vmatprep.mubr.bf16.mxu0 %v1036
  %1578 = vmatmul.mubr.bf16.gmra.mrb[0].mxu0 %v681
  %v1579 = vpop.f32.mrb[0].mxu0
  %v1580 = vadd.f32 %v1291, %v1579
  %v1581 = vpop.f32.mrb[0].mxu0
  %v1582 = vpop.f32.mrb[0].mxu0
  %v1583 = vadd.f32 %v1294, %v1582
  %v1584 = vpop.f32.mrb[0].mxu0
  %1585 = vmatprep.mubr.bf16.mxu0 %v1039
  %1586 = vmatmul.mubr.bf16.gmra.mrb[0].mxu0 %v685
  %v1587 = vpop.f32.mrb[0].mxu0
  %v1588 = vadd.f32 %v1299, %v1587
  %v1589 = vpop.f32.mrb[0].mxu0
  %v1590 = vpop.f32.mrb[0].mxu0
  %v1591 = vadd.f32 %v1302, %v1590
  %v1592 = vpop.f32.mrb[0].mxu0
  %1593 = vmatprep.mubr.bf16.mxu0 %v1042
  %1594 = vmatmul.mubr.bf16.gmra.mrb[0].mxu0 %v689
  %v1595 = vpop.f32.mrb[0].mxu0
  %v1596 = vadd.f32 %v1307, %v1595
  %v1597 = vpop.f32.mrb[0].mxu0
  %v1598 = vpop.f32.mrb[0].mxu0
  %v1599 = vadd.f32 %v1310, %v1598
  %v1600 = vpop.f32.mrb[0].mxu0
  %1601 = vmatprep.mubr.bf16.mxu0 %v1045
  %1602 = vmatmul.mubr.bf16.gmra.mrb[0].mxu0 %v693
  %v1603 = vpop.f32.mrb[0].mxu0
  %v1604 = vadd.f32 %v1315, %v1603
  %v1605 = vpop.f32.mrb[0].mxu0
  %v1606 = vpop.f32.mrb[0].mxu0
  %v1607 = vadd.f32 %v1318, %v1606
  %v1608 = vpop.f32.mrb[0].mxu0
  %1609 = vmatprep.mubr.bf16.mxu0 %v1048
  %1610 = vmatmul.mubr.bf16.gmra.mrb[0].mxu0 %v697
  %v1611 = vpop.f32.mrb[0].mxu0
  %v1612 = vadd.f32 %v1323, %v1611
  %v1613 = vpop.f32.mrb[0].mxu0
  %v1614 = vpop.f32.mrb[0].mxu0
  %v1615 = vadd.f32 %v1326, %v1614
  %v1616 = vpop.f32.mrb[0].mxu0
  %1617 = vmatprep.mubr.bf16.mxu0 %v1051
  %1618 = vmatmul.mubr.bf16.gmra.mrb[0].mxu0 %v701
  %v1619 = vpop.f32.mrb[0].mxu0
  %v1620 = vadd.f32 %v1331, %v1619
  %v1621 = vpop.f32.mrb[0].mxu0
  %v1622 = vpop.f32.mrb[0].mxu0
  %v1623 = vadd.f32 %v1334, %v1622
  %v1624 = vpop.f32.mrb[0].mxu0
  %1625 = vmatprep.mubr.bf16.mxu0 %v1054
  %1626 = vmatmul.mubr.bf16.gmra.mrb[0].mxu0 %v705
  %v1627 = vpop.f32.mrb[0].mxu0
  %v1628 = vadd.f32 %v1339, %v1627
  %v1629 = vpop.f32.mrb[0].mxu0
  %v1630 = vpop.f32.mrb[0].mxu0
  %v1631 = vadd.f32 %v1342, %v1630
  %v1632 = vpop.f32.mrb[0].mxu0
  %1633 = vdwg.mxu0
  %v1634 = vmax.f32 %v1380, %v1444
  %v1635 = vmax.f32 %v1383, %v1447
  %v1636 = vmax.f32 %v1388, %v1452
  %v1637 = vmax.f32 %v1391, %v1455
  %v1638 = vmax.f32 %v1396, %v1460
  %v1639 = vmax.f32 %v1399, %v1463
  %v1640 = vmax.f32 %v1404, %v1468
  %v1641 = vmax.f32 %v1407, %v1471
  %v1642 = vmax.f32 %v1412, %v1476
  %v1643 = vmax.f32 %v1415, %v1479
  %v1644 = vmax.f32 %v1420, %v1484
  %v1645 = vmax.f32 %v1423, %v1487
  %v1646 = vmax.f32 %v1428, %v1492
  %v1647 = vmax.f32 %v1431, %v1495
  %v1648 = vmax.f32 %v1436, %v1500
  %v1649 = vmax.f32 %v1439, %v1503
  %v1650 = vmax.f32 %v1508, %v1572
  %v1651 = vmax.f32 %v1511, %v1575
  %v1652 = vmax.f32 %v1516, %v1580
  %v1653 = vmax.f32 %v1519, %v1583
  %v1654 = vmax.f32 %v1524, %v1588
  %v1655 = vmax.f32 %v1527, %v1591
  %v1656 = vmax.f32 %v1532, %v1596
  %v1657 = vmax.f32 %v1535, %v1599
  %v1658 = vmax.f32 %v1540, %v1604
  %v1659 = vmax.f32 %v1543, %v1607
  %v1660 = vmax.f32 %v1548, %v1612
  %v1661 = vmax.f32 %v1551, %v1615
  %v1662 = vmax.f32 %v1556, %v1620
  %v1663 = vmax.f32 %v1559, %v1623
  %v1664 = vmax.f32 %v1564, %v1628
  %v1665 = vmax.f32 %v1567, %v1631
  %v1666 = vmax.f32 %v1634, %v1650
  %v1667 = vmax.f32 %v1635, %v1651
  %v1668 = vmax.f32 %v1636, %v1652
  %v1669 = vmax.f32 %v1637, %v1653
  %v1670 = vmax.f32 %v1638, %v1654
  %v1671 = vmax.f32 %v1639, %v1655
  %v1672 = vmax.f32 %v1640, %v1656
  %v1673 = vmax.f32 %v1641, %v1657
  %v1674 = vmax.f32 %v1642, %v1658
  %v1675 = vmax.f32 %v1643, %v1659
  %v1676 = vmax.f32 %v1644, %v1660
  %v1677 = vmax.f32 %v1645, %v1661
  %v1678 = vmax.f32 %v1646, %v1662
  %v1679 = vmax.f32 %v1647, %v1663
  %v1680 = vmax.f32 %v1648, %v1664
  %v1681 = vmax.f32 %v1649, %v1665
  %v1682 = vld [vmem:[%s2] sm:$0x1]
  %v1684 = vlaneseq
  %v1685 = vshrl.u32 %v1684, 7
  %v1686 = vsub.s32 0, %v1685
  %v1687 = vrot.slane %v1682, %v1686
  %v1689 = vadd.f32 %v1666, %v1687
  %v1690 = vadd.f32 %v1667, %v1687
  %v1691 = vadd.f32 %v1668, %v1687
  %v1692 = vadd.f32 %v1669, %v1687
  %v1693 = vadd.f32 %v1670, %v1687
  %v1694 = vadd.f32 %v1671, %v1687
  %v1695 = vadd.f32 %v1672, %v1687
  %v1696 = vadd.f32 %v1673, %v1687
  %v1697 = vadd.f32 %v1674, %v1687
  %v1698 = vadd.f32 %v1675, %v1687
  %v1699 = vadd.f32 %v1676, %v1687
  %v1700 = vadd.f32 %v1677, %v1687
  %v1701 = vadd.f32 %v1678, %v1687
  %v1702 = vadd.f32 %v1679, %v1687
  %v1703 = vadd.f32 %v1680, %v1687
  %v1704 = vadd.f32 %v1681, %v1687
  %v1705 = vmax.f32 %v1689, 0.0
  %v1706 = vmax.f32 %v1690, 0.0
  %v1707 = vmax.f32 %v1691, 0.0
  %v1708 = vmax.f32 %v1692, 0.0
  %v1709 = vmax.f32 %v1693, 0.0
  %v1710 = vmax.f32 %v1694, 0.0
  %v1711 = vmax.f32 %v1695, 0.0
  %v1712 = vmax.f32 %v1696, 0.0
  %v1713 = vmax.f32 %v1697, 0.0
  %v1714 = vmax.f32 %v1698, 0.0
  %v1715 = vmax.f32 %v1699, 0.0
  %v1716 = vmax.f32 %v1700, 0.0
  %v1717 = vmax.f32 %v1701, 0.0
  %v1718 = vmax.f32 %v1702, 0.0
  %v1719 = vmax.f32 %v1703, 0.0
  %v1720 = vmax.f32 %v1704, 0.0
  %1721 = vst [vmem:[%s3] sm:$0xff] %v1705
  %1722 = vst [vmem:[%s3 + $0x8] sm:$0xff] %v1706
  %1723 = vst [vmem:[%s3 + $0x10] sm:$0xff] %v1707
  %1724 = vst [vmem:[%s3 + $0x18] sm:$0xff] %v1708
  %1725 = vst [vmem:[%s3 + $0x20] sm:$0xff] %v1709
  %1726 = vst [vmem:[%s3 + $0x28] sm:$0xff] %v1710
  %1727 = vst [vmem:[%s3 + $0x30] sm:$0xff] %v1711
  %1728 = vst [vmem:[%s3 + $0x38] sm:$0xff] %v1712
  %1729 = vst [vmem:[%s3 + $0x40] sm:$0xff] %v1713
  %1730 = vst [vmem:[%s3 + $0x48] sm:$0xff] %v1714
  %1731 = vst [vmem:[%s3 + $0x50] sm:$0xff] %v1715
  %1732 = vst [vmem:[%s3 + $0x58] sm:$0xff] %v1716
  %1733 = vst [vmem:[%s3 + $0x60] sm:$0xff] %v1717
  %1734 = vst [vmem:[%s3 + $0x68] sm:$0xff] %v1718
  %1735 = vst [vmem:[%s3 + $0x70] sm:$0xff] %v1719
  %1736 = vst [vmem:[%s3 + $0x78] sm:$0xff] %v1720
  // Predicated region
  $region14: #{cnn_forward.4} parent=0 // pred_check
    _
  $region15: #{cnn_forward.4} parent=0 // pred_check_branch
    %1738 = sbr.rel (0) target = $region17
  $region16: #{cnn_forward.4} parent=0 // pred_region
    _
  $region17: #{cnn_forward.4} parent=0 // pred_fallthru
    _
  // Predicated region
  $region18: #{cnn_forward.4} parent=0 // pred_check
    _
  $region19: #{cnn_forward.4} parent=0 // pred_check_branch
    %1740 = sbr.rel (0) target = $region21
  $region20: #{cnn_forward.4} parent=0 // pred_region
    _
  $region21: #{cnn_forward.4} parent=0 // pred_fallthru
    _

// kernel: cnn_forward.5
$region0: #{cnn_forward.5}
  #allocation0 [shape = 'u32[]', space=smem, size = 0x4, offset = 0x4, fixed_abs, tag = 'smem constant byte address 0x4 - core index']
  #allocation1 [shape = 'u32[144,128]{1,0:T(1,128)}', space=vmem, size = 0x12000, scoped, tag = 'internal scratch']
  %s0 = inlined_call_operand.vmem [shape: bf16[2,1568], index: 0, kind: input, shape index: {}]
  %s1 = inlined_call_operand.vmem [shape: bf16[1568,128], index: 1, kind: input, shape index: {}]
  %s2 = inlined_call_operand.vmem [shape: f32[1,128], index: 2, kind: input, shape index: {}]
  %s3 = inlined_call_operand.hbm [shape: f32[2,128], index: 3, kind: output, shape index: {}]
  %s4 = sld [smem:[#allocation0]]
  $region22: #{cnn_forward.5} parent=0
    _
  %s6 = ssub.s32 1, %s4
  %s7 = scalar_select 0, %s6, %s4
  $region1: #{cnn_forward.5} parent=0
    #allocation2 [shape = 'u8[1024]{0}', space=vmem, size = 0x400, scoped, tag = 'output window, operand 0, single buffered']
    #allocation3 [shape = 's32[1]{0}', space=sflag, size = 0x4, scoped, tag = 'scoped memory for cnn_forward.5']
    %8 = vsyncpa [#allocation3], 0
    // Predicated region
    $region2: #{cnn_forward.5} parent=1 // pred_check
      _
    $region3: #{cnn_forward.5} parent=1 // pred_check_branch
      %10 = sbr.rel (0) target = $region5
    $region4: #{cnn_forward.5} parent=1 // pred_region
      _
    $region5: #{cnn_forward.5} parent=1 // pred_fallthru
      _
    // Predicated region
    $region6: #{cnn_forward.5} parent=1 // pred_check
      _
    $region7: #{cnn_forward.5} parent=1 // pred_check_branch
      %12 = sbr.rel (0) target = $region9
    $region8: #{cnn_forward.5} parent=1 // pred_region
      _
    $region9: #{cnn_forward.5} parent=1 // pred_fallthru
      _
    // Predicated region
    $region10: #{cnn_forward.5} parent=1 // pred_check
      _
    $region11: #{cnn_forward.5} parent=1 // pred_check_branch
      %14 = sbr.rel (0) target = $region13
    $region12: #{cnn_forward.5} parent=1 // pred_region
      _
    $region13: #{cnn_forward.5} parent=1 // pred_fallthru
      _
    %v16 = vld [vmem:[%s0] sm:$0xff]
    %v17 = vld [vmem:[%s0 + $0x8] sm:$0x1f]
    %v18 = vld [vmem:[%s1] sm:$0xf]
    %v19 = vld [vmem:[%s1 + $0x4] sm:$0xf]
    %v20 = vld [vmem:[%s1 + $0x8] sm:$0xf]
    %v21 = vld [vmem:[%s1 + $0xc] sm:$0xf]
    %v22 = vld [vmem:[%s1 + $0x10] sm:$0xf]
    %v23 = vld [vmem:[%s1 + $0x14] sm:$0xf]
    %v24 = vld [vmem:[%s1 + $0x18] sm:$0xf]
    %v25 = vld [vmem:[%s1 + $0x1c] sm:$0xf]
    %v26 = vld [vmem:[%s1 + $0x20] sm:$0xf]
    %v27 = vld [vmem:[%s1 + $0x24] sm:$0xf]
    %v28 = vld [vmem:[%s1 + $0x28] sm:$0xf]
    %v29 = vld [vmem:[%s1 + $0x2c] sm:$0xf]
    %v30 = vld [vmem:[%s1 + $0x30] sm:$0xf]
    %v31 = vld [vmem:[%s1 + $0x34] sm:$0xf]
    %v32 = vld [vmem:[%s1 + $0x38] sm:$0xf]
    %v33 = vld [vmem:[%s1 + $0x3c] sm:$0xf]
    %v34 = vld [vmem:[%s1 + $0x40] sm:$0xf]
    %v35 = vld [vmem:[%s1 + $0x44] sm:$0xf]
    %v36 = vld [vmem:[%s1 + $0x48] sm:$0xf]
    %v37 = vld [vmem:[%s1 + $0x4c] sm:$0xf]
    %v38 = vld [vmem:[%s1 + $0x50] sm:$0xf]
    %v39 = vld [vmem:[%s1 + $0x54] sm:$0xf]
    %v40 = vld [vmem:[%s1 + $0x58] sm:$0xf]
    %v41 = vld [vmem:[%s1 + $0x5c] sm:$0xf]
    %v42 = vld [vmem:[%s1 + $0x60] sm:$0xf]
    %v43 = vld [vmem:[%s1 + $0x64] sm:$0xf]
    %v44 = vld [vmem:[%s1 + $0x68] sm:$0xf]
    %v45 = vld [vmem:[%s1 + $0x6c] sm:$0xf]
    %v46 = vld [vmem:[%s1 + $0x70] sm:$0xf]
    %v47 = vld [vmem:[%s1 + $0x74] sm:$0xf]
    %v48 = vld [vmem:[%s1 + $0x78] sm:$0xf]
    %v49 = vld [vmem:[%s1 + $0x7c] sm:$0xf]
    %v50 = vld [vmem:[%s1 + $0x80] sm:$0xf]
    %v51 = vld [vmem:[%s1 + $0x84] sm:$0xf]
    %v52 = vld [vmem:[%s1 + $0x88] sm:$0xf]
    %v53 = vld [vmem:[%s1 + $0x8c] sm:$0xf]
    %v54 = vld [vmem:[%s1 + $0x90] sm:$0xf]
    %v55 = vld [vmem:[%s1 + $0x94] sm:$0xf]
    %v56 = vld [vmem:[%s1 + $0x98] sm:$0xf]
    %v57 = vld [vmem:[%s1 + $0x9c] sm:$0xf]
    %v58 = vld [vmem:[%s1 + $0xa0] sm:$0xf]
    %v59 = vld [vmem:[%s1 + $0xa4] sm:$0xf]
    %v60 = vld [vmem:[%s1 + $0xa8] sm:$0xf]
    %v61 = vld [vmem:[%s1 + $0xac] sm:$0xf]
    %v62 = vld [vmem:[%s1 + $0xb0] sm:$0xf]
    %v63 = vld [vmem:[%s1 + $0xb4] sm:$0xf]
    %v64 = vld [vmem:[%s1 + $0xb8] sm:$0xf]
    %v65 = vld [vmem:[%s1 + $0xbc] sm:$0xf]
    %v66 = vld [vmem:[%s1 + $0xc0] sm:$0xf]
    %v67 = vld [vmem:[%s1 + $0xc4] sm:$0xf]
    %v68 = vld [vmem:[%s1 + $0xc8] sm:$0xf]
    %v69 = vld [vmem:[%s1 + $0xcc] sm:$0xf]
    %v70 = vld [vmem:[%s1 + $0xd0] sm:$0xf]
    %v71 = vld [vmem:[%s1 + $0xd4] sm:$0xf]
    %v72 = vld [vmem:[%s1 + $0xd8] sm:$0xf]
    %v73 = vld [vmem:[%s1 + $0xdc] sm:$0xf]
    %v74 = vld [vmem:[%s1 + $0xe0] sm:$0xf]
    %v75 = vld [vmem:[%s1 + $0xe4] sm:$0xf]
    %v76 = vld [vmem:[%s1 + $0xe8] sm:$0xf]
    %v77 = vld [vmem:[%s1 + $0xec] sm:$0xf]
    %v78 = vld [vmem:[%s1 + $0xf0] sm:$0xf]
    %v79 = vld [vmem:[%s1 + $0xf4] sm:$0xf]
    %v80 = vld [vmem:[%s1 + $0xf8] sm:$0xf]
    %v81 = vld [vmem:[%s1 + $0xfc] sm:$0xf]
    %v82 = vld [vmem:[%s1 + $0x100] sm:$0xf]
    %v83 = vld [vmem:[%s1 + $0x104] sm:$0xf]
    %v84 = vld [vmem:[%s1 + $0x108] sm:$0xf]
    %v85 = vld [vmem:[%s1 + $0x10c] sm:$0xf]
    %v86 = vld [vmem:[%s1 + $0x110] sm:$0xf]
    %v87 = vld [vmem:[%s1 + $0x114] sm:$0xf]
    %v88 = vld [vmem:[%s1 + $0x118] sm:$0xf]
    %v89 = vld [vmem:[%s1 + $0x11c] sm:$0xf]
    %v90 = vld [vmem:[%s1 + $0x120] sm:$0xf]
    %v91 = vld [vmem:[%s1 + $0x124] sm:$0xf]
    %v92 = vld [vmem:[%s1 + $0x128] sm:$0xf]
    %v93 = vld [vmem:[%s1 + $0x12c] sm:$0xf]
    %v94 = vld [vmem:[%s1 + $0x130] sm:$0xf]
    %v95 = vld [vmem:[%s1 + $0x134] sm:$0xf]
    %v96 = vld [vmem:[%s1 + $0x138] sm:$0xf]
    %v97 = vld [vmem:[%s1 + $0x13c] sm:$0xf]
    %v98 = vld [vmem:[%s1 + $0x140] sm:$0xf]
    %v99 = vld [vmem:[%s1 + $0x144] sm:$0xf]
    %v100 = vld [vmem:[%s1 + $0x148] sm:$0xf]
    %v101 = vld [vmem:[%s1 + $0x14c] sm:$0xf]
    %v102 = vld [vmem:[%s1 + $0x150] sm:$0xf]
    %v103 = vld [vmem:[%s1 + $0x154] sm:$0xf]
    %v104 = vld [vmem:[%s1 + $0x158] sm:$0xf]
    %v105 = vld [vmem:[%s1 + $0x15c] sm:$0xf]
    %v106 = vld [vmem:[%s1 + $0x160] sm:$0xf]
    %v107 = vld [vmem:[%s1 + $0x164] sm:$0xf]
    %v108 = vld [vmem:[%s1 + $0x168] sm:$0xf]
    %v109 = vld [vmem:[%s1 + $0x16c] sm:$0xf]
    %v110 = vld [vmem:[%s1 + $0x170] sm:$0xf]
    %v111 = vld [vmem:[%s1 + $0x174] sm:$0xf]
    %v112 = vld [vmem:[%s1 + $0x178] sm:$0xf]
    %v113 = vld [vmem:[%s1 + $0x17c] sm:$0xf]
    %v114 = vld [vmem:[%s1 + $0x180] sm:$0xf]
    %v115 = vld [vmem:[%s1 + $0x184] sm:$0xf]
    %v116 = vld [vmem:[%s1 + $0x188] sm:$0xf]
    %v117 = vld [vmem:[%s1 + $0x18c] sm:$0xf]
    %v118 = vld [vmem:[%s1 + $0x190] sm:$0xf]
    %v119 = vld [vmem:[%s1 + $0x194] sm:$0xf]
    %v120 = vld [vmem:[%s1 + $0x198] sm:$0xf]
    %v121 = vld [vmem:[%s1 + $0x19c] sm:$0xf]
    %v122 = vld [vmem:[%s1 + $0x1a0] sm:$0xf]
    %v123 = vld [vmem:[%s1 + $0x1a4] sm:$0xf]
    %v124 = vld [vmem:[%s1 + $0x1a8] sm:$0xf]
    %v125 = vld [vmem:[%s1 + $0x1ac] sm:$0xf]
    %v126 = vld [vmem:[%s1 + $0x1b0] sm:$0xf]
    %v127 = vld [vmem:[%s1 + $0x1b4] sm:$0xf]
    %v128 = vld [vmem:[%s1 + $0x1b8] sm:$0xf]
    %v129 = vld [vmem:[%s1 + $0x1bc] sm:$0xf]
    %v130 = vld [vmem:[%s1 + $0x1c0] sm:$0xf]
    %v131 = vld [vmem:[%s1 + $0x1c4] sm:$0xf]
    %v132 = vld [vmem:[%s1 + $0x1c8] sm:$0xf]
    %v133 = vld [vmem:[%s1 + $0x1cc] sm:$0xf]
    %v134 = vld [vmem:[%s1 + $0x1d0] sm:$0xf]
    %v135 = vld [vmem:[%s1 + $0x1d4] sm:$0xf]
    %v136 = vld [vmem:[%s1 + $0x1d8] sm:$0xf]
    %v137 = vld [vmem:[%s1 + $0x1dc] sm:$0xf]
    %v138 = vld [vmem:[%s1 + $0x1e0] sm:$0xf]
    %v139 = vld [vmem:[%s1 + $0x1e4] sm:$0xf]
    %v140 = vld [vmem:[%s1 + $0x1e8] sm:$0xf]
    %v141 = vld [vmem:[%s1 + $0x1ec] sm:$0xf]
    %v142 = vld [vmem:[%s1 + $0x1f0] sm:$0xf]
    %v143 = vld [vmem:[%s1 + $0x1f4] sm:$0xf]
    %v144 = vld [vmem:[%s1 + $0x1f8] sm:$0xf]
    %v145 = vld [vmem:[%s1 + $0x1fc] sm:$0xf]
    %v146 = vld [vmem:[%s1 + $0x200] sm:$0xf]
    %v147 = vld [vmem:[%s1 + $0x204] sm:$0xf]
    %v148 = vld [vmem:[%s1 + $0x208] sm:$0xf]
    %v149 = vld [vmem:[%s1 + $0x20c] sm:$0xf]
    %v150 = vld [vmem:[%s1 + $0x210] sm:$0xf]
    %v151 = vld [vmem:[%s1 + $0x214] sm:$0xf]
    %v152 = vld [vmem:[%s1 + $0x218] sm:$0xf]
    %v153 = vld [vmem:[%s1 + $0x21c] sm:$0xf]
    %v154 = vld [vmem:[%s1 + $0x220] sm:$0xf]
    %v155 = vld [vmem:[%s1 + $0x224] sm:$0xf]
    %v156 = vld [vmem:[%s1 + $0x228] sm:$0xf]
    %v157 = vld [vmem:[%s1 + $0x22c] sm:$0xf]
    %v158 = vld [vmem:[%s1 + $0x230] sm:$0xf]
    %v159 = vld [vmem:[%s1 + $0x234] sm:$0xf]
    %v160 = vld [vmem:[%s1 + $0x238] sm:$0xf]
    %v161 = vld [vmem:[%s1 + $0x23c] sm:$0xf]
    %v162 = vld [vmem:[%s1 + $0x240] sm:$0xf]
    %v163 = vld [vmem:[%s1 + $0x244] sm:$0xf]
    %v164 = vld [vmem:[%s1 + $0x248] sm:$0xf]
    %v165 = vld [vmem:[%s1 + $0x24c] sm:$0xf]
    %v166 = vld [vmem:[%s1 + $0x250] sm:$0xf]
    %v167 = vld [vmem:[%s1 + $0x254] sm:$0xf]
    %v168 = vld [vmem:[%s1 + $0x258] sm:$0xf]
    %v169 = vld [vmem:[%s1 + $0x25c] sm:$0xf]
    %v170 = vld [vmem:[%s1 + $0x260] sm:$0xf]
    %v171 = vld [vmem:[%s1 + $0x264] sm:$0xf]
    %v172 = vld [vmem:[%s1 + $0x268] sm:$0xf]
    %v173 = vld [vmem:[%s1 + $0x26c] sm:$0xf]
    %v174 = vld [vmem:[%s1 + $0x270] sm:$0xf]
    %v175 = vld [vmem:[%s1 + $0x274] sm:$0xf]
    %v176 = vld [vmem:[%s1 + $0x278] sm:$0xf]
    %v177 = vld [vmem:[%s1 + $0x27c] sm:$0xf]
    %v178 = vld [vmem:[%s1 + $0x280] sm:$0xf]
    %v179 = vld [vmem:[%s1 + $0x284] sm:$0xf]
    %v180 = vld [vmem:[%s1 + $0x288] sm:$0xf]
    %v181 = vld [vmem:[%s1 + $0x28c] sm:$0xf]
    %v182 = vld [vmem:[%s1 + $0x290] sm:$0xf]
    %v183 = vld [vmem:[%s1 + $0x294] sm:$0xf]
    %v184 = vld [vmem:[%s1 + $0x298] sm:$0xf]
    %v185 = vld [vmem:[%s1 + $0x29c] sm:$0xf]
    %v186 = vld [vmem:[%s1 + $0x2a0] sm:$0xf]
    %v187 = vld [vmem:[%s1 + $0x2a4] sm:$0xf]
    %v188 = vld [vmem:[%s1 + $0x2a8] sm:$0xf]
    %v189 = vld [vmem:[%s1 + $0x2ac] sm:$0xf]
    %v190 = vld [vmem:[%s1 + $0x2b0] sm:$0xf]
    %v191 = vld [vmem:[%s1 + $0x2b4] sm:$0xf]
    %v192 = vld [vmem:[%s1 + $0x2b8] sm:$0xf]
    %v193 = vld [vmem:[%s1 + $0x2bc] sm:$0xf]
    %v194 = vld [vmem:[%s1 + $0x2c0] sm:$0xf]
    %v195 = vld [vmem:[%s1 + $0x2c4] sm:$0xf]
    %v196 = vld [vmem:[%s1 + $0x2c8] sm:$0xf]
    %v197 = vld [vmem:[%s1 + $0x2cc] sm:$0xf]
    %v198 = vld [vmem:[%s1 + $0x2d0] sm:$0xf]
    %v199 = vld [vmem:[%s1 + $0x2d4] sm:$0xf]
    %v200 = vld [vmem:[%s1 + $0x2d8] sm:$0xf]
    %v201 = vld [vmem:[%s1 + $0x2dc] sm:$0xf]
    %v202 = vld [vmem:[%s1 + $0x2e0] sm:$0xf]
    %v203 = vld [vmem:[%s1 + $0x2e4] sm:$0xf]
    %v204 = vld [vmem:[%s1 + $0x2e8] sm:$0xf]
    %v205 = vld [vmem:[%s1 + $0x2ec] sm:$0xf]
    %v206 = vld [vmem:[%s1 + $0x2f0] sm:$0xf]
    %v207 = vld [vmem:[%s1 + $0x2f4] sm:$0xf]
    %v208 = vld [vmem:[%s1 + $0x2f8] sm:$0xf]
    %v209 = vld [vmem:[%s1 + $0x2fc] sm:$0xf]
    %v210 = vld [vmem:[%s1 + $0x300] sm:$0xf]
    %v211 = vld [vmem:[%s1 + $0x304] sm:$0xf]
    %v212 = vld [vmem:[%s1 + $0x308] sm:$0xf]
    %v213 = vld [vmem:[%s1 + $0x30c] sm:$0xf]
    %v214 = vld [vmem:[%s2] sm:$0x1]
    %v216 = vlaneseq
    %v217 = vshrl.u32 %v216, 7
    %v218 = vsub.s32 0, %v217
    %v219 = vrot.slane %v214, %v218
    %v223 = vcombine.high %v16, %v16
    %v225 = vunpack.c.l.s4 1966171168
    %v226 = vunpack.c.0.s8 %v225
    %v227 = vlaneseq
    %v228 = vshrl.u32 %v227, 7
    %v229 = vsub.s32 %v226, %v228
    %v230 = vrot.slane %v16, %v229
    %v232 = vunpack.c.l.s4 1966171168
    %v233 = vunpack.c.0.s8 %v232
    %v234 = vlaneseq
    %v235 = vshrl.u32 %v234, 7
    %v236 = vsub.s32 %v233, %v235
    %v237 = vrot.slane %v223, %v236
    %v238 = vcombine.high %v230, %v230
    %v239 = vcombine.high %v237, %v237
    %v241 = vunpack.c.l.s4 1966171168
    %v242 = vunpack.c.0.s8 %v241
    %v243 = vlaneseq
    %v244 = vshrl.u32 %v243, 7
    %v245 = vsub.s32 %v242, %v244
    %v246 = vrot.slane %v230, %v245
    %v248 = vunpack.c.l.s4 1966171168
    %v249 = vunpack.c.0.s8 %v248
    %v250 = vlaneseq
    %v251 = vshrl.u32 %v250, 7
    %v252 = vsub.s32 %v249, %v251
    %v253 = vrot.slane %v237, %v252
    %v255 = vunpack.c.l.s4 1966171168
    %v256 = vunpack.c.0.s8 %v255
    %v257 = vlaneseq
    %v258 = vshrl.u32 %v257, 7
    %v259 = vsub.s32 %v256, %v258
    %v260 = vrot.slane %v238, %v259
    %v262 = vunpack.c.l.s4 1966171168
    %v263 = vunpack.c.0.s8 %v262
    %v264 = vlaneseq
    %v265 = vshrl.u32 %v264, 7
    %v266 = vsub.s32 %v263, %v265
    %v267 = vrot.slane %v239, %v266
    %v268 = vcombine.high %v246, %v246
    %v269 = vcombine.high %v253, %v253
    %v270 = vcombine.high %v260, %v260
    %v271 = vcombine.high %v267, %v267
    %v272 = vcombine.high %v17, %v17
    %v274 = vunpack.c.l.s4 1966171168
    %v275 = vunpack.c.0.s8 %v274
    %v276 = vlaneseq
    %v277 = vshrl.u32 %v276, 7
    %v278 = vsub.s32 %v275, %v277
    %v279 = vrot.slane %v17, %v278
    %v281 = vunpack.c.l.s4 1966171168
    %v282 = vunpack.c.0.s8 %v281
    %v283 = vlaneseq
    %v284 = vshrl.u32 %v283, 7
    %v285 = vsub.s32 %v282, %v284
    %v286 = vrot.slane %v272, %v285
    %v287 = vcombine.high %v279, %v279
    %v289 = vunpack.c.l.s4 1966171168
    %v290 = vunpack.c.0.s8 %v289
    %v291 = vlaneseq
    %v292 = vshrl.u32 %v291, 7
    %v293 = vsub.s32 %v290, %v292
    %v294 = vrot.slane %v279, %v293
    %v296 = vunpack.c.l.s4 1966171168
    %v297 = vunpack.c.0.s8 %v296
    %v298 = vlaneseq
    %v299 = vshrl.u32 %v298, 7
    %v300 = vsub.s32 %v297, %v299
    %v301 = vrot.slane %v286, %v300
    %v303 = vunpack.c.l.s4 1966171168
    %v304 = vunpack.c.0.s8 %v303
    %v305 = vlaneseq
    %v306 = vshrl.u32 %v305, 7
    %v307 = vsub.s32 %v304, %v306
    %v308 = vrot.slane %v287, %v307
    %v309 = vcombine.high %v294, %v294
    %v310 = vcombine.high %v308, %v308
    %v519 = vunpack.c.l.b16 %v18
    %v520 = vunpack.c.l.b16 %v19
    %v521 = vunpack.c.l.b16 %v20
    %v522 = vunpack.c.l.b16 %v21
    %v523 = vunpack.c.l.b16 %v22
    %v524 = vunpack.c.l.b16 %v23
    %v525 = vunpack.c.l.b16 %v24
    %v526 = vunpack.c.l.b16 %v25
    %v527 = vunpack.c.l.b16 %v26
    %v528 = vunpack.c.l.b16 %v27
    %v529 = vunpack.c.l.b16 %v28
    %v530 = vunpack.c.l.b16 %v29
    %v531 = vunpack.c.l.b16 %v30
    %v532 = vunpack.c.l.b16 %v31
    %v533 = vunpack.c.l.b16 %v32
    %v534 = vunpack.c.l.b16 %v33
    %v535 = vunpack.c.l.b16 %v34
    %v536 = vunpack.c.l.b16 %v35
    %v537 = vunpack.c.l.b16 %v36
    %v538 = vunpack.c.l.b16 %v37
    %v539 = vunpack.c.l.b16 %v38
    %v540 = vunpack.c.l.b16 %v39
    %v541 = vunpack.c.l.b16 %v40
    %v542 = vunpack.c.l.b16 %v41
    %v543 = vunpack.c.l.b16 %v42
    %v544 = vunpack.c.l.b16 %v43
    %v545 = vunpack.c.l.b16 %v44
    %v546 = vunpack.c.l.b16 %v45
    %v547 = vunpack.c.l.b16 %v46
    %v548 = vunpack.c.l.b16 %v47
    %v549 = vunpack.c.l.b16 %v48
    %v550 = vunpack.c.l.b16 %v49
    %v551 = vunpack.c.l.b16 %v50
    %v552 = vunpack.c.l.b16 %v51
    %v553 = vunpack.c.l.b16 %v52
    %v554 = vunpack.c.l.b16 %v53
    %v555 = vunpack.c.l.b16 %v54
    %v556 = vunpack.c.l.b16 %v55
    %v557 = vunpack.c.l.b16 %v56
    %v558 = vunpack.c.l.b16 %v57
    %v559 = vunpack.c.l.b16 %v58
    %v560 = vunpack.c.l.b16 %v59
    %v561 = vunpack.c.l.b16 %v60
    %v562 = vunpack.c.l.b16 %v61
    %v563 = vunpack.c.l.b16 %v62
    %v564 = vunpack.c.l.b16 %v63
    %v565 = vunpack.c.l.b16 %v64
    %v566 = vunpack.c.l.b16 %v65
    %v567 = vunpack.c.l.b16 %v66
    %v568 = vunpack.c.l.b16 %v67
    %v569 = vunpack.c.l.b16 %v68
    %v570 = vunpack.c.l.b16 %v69
    %v571 = vunpack.c.l.b16 %v70
    %v572 = vunpack.c.l.b16 %v71
    %v573 = vunpack.c.l.b16 %v72
    %v574 = vunpack.c.l.b16 %v73
    %v575 = vunpack.c.l.b16 %v74
    %v576 = vunpack.c.l.b16 %v75
    %v577 = vunpack.c.l.b16 %v76
    %v578 = vunpack.c.l.b16 %v77
    %v579 = vunpack.c.l.b16 %v78
    %v580 = vunpack.c.l.b16 %v79
    %v581 = vunpack.c.l.b16 %v80
    %v582 = vunpack.c.l.b16 %v81
    %v583 = vunpack.c.l.b16 %v82
    %v584 = vunpack.c.l.b16 %v83
    %v585 = vunpack.c.l.b16 %v84
    %v586 = vunpack.c.l.b16 %v85
    %v587 = vunpack.c.l.b16 %v86
    %v588 = vunpack.c.l.b16 %v87
    %v589 = vunpack.c.l.b16 %v88
    %v590 = vunpack.c.l.b16 %v89
    %v591 = vunpack.c.l.b16 %v90
    %v592 = vunpack.c.l.b16 %v91
    %v593 = vunpack.c.l.b16 %v92
    %v594 = vunpack.c.l.b16 %v93
    %v595 = vunpack.c.l.b16 %v94
    %v596 = vunpack.c.l.b16 %v95
    %v597 = vunpack.c.l.b16 %v96
    %v598 = vunpack.c.l.b16 %v97
    %v599 = vunpack.c.l.b16 %v98
    %v600 = vunpack.c.l.b16 %v99
    %v601 = vunpack.c.l.b16 %v100
    %v602 = vunpack.c.l.b16 %v101
    %v603 = vunpack.c.l.b16 %v102
    %v604 = vunpack.c.l.b16 %v103
    %v605 = vunpack.c.l.b16 %v104
    %v606 = vunpack.c.l.b16 %v105
    %v607 = vunpack.c.l.b16 %v106
    %v608 = vunpack.c.l.b16 %v107
    %v609 = vunpack.c.l.b16 %v108
    %v610 = vunpack.c.l.b16 %v109
    %v611 = vunpack.c.l.b16 %v110
    %v612 = vunpack.c.l.b16 %v111
    %v613 = vunpack.c.l.b16 %v112
    %v614 = vunpack.c.l.b16 %v113
    %v615 = vunpack.c.l.b16 %v114
    %v616 = vunpack.c.l.b16 %v115
    %v617 = vunpack.c.l.b16 %v116
    %v618 = vunpack.c.l.b16 %v117
    %v619 = vunpack.c.l.b16 %v118
    %v620 = vunpack.c.l.b16 %v119
    %v621 = vunpack.c.l.b16 %v120
    %v622 = vunpack.c.l.b16 %v121
    %v623 = vunpack.c.l.b16 %v122
    %v624 = vunpack.c.l.b16 %v123
    %v625 = vunpack.c.l.b16 %v124
    %v626 = vunpack.c.l.b16 %v125
    %v627 = vunpack.c.l.b16 %v126
    %v628 = vunpack.c.l.b16 %v127
    %v629 = vunpack.c.l.b16 %v128
    %v630 = vunpack.c.l.b16 %v129
    %v631 = vunpack.c.l.b16 %v130
    %v632 = vunpack.c.l.b16 %v131
    %v633 = vunpack.c.l.b16 %v132
    %v634 = vunpack.c.l.b16 %v133
    %v635 = vunpack.c.l.b16 %v134
    %v636 = vunpack.c.l.b16 %v135
    %v637 = vunpack.c.l.b16 %v136
    %v638 = vunpack.c.l.b16 %v137
    %v639 = vunpack.c.l.b16 %v138
    %v640 = vunpack.c.l.b16 %v139
    %v641 = vunpack.c.l.b16 %v140
    %v642 = vunpack.c.l.b16 %v141
    %v643 = vunpack.c.l.b16 %v142
    %v644 = vunpack.c.l.b16 %v143
    %v645 = vunpack.c.l.b16 %v144
    %v646 = vunpack.c.l.b16 %v145
    %v647 = vunpack.c.l.b16 %v146
    %v648 = vunpack.c.l.b16 %v147
    %v649 = vunpack.c.l.b16 %v148
    %v650 = vunpack.c.l.b16 %v149
    %v651 = vunpack.c.l.b16 %v150
    %v652 = vunpack.c.l.b16 %v151
    %v653 = vunpack.c.l.b16 %v152
    %v654 = vunpack.c.l.b16 %v153
    %v655 = vunpack.c.l.b16 %v154
    %v656 = vunpack.c.l.b16 %v155
    %v657 = vunpack.c.l.b16 %v156
    %v658 = vunpack.c.l.b16 %v157
    %v659 = vunpack.c.l.b16 %v158
    %v660 = vunpack.c.l.b16 %v159
    %v661 = vunpack.c.l.b16 %v160
    %v662 = vunpack.c.l.b16 %v161
    %v663 = vunpack.c.l.b16 %v162
    %v664 = vunpack.c.l.b16 %v163
    %v665 = vunpack.c.l.b16 %v164
    %v666 = vunpack.c.l.b16 %v165
    %v667 = vunpack.c.l.b16 %v166
    %v668 = vunpack.c.l.b16 %v167
    %v669 = vunpack.c.l.b16 %v168
    %v670 = vunpack.c.l.b16 %v169
    %v671 = vunpack.c.l.b16 %v170
    %v672 = vunpack.c.l.b16 %v171
    %v673 = vunpack.c.l.b16 %v172
    %v674 = vunpack.c.l.b16 %v173
    %v675 = vunpack.c.l.b16 %v174
    %v676 = vunpack.c.l.b16 %v175
    %v677 = vunpack.c.l.b16 %v176
    %v678 = vunpack.c.l.b16 %v177
    %v679 = vunpack.c.l.b16 %v178
    %v680 = vunpack.c.l.b16 %v179
    %v681 = vunpack.c.l.b16 %v180
    %v682 = vunpack.c.l.b16 %v181
    %v683 = vunpack.c.l.b16 %v182
    %v684 = vunpack.c.l.b16 %v183
    %v685 = vunpack.c.l.b16 %v184
    %v686 = vunpack.c.l.b16 %v185
    %v687 = vunpack.c.l.b16 %v186
    %v688 = vunpack.c.l.b16 %v187
    %v689 = vunpack.c.l.b16 %v188
    %v690 = vunpack.c.l.b16 %v189
    %v691 = vunpack.c.l.b16 %v190
    %v692 = vunpack.c.l.b16 %v191
    %v693 = vunpack.c.l.b16 %v192
    %v694 = vunpack.c.l.b16 %v193
    %v695 = vunpack.c.l.b16 %v194
    %v696 = vunpack.c.l.b16 %v195
    %v697 = vunpack.c.l.b16 %v196
    %v698 = vunpack.c.l.b16 %v197
    %v699 = vunpack.c.l.b16 %v198
    %v700 = vunpack.c.l.b16 %v199
    %v701 = vunpack.c.l.b16 %v200
    %v702 = vunpack.c.l.b16 %v201
    %v703 = vunpack.c.l.b16 %v202
    %v704 = vunpack.c.l.b16 %v203
    %v705 = vunpack.c.l.b16 %v204
    %v706 = vunpack.c.l.b16 %v205
    %v707 = vunpack.c.l.b16 %v206
    %v708 = vunpack.c.l.b16 %v207
    %v709 = vunpack.c.l.b16 %v208
    %v710 = vunpack.c.l.b16 %v209
    %v711 = vunpack.c.l.b16 %v210
    %v712 = vunpack.c.l.b16 %v211
    %v713 = vunpack.c.l.b16 %v212
    %v714 = vunpack.c.l.b16 %v213
    %v715 = vpack.c.b16 %v520, %v519
    %v716 = vpack.c.b16 %v522, %v521
    %v717 = vpack.c.b16 %v524, %v523
    %v718 = vpack.c.b16 %v526, %v525
    %v719 = vpack.c.b16 %v528, %v527
    %v720 = vpack.c.b16 %v530, %v529
    %v721 = vpack.c.b16 %v532, %v531
    %v722 = vpack.c.b16 %v534, %v533
    %v723 = vpack.c.b16 %v536, %v535
    %v724 = vpack.c.b16 %v538, %v537
    %v725 = vpack.c.b16 %v540, %v539
    %v726 = vpack.c.b16 %v542, %v541
    %v727 = vpack.c.b16 %v544, %v543
    %v728 = vpack.c.b16 %v546, %v545
    %v729 = vpack.c.b16 %v548, %v547
    %v730 = vpack.c.b16 %v550, %v549
    %v731 = vpack.c.b16 %v552, %v551
    %v732 = vpack.c.b16 %v554, %v553
    %v733 = vpack.c.b16 %v556, %v555
    %v734 = vpack.c.b16 %v558, %v557
    %v735 = vpack.c.b16 %v560, %v559
    %v736 = vpack.c.b16 %v562, %v561
    %v737 = vpack.c.b16 %v564, %v563
    %v738 = vpack.c.b16 %v566, %v565
    %v739 = vpack.c.b16 %v568, %v567
    %v740 = vpack.c.b16 %v570, %v569
    %v741 = vpack.c.b16 %v572, %v571
    %v742 = vpack.c.b16 %v574, %v573
    %v743 = vpack.c.b16 %v576, %v575
    %v744 = vpack.c.b16 %v578, %v577
    %v745 = vpack.c.b16 %v580, %v579
    %v746 = vpack.c.b16 %v582, %v581
    %v747 = vpack.c.b16 %v584, %v583
    %v748 = vpack.c.b16 %v586, %v585
    %v749 = vpack.c.b16 %v588, %v587
    %v750 = vpack.c.b16 %v590, %v589
    %v751 = vpack.c.b16 %v592, %v591
    %v752 = vpack.c.b16 %v594, %v593
    %v753 = vpack.c.b16 %v596, %v595
    %v754 = vpack.c.b16 %v598, %v597
    %v755 = vpack.c.b16 %v600, %v599
    %v756 = vpack.c.b16 %v602, %v601
    %v757 = vpack.c.b16 %v604, %v603
    %v758 = vpack.c.b16 %v606, %v605
    %v759 = vpack.c.b16 %v608, %v607
    %v760 = vpack.c.b16 %v610, %v609
    %v761 = vpack.c.b16 %v612, %v611
    %v762 = vpack.c.b16 %v614, %v613
    %v763 = vpack.c.b16 %v616, %v615
    %v764 = vpack.c.b16 %v618, %v617
    %v765 = vpack.c.b16 %v620, %v619
    %v766 = vpack.c.b16 %v622, %v621
    %v767 = vpack.c.b16 %v624, %v623
    %v768 = vpack.c.b16 %v626, %v625
    %v769 = vpack.c.b16 %v628, %v627
    %v770 = vpack.c.b16 %v630, %v629
    %v771 = vpack.c.b16 %v632, %v631
    %v772 = vpack.c.b16 %v634, %v633
    %v773 = vpack.c.b16 %v636, %v635
    %v774 = vpack.c.b16 %v638, %v637
    %v775 = vpack.c.b16 %v640, %v639
    %v776 = vpack.c.b16 %v642, %v641
    %v777 = vpack.c.b16 %v644, %v643
    %v778 = vpack.c.b16 %v646, %v645
    %v779 = vpack.c.b16 %v648, %v647
    %v780 = vpack.c.b16 %v650, %v649
    %v781 = vpack.c.b16 %v652, %v651
    %v782 = vpack.c.b16 %v654, %v653
    %v783 = vpack.c.b16 %v656, %v655
    %v784 = vpack.c.b16 %v658, %v657
    %v785 = vpack.c.b16 %v660, %v659
    %v786 = vpack.c.b16 %v662, %v661
    %v787 = vpack.c.b16 %v664, %v663
    %v788 = vpack.c.b16 %v666, %v665
    %v789 = vpack.c.b16 %v668, %v667
    %v790 = vpack.c.b16 %v670, %v669
    %v791 = vpack.c.b16 %v672, %v671
    %v792 = vpack.c.b16 %v674, %v673
    %v793 = vpack.c.b16 %v676, %v675
    %v794 = vpack.c.b16 %v678, %v677
    %v795 = vpack.c.b16 %v680, %v679
    %v796 = vpack.c.b16 %v682, %v681
    %v797 = vpack.c.b16 %v684, %v683
    %v798 = vpack.c.b16 %v686, %v685
    %v799 = vpack.c.b16 %v688, %v687
    %v800 = vpack.c.b16 %v690, %v689
    %v801 = vpack.c.b16 %v692, %v691
    %v802 = vpack.c.b16 %v694, %v693
    %v803 = vpack.c.b16 %v696, %v695
    %v804 = vpack.c.b16 %v698, %v697
    %v805 = vpack.c.b16 %v700, %v699
    %v806 = vpack.c.b16 %v702, %v701
    %v807 = vpack.c.b16 %v704, %v703
    %v808 = vpack.c.b16 %v706, %v705
    %v809 = vpack.c.b16 %v708, %v707
    %v810 = vpack.c.b16 %v710, %v709
    %v811 = vpack.c.b16 %v712, %v711
    %v812 = vpack.c.b16 %v714, %v713
    %vm911 = vcmask 261120
    %v913 = vsel %vm911, %v301, 0
    %915 = vmatprep.subr.bf16.mxu0 0
    %916 = vmatpush1.bf16.msra.mxu0 %v715
    %917 = vmatprep.subr.bf16.mxu0 0
    %918 = vmatpush1.bf16.msra.mxu0 %v716
    %919 = vmatprep.subr.bf16.mxu0 0
    %920 = vmatpush1.bf16.msra.mxu0 %v717
    %921 = vmatprep.subr.bf16.mxu0 0
    %922 = vmatpush1.bf16.msra.mxu0 %v718
    %923 = vmatprep.subr.bf16.mxu0 0
    %924 = vmatpush1.bf16.msra.mxu0 %v719
    %925 = vmatprep.subr.bf16.mxu0 0
    %926 = vmatpush1.bf16.msra.mxu0 %v720
    %927 = vmatprep.subr.bf16.mxu0 0
    %928 = vmatpush1.bf16.msra.mxu0 %v721
    %929 = vmatprep.subr.bf16.mxu0 0
    %930 = vmatpush1.bf16.msra.mxu0 %v722
    %931 = vmatprep.subr.bf16.mxu0 0
    %932 = vmatpush1.bf16.msra.mxu0 %v723
    %933 = vmatprep.subr.bf16.mxu0 0
    %934 = vmatpush1.bf16.msra.mxu0 %v724
    %935 = vmatprep.subr.bf16.mxu0 0
    %936 = vmatpush1.bf16.msra.mxu0 %v725
    %937 = vmatprep.subr.bf16.mxu0 0
    %938 = vmatpush1.bf16.msra.mxu0 %v726
    %939 = vmatprep.subr.bf16.mxu0 0
    %940 = vmatpush1.bf16.msra.mxu0 %v727
    %941 = vmatprep.subr.bf16.mxu0 0
    %942 = vmatpush1.bf16.msra.mxu0 %v728
    %943 = vmatprep.subr.bf16.mxu0 0
    %944 = vmatpush1.bf16.msra.mxu0 %v729
    %945 = vmatprep.subr.bf16.mxu0 0
    %946 = vmatpush1.bf16.msra.mxu0 %v730
    %947 = vmatprep.mubr.bf16.mxu0 %v260
    %948 = vmatmul.mubr.bf16.gmra.mrb[0].mxu0 %v246
    %v949 = vpop.f32.mrb[0].mxu0
    %v950 = vadd.f32 %v219, %v949
    %v951 = vpop.f32.mrb[0].mxu0
    %v952 = vpop.f32.mrb[0].mxu0
    %v953 = vpop.f32.mrb[0].mxu0
    %954 = vdwg.mxu0
    %955 = vmatprep.subr.bf16.mxu0 0
    %956 = vmatpush1.bf16.msra.mxu0 %v731
    %957 = vmatprep.subr.bf16.mxu0 0
    %958 = vmatpush1.bf16.msra.mxu0 %v732
    %959 = vmatprep.subr.bf16.mxu0 0
    %960 = vmatpush1.bf16.msra.mxu0 %v733
    %961 = vmatprep.subr.bf16.mxu0 0
    %962 = vmatpush1.bf16.msra.mxu0 %v734
    %963 = vmatprep.subr.bf16.mxu0 0
    %964 = vmatpush1.bf16.msra.mxu0 %v735
    %965 = vmatprep.subr.bf16.mxu0 0
    %966 = vmatpush1.bf16.msra.mxu0 %v736
    %967 = vmatprep.subr.bf16.mxu0 0
    %968 = vmatpush1.bf16.msra.mxu0 %v737
    %969 = vmatprep.subr.bf16.mxu0 0
    %970 = vmatpush1.bf16.msra.mxu0 %v738
    %971 = vmatprep.subr.bf16.mxu0 0
    %972 = vmatpush1.bf16.msra.mxu0 %v739
    %973 = vmatprep.subr.bf16.mxu0 0
    %974 = vmatpush1.bf16.msra.mxu0 %v740
    %975 = vmatprep.subr.bf16.mxu0 0
    %976 = vmatpush1.bf16.msra.mxu0 %v741
    %977 = vmatprep.subr.bf16.mxu0 0
    %978 = vmatpush1.bf16.msra.mxu0 %v742
    %979 = vmatprep.subr.bf16.mxu0 0
    %980 = vmatpush1.bf16.msra.mxu0 %v743
    %981 = vmatprep.subr.bf16.mxu0 0
    %982 = vmatpush1.bf16.msra.mxu0 %v744
    %983 = vmatprep.subr.bf16.mxu0 0
    %984 = vmatpush1.bf16.msra.mxu0 %v745
    %985 = vmatprep.subr.bf16.mxu0 0
    %986 = vmatpush1.bf16.msra.mxu0 %v746
    %987 = vmatprep.mubr.bf16.mxu0 %v270
    %988 = vmatmul.mubr.bf16.gmra.mrb[0].mxu0 %v268
    %v989 = vpop.f32.mrb[0].mxu0
    %v990 = vadd.f32 %v950, %v989
    %v991 = vpop.f32.mrb[0].mxu0
    %v992 = vpop.f32.mrb[0].mxu0
    %v993 = vpop.f32.mrb[0].mxu0
    %994 = vdwg.mxu0
    %995 = vmatprep.subr.bf16.mxu0 0
    %996 = vmatpush1.bf16.msra.mxu0 %v747
    %997 = vmatprep.subr.bf16.mxu0 0
    %998 = vmatpush1.bf16.msra.mxu0 %v748
    %999 = vmatprep.subr.bf16.mxu0 0
    %1000 = vmatpush1.bf16.msra.mxu0 %v749
    %1001 = vmatprep.subr.bf16.mxu0 0
    %1002 = vmatpush1.bf16.msra.mxu0 %v750
    %1003 = vmatprep.subr.bf16.mxu0 0
    %1004 = vmatpush1.bf16.msra.mxu0 %v751
    %1005 = vmatprep.subr.bf16.mxu0 0
    %1006 = vmatpush1.bf16.msra.mxu0 %v752
    %1007 = vmatprep.subr.bf16.mxu0 0
    %1008 = vmatpush1.bf16.msra.mxu0 %v753
    %1009 = vmatprep.subr.bf16.mxu0 0
    %1010 = vmatpush1.bf16.msra.mxu0 %v754
    %1011 = vmatprep.subr.bf16.mxu0 0
    %1012 = vmatpush1.bf16.msra.mxu0 %v755
    %1013 = vmatprep.subr.bf16.mxu0 0
    %1014 = vmatpush1.bf16.msra.mxu0 %v756
    %1015 = vmatprep.subr.bf16.mxu0 0
    %1016 = vmatpush1.bf16.msra.mxu0 %v757
    %1017 = vmatprep.subr.bf16.mxu0 0
    %1018 = vmatpush1.bf16.msra.mxu0 %v758
    %1019 = vmatprep.subr.bf16.mxu0 0
    %1020 = vmatpush1.bf16.msra.mxu0 %v759
    %1021 = vmatprep.subr.bf16.mxu0 0
    %1022 = vmatpush1.bf16.msra.mxu0 %v760
    %1023 = vmatprep.subr.bf16.mxu0 0
    %1024 = vmatpush1.bf16.msra.mxu0 %v761
    %1025 = vmatprep.subr.bf16.mxu0 0
    %1026 = vmatpush1.bf16.msra.mxu0 %v762
    %1027 = vmatprep.mubr.bf16.mxu0 %v267
    %1028 = vmatmul.mubr.bf16.gmra.mrb[0].mxu0 %v253
    %v1029 = vpop.f32.mrb[0].mxu0
    %v1030 = vadd.f32 %v990, %v1029
    %v1031 = vpop.f32.mrb[0].mxu0
    %v1032 = vpop.f32.mrb[0].mxu0
    %v1033 = vpop.f32.mrb[0].mxu0
    %1034 = vdwg.mxu0
    %1035 = vmatprep.subr.bf16.mxu0 0
    %1036 = vmatpush1.bf16.msra.mxu0 %v763
    %1037 = vmatprep.subr.bf16.mxu0 0
    %1038 = vmatpush1.bf16.msra.mxu0 %v764
    %1039 = vmatprep.subr.bf16.mxu0 0
    %1040 = vmatpush1.bf16.msra.mxu0 %v765
    %1041 = vmatprep.subr.bf16.mxu0 0
    %1042 = vmatpush1.bf16.msra.mxu0 %v766
    %1043 = vmatprep.subr.bf16.mxu0 0
    %1044 = vmatpush1.bf16.msra.mxu0 %v767
    %1045 = vmatprep.subr.bf16.mxu0 0
    %1046 = vmatpush1.bf16.msra.mxu0 %v768
    %1047 = vmatprep.subr.bf16.mxu0 0
    %1048 = vmatpush1.bf16.msra.mxu0 %v769
    %1049 = vmatprep.subr.bf16.mxu0 0
    %1050 = vmatpush1.bf16.msra.mxu0 %v770
    %1051 = vmatprep.subr.bf16.mxu0 0
    %1052 = vmatpush1.bf16.msra.mxu0 %v771
    %1053 = vmatprep.subr.bf16.mxu0 0
    %1054 = vmatpush1.bf16.msra.mxu0 %v772
    %1055 = vmatprep.subr.bf16.mxu0 0
    %1056 = vmatpush1.bf16.msra.mxu0 %v773
    %1057 = vmatprep.subr.bf16.mxu0 0
    %1058 = vmatpush1.bf16.msra.mxu0 %v774
    %1059 = vmatprep.subr.bf16.mxu0 0
    %1060 = vmatpush1.bf16.msra.mxu0 %v775
    %1061 = vmatprep.subr.bf16.mxu0 0
    %1062 = vmatpush1.bf16.msra.mxu0 %v776
    %1063 = vmatprep.subr.bf16.mxu0 0
    %1064 = vmatpush1.bf16.msra.mxu0 %v777
    %1065 = vmatprep.subr.bf16.mxu0 0
    %1066 = vmatpush1.bf16.msra.mxu0 %v778
    %1067 = vmatprep.mubr.bf16.mxu0 %v271
    %1068 = vmatmul.mubr.bf16.gmra.mrb[0].mxu0 %v269
    %v1069 = vpop.f32.mrb[0].mxu0
    %v1070 = vadd.f32 %v1030, %v1069
    %v1071 = vpop.f32.mrb[0].mxu0
    %v1072 = vpop.f32.mrb[0].mxu0
    %v1073 = vpop.f32.mrb[0].mxu0
    %1074 = vdwg.mxu0
    %1075 = vmatprep.subr.bf16.mxu0 0
    %1076 = vmatpush1.bf16.msra.mxu0 %v779
    %1077 = vmatprep.subr.bf16.mxu0 0
    %1078 = vmatpush1.bf16.msra.mxu0 %v780
    %1079 = vmatprep.subr.bf16.mxu0 0
    %1080 = vmatpush1.bf16.msra.mxu0 %v781
    %1081 = vmatprep.subr.bf16.mxu0 0
    %1082 = vmatpush1.bf16.msra.mxu0 %v782
    %1083 = vmatprep.subr.bf16.mxu0 0
    %1084 = vmatpush1.bf16.msra.mxu0 %v783
    %1085 = vmatprep.subr.bf16.mxu0 0
    %1086 = vmatpush1.bf16.msra.mxu0 %v784
    %1087 = vmatprep.subr.bf16.mxu0 0
    %1088 = vmatpush1.bf16.msra.mxu0 %v785
    %1089 = vmatprep.subr.bf16.mxu0 0
    %1090 = vmatpush1.bf16.msra.mxu0 %v786
    %1091 = vmatprep.subr.bf16.mxu0 0
    %1092 = vmatpush1.bf16.msra.mxu0 %v787
    %1093 = vmatprep.subr.bf16.mxu0 0
    %1094 = vmatpush1.bf16.msra.mxu0 %v788
    %1095 = vmatprep.subr.bf16.mxu0 0
    %1096 = vmatpush1.bf16.msra.mxu0 %v789
    %1097 = vmatprep.subr.bf16.mxu0 0
    %1098 = vmatpush1.bf16.msra.mxu0 %v790
    %1099 = vmatprep.subr.bf16.mxu0 0
    %1100 = vmatpush1.bf16.msra.mxu0 %v791
    %1101 = vmatprep.subr.bf16.mxu0 0
    %1102 = vmatpush1.bf16.msra.mxu0 %v792
    %1103 = vmatprep.subr.bf16.mxu0 0
    %1104 = vmatpush1.bf16.msra.mxu0 %v793
    %1105 = vmatprep.subr.bf16.mxu0 0
    %1106 = vmatpush1.bf16.msra.mxu0 %v794
    %1107 = vmatprep.mubr.bf16.mxu0 %v308
    %1108 = vmatmul.mubr.bf16.gmra.mrb[0].mxu0 %v294
    %v1109 = vpop.f32.mrb[0].mxu0
    %v1110 = vadd.f32 %v1070, %v1109
    %v1111 = vpop.f32.mrb[0].mxu0
    %v1112 = vpop.f32.mrb[0].mxu0
    %v1113 = vpop.f32.mrb[0].mxu0
    %1114 = vdwg.mxu0
    %1115 = vmatprep.subr.bf16.mxu0 0
    %1116 = vmatpush1.bf16.msra.mxu0 %v795
    %1117 = vmatprep.subr.bf16.mxu0 0
    %1118 = vmatpush1.bf16.msra.mxu0 %v796
    %1119 = vmatprep.subr.bf16.mxu0 0
    %1120 = vmatpush1.bf16.msra.mxu0 %v797
    %1121 = vmatprep.subr.bf16.mxu0 0
    %1122 = vmatpush1.bf16.msra.mxu0 %v798
    %1123 = vmatprep.subr.bf16.mxu0 0
    %1124 = vmatpush1.bf16.msra.mxu0 %v799
    %1125 = vmatprep.subr.bf16.mxu0 0
    %1126 = vmatpush1.bf16.msra.mxu0 %v800
    %1127 = vmatprep.subr.bf16.mxu0 0
    %1128 = vmatpush1.bf16.msra.mxu0 %v801
    %1129 = vmatprep.subr.bf16.mxu0 0
    %1130 = vmatpush1.bf16.msra.mxu0 %v802
    %1131 = vmatprep.subr.bf16.mxu0 0
    %1132 = vmatpush1.bf16.msra.mxu0 %v803
    %1133 = vmatprep.subr.bf16.mxu0 0
    %1134 = vmatpush1.bf16.msra.mxu0 %v804
    %1135 = vmatprep.subr.bf16.mxu0 0
    %1136 = vmatpush1.bf16.msra.mxu0 %v805
    %1137 = vmatprep.subr.bf16.mxu0 0
    %1138 = vmatpush1.bf16.msra.mxu0 %v806
    %1139 = vmatprep.subr.bf16.mxu0 0
    %1140 = vmatpush1.bf16.msra.mxu0 %v807
    %1141 = vmatprep.subr.bf16.mxu0 0
    %1142 = vmatpush1.bf16.msra.mxu0 %v808
    %1143 = vmatprep.subr.bf16.mxu0 0
    %1144 = vmatpush1.bf16.msra.mxu0 %v809
    %1145 = vmatprep.subr.bf16.mxu0 0
    %1146 = vmatpush1.bf16.msra.mxu0 %v810
    %1147 = vmatprep.mubr.bf16.mxu0 %v310
    %1148 = vmatmul.mubr.bf16.gmra.mrb[0].mxu0 %v309
    %v1149 = vpop.f32.mrb[0].mxu0
    %v1150 = vadd.f32 %v1110, %v1149
    %v1151 = vpop.f32.mrb[0].mxu0
    %v1152 = vpop.f32.mrb[0].mxu0
    %v1153 = vpop.f32.mrb[0].mxu0
    %1154 = vdwg.mxu0
    %1155 = vmatprep.subr.bf16.mxu0 0
    %1156 = vmatpush1.bf16.msra.mxu0 %v811
    %1157 = vmatprep.subr.bf16.mxu0 0
    %1158 = vmatpush1.bf16.msra.mxu0 %v812
    %1159 = vmatprep.subr.bf16.mxu0 0
    %1160 = vmatpush1.bf16.msra.mxu0 0
    %1161 = vmatprep.subr.bf16.mxu0 0
    %1162 = vmatpush1.bf16.msra.mxu0 0
    %1163 = vmatprep.subr.bf16.mxu0 0
    %1164 = vmatpush1.bf16.msra.mxu0 0
    %1165 = vmatprep.subr.bf16.mxu0 0
    %1166 = vmatpush1.bf16.msra.mxu0 0
    %1167 = vmatprep.subr.bf16.mxu0 0
    %1168 = vmatpush1.bf16.msra.mxu0 0
    %1169 = vmatprep.subr.bf16.mxu0 0
    %1170 = vmatpush1.bf16.msra.mxu0 0
    %1171 = vmatprep.subr.bf16.mxu0 0
    %1172 = vmatpush1.bf16.msra.mxu0 0
    %1173 = vmatprep.subr.bf16.mxu0 0
    %1174 = vmatpush1.bf16.msra.mxu0 0
    %1175 = vmatprep.subr.bf16.mxu0 0
    %1176 = vmatpush1.bf16.msra.mxu0 0
    %1177 = vmatprep.subr.bf16.mxu0 0
    %1178 = vmatpush1.bf16.msra.mxu0 0
    %1179 = vmatprep.subr.bf16.mxu0 0
    %1180 = vmatpush1.bf16.msra.mxu0 0
    %1181 = vmatprep.subr.bf16.mxu0 0
    %1182 = vmatpush1.bf16.msra.mxu0 0
    %1183 = vmatprep.subr.bf16.mxu0 0
    %1184 = vmatpush1.bf16.msra.mxu0 0
    %1185 = vmatprep.subr.bf16.mxu0 0
    %1186 = vmatpush1.bf16.msra.mxu0 0
    %1187 = vmatprep.mubr.bf16.mxu0 0
    %1188 = vmatmul.mubr.bf16.gmra.mrb[0].mxu0 %v913
    %v1189 = vpop.f32.mrb[0].mxu0
    %v1190 = vadd.f32 %v1150, %v1189
    %v1191 = vpop.f32.mrb[0].mxu0
    %v1192 = vpop.f32.mrb[0].mxu0
    %v1193 = vpop.f32.mrb[0].mxu0
    %1194 = vdwg.mxu0
    %1195 = vst [vmem:[#allocation2] sm:$0x3] %v1190
    // Predicated region
    $region14: #{cnn_forward.5} parent=1 // pred_check
      _
    $region15: #{cnn_forward.5} parent=1 // pred_check_branch
      %1197 = sbr.rel (0) target = $region17
    $region16: #{cnn_forward.5} parent=1 // pred_region
      %s1199 = ssub.s32 32, 32
      %1200 = vsyncadd [#allocation3], %s1199
      %s1202 = sshll.u32 [#allocation2], 4
      %s1203 = int_to_ptr.vmem [resolvable:$true] %s1202
      %1205 = dma.vmem_to_hbm [thread:$0]  %s1203, 32, %s3, [#allocation3]
    $region17: #{cnn_forward.5} parent=1 // pred_fallthru
      _
    // Predicated region
    $region18: #{cnn_forward.5} parent=1 // pred_check
      _
    $region19: #{cnn_forward.5} parent=1 // pred_check_branch
      %1207 = sbr.rel (0) target = $region21
    $region20: #{cnn_forward.5} parent=1 // pred_region
      %1208 = dma.done [#allocation3], 32
    $region21: #{cnn_forward.5} parent=1 // pred_fallthru
      _
    %1209 = vsyncpa [#allocation3], 1

</llo_original>
